<compile_context>
chip_gen: v7x
topology: tpu7x:2x2x1
jax: 0.10.0
libtpu: 0.0.40
codegen_flags: <defaults>
</compile_context>

<pallas_src>
import math

import jax
import jax.numpy as jnp
from jax.experimental import pallas as pl
from jax.experimental.pallas import tpu as pltpu

LEAKY_SLOPE = 0.01  # nn.LeakyReLU() default negative_slope


def _round_up(x, m):
    return ((x + m - 1) // m) * m


# ---------------------------------------------------------------------------
# Kernels
# ---------------------------------------------------------------------------
#
# Stride-2 / 3x3 / pad-1 conv, reformulated so no strided slicing of the input
# is ever needed inside the kernel:
#
#   The input block arrives as the free reshape (Nb, H/2, 2, W/2, 2*Cin) of the
#   NHWC activation, i.e.   x5[n, i, a, j, b*Cin + c] == x[n, 2i+a, 2j+b, c].
#   With u_a := x5[:, :, a]  (a = input row phase), the nine taps regroup into
#   six MXU matmuls whose results only need +1 shifts along the output row /
#   column axes (zero-filled at the border, matching pad=1):
#
#     out = u0@W0 + u1@W1                                (taps (1,1)(1,2)(2,1)(2,2))
#         + rowshift(u1@W2)                              (taps (0,1)(0,2))
#         + colshift(u0[:,Cin:]@w10 + u1[:,Cin:]@w20     (taps (1,0)(2,0))
#                    + rowshift(u1[:,Cin:]@w00))         (tap  (0,0))
#
#   W0..w00 are packed once at parameter-preparation time.  The last padded
#   row/column of the input is never used because H and W are even.

def _conv_s2_lrelu_kernel(x_ref, wbig_ref, wsml_ref, b_ref, o_ref, acc_ref):
    nb, hs, _, wp, k2 = x_ref.shape
    cin = k2 // 2
    cout = o_ref.shape[-1]
    m = nb * hs * wp
    f32 = jnp.float32

    u0 = x_ref[:, :, 0, :, :].reshape(m, k2)   # input rows 2*oh     (kh = 1)
    u1 = x_ref[:, :, 1, :, :].reshape(m, k2)   # input rows 2*oh + 1 (kh = 2 / 0)

    # Unshifted taps -> accumulate straight into the f32 VMEM scratch.
    acc_ref[...] = jnp.dot(u0, wbig_ref[0],
                           preferred_element_type=f32).reshape(nb, hs, wp, cout)
    acc_ref[...] += jnp.dot(u1, wbig_ref[1],
                            preferred_element_type=f32).reshape(nb, hs, wp, cout)

    if hs > 1:  # taps one input row above (kh = 0, kw in {1, 2})
        e = jnp.dot(u1, wbig_ref[2],
                    preferred_element_type=f32).reshape(nb, hs, wp, cout)
        acc_ref[...] += jnp.concatenate(
            [jnp.zeros((nb, 1, wp, cout), f32), e[:, :hs - 1]], axis=1)

    if wp > 1:  # taps one input column to the left (kw = 0)
        u0o = u0[:, cin:]   # odd input columns
        u1o = u1[:, cin:]
        c0 = (jnp.dot(u0o, wsml_ref[0], preferred_element_type=f32) +
              jnp.dot(u1o, wsml_ref[1], preferred_element_type=f32)
              ).reshape(nb, hs, wp, cout)
        if hs > 1:  # corner tap (0, 0)
            d0 = jnp.dot(u1o, wsml_ref[2],
                         preferred_element_type=f32).reshape(nb, hs, wp, cout)
            c0 = c0 + jnp.concatenate(
                [jnp.zeros((nb, 1, wp, cout), f32), d0[:, :hs - 1]], axis=1)
        acc_ref[...] += jnp.concatenate(
            [jnp.zeros((nb, hs, 1, cout), f32), c0[:, :, :wp - 1]], axis=2)

    y = acc_ref[...] + b_ref[...]                       # f32 bias
    y = jnp.where(y >= 0.0, y, LEAKY_SLOPE * y)         # LeakyReLU
    o_ref[...] = y.astype(o_ref.dtype)


def _final_conv_linear_kernel(x_ref, wbig_ref, b_ref, wl_ref, bl_ref, o_ref):
    """Fused tail: last conv (2x2 -> 1x1) + LeakyReLU + EqualLinear, Nb images.

    With a 2x2 input only the four interior taps contribute (all shifted tap
    groups land entirely on the zero padding).
    """
    nb = x_ref.shape[0]
    k2 = x_ref.shape[-1]
    f32 = jnp.float32
    u0 = x_ref[:, :, 0, :, :].reshape(nb, k2)
    u1 = x_ref[:, :, 1, :, :].reshape(nb, k2)
    acc = (jnp.dot(u0, wbig_ref[0], preferred_element_type=f32) +
           jnp.dot(u1, wbig_ref[1], preferred_element_type=f32))
    acc = acc + b_ref[...]
    acc = jnp.where(acc >= 0.0, acc, LEAKY_SLOPE * acc)
    y = jnp.dot(acc.astype(wl_ref.dtype), wl_ref[...],
                preferred_element_type=f32) + bl_ref[...]
    o_ref[...] = y.astype(o_ref.dtype)


# ---------------------------------------------------------------------------
# Wrappers
# ---------------------------------------------------------------------------

def _pick_batch_tile(n, pixels_per_image, target_m=256):
    """Images per grid step: keep matmul M >= ~256 on small-spatial layers."""
    nb = min(n, max(1, target_m // max(pixels_per_image, 1)))
    while n % nb:
        nb -= 1
    # Prefer >= 2 grid steps (v7x has 2 TensorCores) when M stays reasonable;
    # the weight block is grid-constant so this costs no extra weight DMA.
    if n // nb == 1 and n > 1 and nb % 2 == 0 and (nb // 2) * pixels_per_image >= 64:
        nb //= 2
    return nb


def _compiler_params(dim_semantics, est_vmem_bytes):
    kwargs = dict(dimension_semantics=dim_semantics)
    # Default scoped-VMEM limit is 16 MiB on v5e and 32 MiB on v6e/v7x.  Only
    # raise it when the estimated working set does not fit the smallest
    # default, and cap well below v7x's 64 MiB physical VMEM so the compiler
    # keeps headroom for its own scratch.
    if est_vmem_bytes > 16 * 1024 * 1024:
        kwargs["vmem_limit_bytes"] = min(int(est_vmem_bytes * 1.25),
                                         48 * 1024 * 1024)
    return pltpu.CompilerParams(**kwargs)


def conv_s2_lrelu(x_nhwc, layer):
    """One Conv2d(k=3, s=2, p=1) + LeakyReLU: (N,H,W,Cin) -> (N,H/2,W/2,Cout)."""
    n, h, w, cin = x_nhwc.shape
    assert h % 2 == 0 and w % 2 == 0, "stride-2 layers expect even H and W"
    hs, wp = h // 2, w // 2
    wbig, wsml, bias = layer["wbig"], layer["wsml"], layer["bias"]
    k2 = 2 * cin
    cout = wbig.shape[-1]
    assert wbig.shape == (3, k2, cout) and wsml.shape == (3, cin, cout)

    # Free, layout-preserving reinterpretation (bitcast reshape): no HBM pass.
    x5 = x_nhwc.reshape(n, hs, 2, wp, k2)

    nb = _pick_batch_tile(n, hs * wp)
    grid = (n // nb,)

    itemsize = jnp.dtype(x_nhwc.dtype).itemsize
    in_block = nb * hs * 2 * wp * k2 * itemsize
    out_block = nb * hs * wp * cout * itemsize
    weight_bytes = (3 * k2 * cout + 3 * cin * cout + cout) * itemsize
    acc_bytes = nb * hs * wp * cout * 4
    est = 2 * (in_block + out_block) + 2 * weight_bytes + 5 * acc_bytes

    return pl.pallas_call(
        _conv_s2_lrelu_kernel,
        out_shape=jax.ShapeDtypeStruct((n, hs, wp, cout), x_nhwc.dtype),
        grid=grid,
        in_specs=[
            pl.BlockSpec((nb, hs, 2, wp, k2), lambda i: (i, 0, 0, 0, 0)),
            pl.BlockSpec((3, k2, cout), lambda i: (0, 0, 0)),   # grid-constant
            pl.BlockSpec((3, cin, cout), lambda i: (0, 0, 0)),  # grid-constant
            pl.BlockSpec((1, cout), lambda i: (0, 0)),
        ],
        out_specs=pl.BlockSpec((nb, hs, wp, cout), lambda i: (i, 0, 0, 0)),
        scratch_shapes=[pltpu.VMEM((nb, hs, wp, cout), jnp.float32)],
        compiler_params=_compiler_params(("parallel",), est),
    )(x5, wbig, wsml, bias)


def final_conv_linear(x_nhwc, layer, lin_w, lin_b):
    """Fused last conv (2x2 -> 1x1) + LeakyReLU + EqualLinear. Returns (N, out_pad) f32."""
    n, h, w, cin = x_nhwc.shape
    assert h == 2 and w == 2, "fused tail expects the 2x2 pre-final activation"
    wbig, bias = layer["wbig"], layer["bias"]
    k2 = 2 * cin
    cout = wbig.shape[-1]
    out_pad = lin_w.shape[1]

    x5 = x_nhwc.reshape(n, 1, 2, 1, k2)
    nb = _pick_batch_tile(n, 1)
    grid = (n // nb,)

    itemsize = jnp.dtype(x_nhwc.dtype).itemsize
    est = (2 * (nb * 2 * k2 * itemsize + nb * out_pad * 4)
           + 2 * (2 * k2 * cout + cout * out_pad + cout + out_pad) * itemsize
           + 4 * nb * cout * 4)

    return pl.pallas_call(
        _final_conv_linear_kernel,
        out_shape=jax.ShapeDtypeStruct((n, out_pad), jnp.float32),
        grid=grid,
        in_specs=[
            pl.BlockSpec((nb, 1, 2, 1, k2), lambda i: (i, 0, 0, 0, 0)),
            pl.BlockSpec((2, k2, cout), lambda i: (0, 0, 0)),
            pl.BlockSpec((1, cout), lambda i: (0, 0)),
            pl.BlockSpec((cout, out_pad), lambda i: (0, 0)),
            pl.BlockSpec((1, out_pad), lambda i: (0, 0)),
        ],
        out_specs=pl.BlockSpec((nb, out_pad), lambda i: (i, 0)),
        compiler_params=_compiler_params(("parallel",), est),
    )(x5, wbig, bias, lin_w, lin_b)


# ---------------------------------------------------------------------------
# Parameters & forward
# ---------------------------------------------------------------------------

def init_params(key, in_c, out_c, spatial):
    """Deterministic synthetic parameters in the PyTorch layouts."""
    num_pools = int(math.log2(spatial))
    assert num_pools >= 1 and 2 ** num_pools == spatial
    keys = jax.random.split(key, 2 * num_pools + 1)
    convs = []
    cin = in_c
    for i in range(num_pools):
        std = 1.0 / math.sqrt(9 * cin)
        w = std * jax.random.normal(keys[2 * i], (3, 3, cin, out_c), jnp.float32)  # HWIO
        b = 0.01 * jax.random.normal(keys[2 * i + 1], (out_c,), jnp.float32)
        convs.append((w, b))
        cin = out_c
    lr_mul = 1.0
    lin_w = jax.random.normal(keys[-1], (out_c, out_c), jnp.float32) / lr_mul  # (out, in)
    lin_b = jnp.zeros((out_c,), jnp.float32)                                    # EqualLinear bias init = 0
    return {"convs": convs, "lin_w": lin_w, "lin_b": lin_b, "lr_mul": lr_mul}


def prepare_params(raw, compute_dtype=jnp.bfloat16):
    """Fold layouts / scales once.

    Conv weights (HWIO) are packed into the tap groups used by the kernel
    (`wbig` for kw in {1,2}; `wsml` for kw = 0), output channels are zero-
    padded to a multiple of 128 for lane-dense stores, and the EqualLinear
    scale / lr_mul are folded into a pre-transposed, padded (in, out) weight
    and an f32 bias.
    """
    n_layers = len(raw["convs"])
    out_c = raw["convs"][0][0].shape[3]
    cpad = _round_up(out_c, 128)

    convs = []
    prev_pad = None
    for li, (w, b) in enumerate(raw["convs"]):
        _, _, cin, cout = w.shape
        cin_pad = cin if li == 0 else prev_pad
        wpad = jnp.zeros((3, 3, cin_pad, cpad), jnp.float32
                         ).at[:, :, :cin, :cout].set(w)
        bpad = jnp.zeros((cpad,), jnp.float32).at[:cout].set(b)

        def big(kh):  # rows [0:cin_pad] hit even input cols (kw=1), [cin_pad:] odd (kw=2)
            return jnp.concatenate([wpad[kh, 1], wpad[kh, 2]], axis=0)

        wbig = jnp.stack([big(1), big(2), big(0)], axis=0)              # (3, 2*cin_pad, cpad)
        wsml = jnp.stack([wpad[1, 0], wpad[2, 0], wpad[0, 0]], axis=0)  # (3, cin_pad, cpad)

        layer = {"bias": bpad.reshape(1, cpad)}  # f32
        if li == n_layers - 1:                   # fused tail only needs interior taps
            layer["wbig"] = wbig[:2].astype(compute_dtype)
            layer["wsml"] = None
        else:
            layer["wbig"] = wbig.astype(compute_dtype)
            layer["wsml"] = wsml.astype(compute_dtype)
        convs.append(layer)
        prev_pad = cpad

    out_dim, in_dim = raw["lin_w"].shape
    scale = (1.0 / math.sqrt(in_dim)) * raw["lr_mul"]
    out_pad = _round_up(out_dim, 128)
    wl = jnp.zeros((cpad, out_pad), jnp.float32
                   ).at[:in_dim, :out_dim].set((raw["lin_w"] * scale).T)
    bl = jnp.zeros((1, out_pad), jnp.float32
                   ).at[0, :out_dim].set(raw["lin_b"] * raw["lr_mul"])
    return {"convs": convs, "lin_w": wl.astype(compute_dtype), "lin_b": bl}


def gradual_style_block_forward(x_nchw, prepared, out_c):
    """Matches GradualStyleBlock.forward: convs -> view(-1, out_c) -> EqualLinear."""
    x = jnp.transpose(x_nchw, (0, 2, 3, 1))          # one-time NCHW -> NHWC layout glue
    x = x.astype(prepared["lin_w"].dtype)
    for layer in prepared["convs"][:-1]:
        x = conv_s2_lrelu(x, layer)
    out = final_conv_linear(x, prepared["convs"][-1],
                            prepared["lin_w"], prepared["lin_b"])
    return out[:, :out_c]                            # drop lane padding


def reference_forward(x_nchw, raw):
    """Pure-JAX f32 HIGHEST-precision reference (same math)."""
    x = jnp.transpose(x_nchw, (0, 2, 3, 1)).astype(jnp.float32)
    for w, b in raw["convs"]:
        x = jax.lax.conv_general_dilated(
            x, w, window_strides=(2, 2), padding=((1, 1), (1, 1)),
            dimension_numbers=("NHWC", "HWIO", "NHWC"),
            precision=jax.lax.Precision.HIGHEST)
        x = x + b[None, None, None, :]
        x = jnp.where(x >= 0.0, x, LEAKY_SLOPE * x)
    out_c = raw["lin_w"].shape[0]
    x = x.reshape(-1, out_c)
    scale = (1.0 / math.sqrt(raw["lin_w"].shape[1])) * raw["lr_mul"]
    return (jnp.dot(x, (raw["lin_w"] * scale).T, precision=jax.lax.Precision.HIGHEST)
            + raw["lin_b"] * raw["lr_mul"])


if __name__ == "__main__":
    batch, in_c, out_c, spatial = 2, 4, 32, 16   # 4 stride-2 convs: 16->8->4->2->1
    key = jax.random.PRNGKey(0)
    kx, kp = jax.random.split(key)
    x = jax.random.normal(kx, (batch, in_c, spatial, spatial), jnp.float32)
    raw = init_params(kp, in_c, out_c, spatial)

    fwd = jax.jit(gradual_style_block_forward, static_argnums=2)
    ref = jax.block_until_ready(reference_forward(x, raw))

    # f32 matmul-operand path: tight end-to-end check of the kernel math.
    params_f32 = prepare_params(raw, jnp.float32)
    out = jax.block_until_ready(fwd(x, params_f32, out_c))
    assert out.shape == (batch, out_c), out.shape
    err = float(jnp.max(jnp.abs(out - ref)))
    assert jnp.allclose(out, ref, rtol=1e-2, atol=1e-2), f"f32 max_err={err}"

    # bf16 matmul operands (default; MXU-native), f32 accumulation — looser
    # tolerance reflects only the bf16 cast of activations/weights.
    params_bf16 = prepare_params(raw)
    out_bf16 = jax.block_until_ready(fwd(x, params_bf16, out_c))
    err_bf16 = float(jnp.max(jnp.abs(out_bf16 - ref)))
    assert jnp.allclose(out_bf16, ref, rtol=1e-1, atol=1e-1), f"bf16 max_err={err_bf16}"

    print("KERNEL_OK")
</pallas_src>

<mosaic_0001>
module attributes {stable_mosaic.version = 11 : i64} {
  func.func @_conv_s2_lrelu_kernel(%arg0: i32, %arg1: memref<1x8x2x8x8xf32, #tpu.memory_space<vmem>>, %arg2: memref<3x8x128xf32, #tpu.memory_space<vmem>>, %arg3: memref<3x4x128xf32, #tpu.memory_space<vmem>>, %arg4: memref<1x128xf32, #tpu.memory_space<vmem>>, %arg5: memref<1x8x8x128xf32, #tpu.memory_space<vmem>>, %arg6: memref<1x8x8x128xf32, #tpu.memory_space<vmem>>) attributes {dimension_semantics = [#tpu.dimension_semantics<parallel>], iteration_bounds = array<i64: 2>, scalar_prefetch = 0 : i64, scratch_operands = 1 : i64, tpu.core_type = #tpu.core_type<tc>, window_params = [{transform_indices = @transform_0, window_bounds = array<i64: 1, 8, 2, 8, 8>}, {pipeline_mode = #tpu.pipeline_mode<synchronous>, transform_indices = @transform_1, window_bounds = array<i64: 3, 8, 128>}, {pipeline_mode = #tpu.pipeline_mode<synchronous>, transform_indices = @transform_2, window_bounds = array<i64: 3, 4, 128>}, {pipeline_mode = #tpu.pipeline_mode<synchronous>, transform_indices = @transform_3, window_bounds = array<i64: 1, 128>}, {transform_indices = @transform_4, window_bounds = array<i64: 1, 8, 8, 128>}]} {
    %c0 = arith.constant 0 : index
    %c0_0 = arith.constant 0 : index
    %c0_1 = arith.constant 0 : index
    %c0_2 = arith.constant 0 : index
    %c0_3 = arith.constant 0 : index
    %0 = vector.load %arg1[%c0, %c0_0, %c0_1, %c0_2, %c0_3] : memref<1x8x2x8x8xf32, #tpu.memory_space<vmem>>, vector<1x8x1x8x8xf32>
    %1 = vector.shape_cast %0 : vector<1x8x1x8x8xf32> to vector<1x8x8x8xf32>
    %2 = vector.shape_cast %1 : vector<1x8x8x8xf32> to vector<64x8xf32>
    %c0_4 = arith.constant 0 : index
    %c0_5 = arith.constant 0 : index
    %c1 = arith.constant 1 : index
    %c0_6 = arith.constant 0 : index
    %c0_7 = arith.constant 0 : index
    %3 = vector.load %arg1[%c0_4, %c0_5, %c1, %c0_6, %c0_7] : memref<1x8x2x8x8xf32, #tpu.memory_space<vmem>>, vector<1x8x1x8x8xf32>
    %4 = vector.shape_cast %3 : vector<1x8x1x8x8xf32> to vector<1x8x8x8xf32>
    %5 = vector.shape_cast %4 : vector<1x8x8x8xf32> to vector<64x8xf32>
    %c0_8 = arith.constant 0 : index
    %c0_9 = arith.constant 0 : index
    %c0_10 = arith.constant 0 : index
    %6 = vector.load %arg2[%c0_8, %c0_9, %c0_10] : memref<3x8x128xf32, #tpu.memory_space<vmem>>, vector<1x8x128xf32>
    %7 = vector.shape_cast %6 : vector<1x8x128xf32> to vector<8x128xf32>
    %cst = arith.constant dense<0.000000e+00> : vector<64x128xf32>
    %8 = tpu.matmul %2, %7, %cst {dimension_numbers = #tpu.dot_dimension_numbers<[1], [0], [0], [1], [0, 0, 1, 1], [], []>} : vector<64x8xf32>, vector<8x128xf32>, vector<64x128xf32> -> vector<64x128xf32>
    %9 = vector.shape_cast %8 : vector<64x128xf32> to vector<1x8x8x128xf32>
    %c0_11 = arith.constant 0 : index
    %c0_12 = arith.constant 0 : index
    %c0_13 = arith.constant 0 : index
    %c0_14 = arith.constant 0 : index
    %10 = vector.load %arg6[%c0_11, %c0_12, %c0_13, %c0_14] : memref<1x8x8x128xf32, #tpu.memory_space<vmem>>, vector<1x8x8x128xf32>
    tpu.vector_store %arg6[%c0_11, %c0_12, %c0_13, %c0_14], %9 {strides = array<i32>} : memref<1x8x8x128xf32, #tpu.memory_space<vmem>>, vector<1x8x8x128xf32>,
    %c0_15 = arith.constant 0 : index
    %c0_16 = arith.constant 0 : index
    %c0_17 = arith.constant 0 : index
    %c0_18 = arith.constant 0 : index
    %11 = vector.load %arg6[%c0_15, %c0_16, %c0_17, %c0_18] : memref<1x8x8x128xf32, #tpu.memory_space<vmem>>, vector<1x8x8x128xf32>
    %c1_19 = arith.constant 1 : index
    %c0_20 = arith.constant 0 : index
    %c0_21 = arith.constant 0 : index
    %12 = vector.load %arg2[%c1_19, %c0_20, %c0_21] : memref<3x8x128xf32, #tpu.memory_space<vmem>>, vector<1x8x128xf32>
    %13 = vector.shape_cast %12 : vector<1x8x128xf32> to vector<8x128xf32>
    %cst_22 = arith.constant dense<0.000000e+00> : vector<64x128xf32>
    %14 = tpu.matmul %5, %13, %cst_22 {dimension_numbers = #tpu.dot_dimension_numbers<[1], [0], [0], [1], [0, 0, 1, 1], [], []>} : vector<64x8xf32>, vector<8x128xf32>, vector<64x128xf32> -> vector<64x128xf32>
    %15 = vector.shape_cast %14 : vector<64x128xf32> to vector<1x8x8x128xf32>
    %16 = arith.addf %11, %15 : vector<1x8x8x128xf32>
    %c0_23 = arith.constant 0 : index
    %c0_24 = arith.constant 0 : index
    %c0_25 = arith.constant 0 : index
    %c0_26 = arith.constant 0 : index
    %17 = vector.load %arg6[%c0_23, %c0_24, %c0_25, %c0_26] : memref<1x8x8x128xf32, #tpu.memory_space<vmem>>, vector<1x8x8x128xf32>
    tpu.vector_store %arg6[%c0_23, %c0_24, %c0_25, %c0_26], %16 {strides = array<i32>} : memref<1x8x8x128xf32, #tpu.memory_space<vmem>>, vector<1x8x8x128xf32>,
    %c2 = arith.constant 2 : index
    %c0_27 = arith.constant 0 : index
    %c0_28 = arith.constant 0 : index
    %18 = vector.load %arg2[%c2, %c0_27, %c0_28] : memref<3x8x128xf32, #tpu.memory_space<vmem>>, vector<1x8x128xf32>
    %19 = vector.shape_cast %18 : vector<1x8x128xf32> to vector<8x128xf32>
    %cst_29 = arith.constant dense<0.000000e+00> : vector<64x128xf32>
    %20 = tpu.matmul %5, %19, %cst_29 {dimension_numbers = #tpu.dot_dimension_numbers<[1], [0], [0], [1], [0, 0, 1, 1], [], []>} : vector<64x8xf32>, vector<8x128xf32>, vector<64x128xf32> -> vector<64x128xf32>
    %21 = vector.shape_cast %20 : vector<64x128xf32> to vector<1x8x8x128xf32>
    %c0_30 = arith.constant 0 : index
    %c0_31 = arith.constant 0 : index
    %c0_32 = arith.constant 0 : index
    %c0_33 = arith.constant 0 : index
    %22 = vector.load %arg6[%c0_30, %c0_31, %c0_32, %c0_33] : memref<1x8x8x128xf32, #tpu.memory_space<vmem>>, vector<1x8x8x128xf32>
    %cst_34 = arith.constant 0.000000e+00 : f32
    %23 = vector.broadcast %cst_34 : f32 to vector<1x1x8x128xf32>
    %24 = vector.extract_strided_slice %21 {offsets = [0, 0, 0, 0], sizes = [1, 7, 8, 128], strides = [1, 1, 1, 1]} : vector<1x8x8x128xf32> to vector<1x7x8x128xf32>
    %25 = tpu.concatenate %23, %24 in 1 : vector<1x1x8x128xf32>, vector<1x7x8x128xf32> -> vector<1x8x8x128xf32>
    %26 = arith.addf %22, %25 : vector<1x8x8x128xf32>
    %c0_35 = arith.constant 0 : index
    %c0_36 = arith.constant 0 : index
    %c0_37 = arith.constant 0 : index
    %c0_38 = arith.constant 0 : index
    %27 = vector.load %arg6[%c0_35, %c0_36, %c0_37, %c0_38] : memref<1x8x8x128xf32, #tpu.memory_space<vmem>>, vector<1x8x8x128xf32>
    tpu.vector_store %arg6[%c0_35, %c0_36, %c0_37, %c0_38], %26 {strides = array<i32>} : memref<1x8x8x128xf32, #tpu.memory_space<vmem>>, vector<1x8x8x128xf32>,
    %28 = vector.extract_strided_slice %2 {offsets = [0, 4], sizes = [64, 4], strides = [1, 1]} : vector<64x8xf32> to vector<64x4xf32>
    %29 = vector.extract_strided_slice %5 {offsets = [0, 4], sizes = [64, 4], strides = [1, 1]} : vector<64x8xf32> to vector<64x4xf32>
    %c0_39 = arith.constant 0 : index
    %c0_40 = arith.constant 0 : index
    %c0_41 = arith.constant 0 : index
    %30 = vector.load %arg3[%c0_39, %c0_40, %c0_41] : memref<3x4x128xf32, #tpu.memory_space<vmem>>, vector<1x4x128xf32>
    %31 = vector.shape_cast %30 : vector<1x4x128xf32> to vector<4x128xf32>
    %cst_42 = arith.constant dense<0.000000e+00> : vector<64x128xf32>
    %32 = tpu.matmul %28, %31, %cst_42 {dimension_numbers = #tpu.dot_dimension_numbers<[1], [0], [0], [1], [0, 0, 1, 1], [], []>} : vector<64x4xf32>, vector<4x128xf32>, vector<64x128xf32> -> vector<64x128xf32>
    %c1_43 = arith.constant 1 : index
    %c0_44 = arith.constant 0 : index
    %c0_45 = arith.constant 0 : index
    %33 = vector.load %arg3[%c1_43, %c0_44, %c0_45] : memref<3x4x128xf32, #tpu.memory_space<vmem>>, vector<1x4x128xf32>
    %34 = vector.shape_cast %33 : vector<1x4x128xf32> to vector<4x128xf32>
    %cst_46 = arith.constant dense<0.000000e+00> : vector<64x128xf32>
    %35 = tpu.matmul %29, %34, %cst_46 {dimension_numbers = #tpu.dot_dimension_numbers<[1], [0], [0], [1], [0, 0, 1, 1], [], []>} : vector<64x4xf32>, vector<4x128xf32>, vector<64x128xf32> -> vector<64x128xf32>
    %36 = arith.addf %32, %35 : vector<64x128xf32>
    %37 = vector.shape_cast %36 : vector<64x128xf32> to vector<1x8x8x128xf32>
    %c2_47 = arith.constant 2 : index
    %c0_48 = arith.constant 0 : index
    %c0_49 = arith.constant 0 : index
    %38 = vector.load %arg3[%c2_47, %c0_48, %c0_49] : memref<3x4x128xf32, #tpu.memory_space<vmem>>, vector<1x4x128xf32>
    %39 = vector.shape_cast %38 : vector<1x4x128xf32> to vector<4x128xf32>
    %cst_50 = arith.constant dense<0.000000e+00> : vector<64x128xf32>
    %40 = tpu.matmul %29, %39, %cst_50 {dimension_numbers = #tpu.dot_dimension_numbers<[1], [0], [0], [1], [0, 0, 1, 1], [], []>} : vector<64x4xf32>, vector<4x128xf32>, vector<64x128xf32> -> vector<64x128xf32>
    %41 = vector.shape_cast %40 : vector<64x128xf32> to vector<1x8x8x128xf32>
    %cst_51 = arith.constant 0.000000e+00 : f32
    %42 = vector.broadcast %cst_51 : f32 to vector<1x1x8x128xf32>
    %43 = vector.extract_strided_slice %41 {offsets = [0, 0, 0, 0], sizes = [1, 7, 8, 128], strides = [1, 1, 1, 1]} : vector<1x8x8x128xf32> to vector<1x7x8x128xf32>
    %44 = tpu.concatenate %42, %43 in 1 : vector<1x1x8x128xf32>, vector<1x7x8x128xf32> -> vector<1x8x8x128xf32>
    %45 = arith.addf %37, %44 : vector<1x8x8x128xf32>
    %c0_52 = arith.constant 0 : index
    %c0_53 = arith.constant 0 : index
    %c0_54 = arith.constant 0 : index
    %c0_55 = arith.constant 0 : index
    %46 = vector.load %arg6[%c0_52, %c0_53, %c0_54, %c0_55] : memref<1x8x8x128xf32, #tpu.memory_space<vmem>>, vector<1x8x8x128xf32>
    %cst_56 = arith.constant 0.000000e+00 : f32
    %47 = vector.broadcast %cst_56 : f32 to vector<1x8x1x128xf32>
    %48 = vector.extract_strided_slice %45 {offsets = [0, 0, 0, 0], sizes = [1, 8, 7, 128], strides = [1, 1, 1, 1]} : vector<1x8x8x128xf32> to vector<1x8x7x128xf32>
    %49 = tpu.concatenate %47, %48 in 2 : vector<1x8x1x128xf32>, vector<1x8x7x128xf32> -> vector<1x8x8x128xf32>
    %50 = arith.addf %46, %49 : vector<1x8x8x128xf32>
    %c0_57 = arith.constant 0 : index
    %c0_58 = arith.constant 0 : index
    %c0_59 = arith.constant 0 : index
    %c0_60 = arith.constant 0 : index
    %51 = vector.load %arg6[%c0_57, %c0_58, %c0_59, %c0_60] : memref<1x8x8x128xf32, #tpu.memory_space<vmem>>, vector<1x8x8x128xf32>
    tpu.vector_store %arg6[%c0_57, %c0_58, %c0_59, %c0_60], %50 {strides = array<i32>} : memref<1x8x8x128xf32, #tpu.memory_space<vmem>>, vector<1x8x8x128xf32>,
    %c0_61 = arith.constant 0 : index
    %c0_62 = arith.constant 0 : index
    %c0_63 = arith.constant 0 : index
    %c0_64 = arith.constant 0 : index
    %52 = vector.load %arg6[%c0_61, %c0_62, %c0_63, %c0_64] : memref<1x8x8x128xf32, #tpu.memory_space<vmem>>, vector<1x8x8x128xf32>
    %c0_65 = arith.constant 0 : index
    %c0_66 = arith.constant 0 : index
    %53 = vector.load %arg4[%c0_65, %c0_66] : memref<1x128xf32, #tpu.memory_space<vmem>>, vector<1x128xf32>
    %54 = vector.shape_cast %53 : vector<1x128xf32> to vector<1x1x1x128xf32>
    %55 = vector.broadcast %54 : vector<1x1x1x128xf32> to vector<1x8x8x128xf32>
    %56 = arith.addf %52, %55 : vector<1x8x8x128xf32>
    %cst_67 = arith.constant 0.000000e+00 : f32
    %57 = vector.broadcast %cst_67 : f32 to vector<1x8x8x128xf32>
    %58 = arith.cmpf oge, %56, %57 : vector<1x8x8x128xf32>
    %cst_68 = arith.constant 0.00999999977 : f32
    %59 = vector.broadcast %cst_68 : f32 to vector<1x8x8x128xf32>
    %60 = arith.mulf %59, %56 : vector<1x8x8x128xf32>
    %61 = arith.select %58, %56, %60 : vector<1x8x8x128xi1>, vector<1x8x8x128xf32>
    %c0_69 = arith.constant 0 : index
    %c0_70 = arith.constant 0 : index
    %c0_71 = arith.constant 0 : index
    %c0_72 = arith.constant 0 : index
    %62 = vector.load %arg5[%c0_69, %c0_70, %c0_71, %c0_72] : memref<1x8x8x128xf32, #tpu.memory_space<vmem>>, vector<1x8x8x128xf32>
    tpu.vector_store %arg5[%c0_69, %c0_70, %c0_71, %c0_72], %61 {strides = array<i32>} : memref<1x8x8x128xf32, #tpu.memory_space<vmem>>, vector<1x8x8x128xf32>,
    return
  }
  func.func @transform_0(%arg0: i32) -> (i32, i32, i32, i32, i32) {
    %c0_i32 = arith.constant 0 : i32
    %c0_i32_0 = arith.constant 0 : i32
    %c0_i32_1 = arith.constant 0 : i32
    %c0_i32_2 = arith.constant 0 : i32
    %c0_i32_3 = arith.constant 0 : i32
    return %arg0, %c0_i32, %c0_i32_0, %c0_i32_1, %c0_i32_2 : i32, i32, i32, i32, i32
  }
  func.func @transform_1(%arg0: i32) -> (i32, i32, i32) {
    %c0_i32 = arith.constant 0 : i32
    %c0_i32_0 = arith.constant 0 : i32
    %c0_i32_1 = arith.constant 0 : i32
    %c0_i32_2 = arith.constant 0 : i32
    return %c0_i32, %c0_i32_0, %c0_i32_1 : i32, i32, i32
  }
  func.func @transform_2(%arg0: i32) -> (i32, i32, i32) {
    %c0_i32 = arith.constant 0 : i32
    %c0_i32_0 = arith.constant 0 : i32
    %c0_i32_1 = arith.constant 0 : i32
    %c0_i32_2 = arith.constant 0 : i32
    return %c0_i32, %c0_i32_0, %c0_i32_1 : i32, i32, i32
  }
  func.func @transform_3(%arg0: i32) -> (i32, i32) {
    %c0_i32 = arith.constant 0 : i32
    %c0_i32_0 = arith.constant 0 : i32
    %c0_i32_1 = arith.constant 0 : i32
    return %c0_i32, %c0_i32_0 : i32, i32
  }
  func.func @transform_4(%arg0: i32) -> (i32, i32, i32, i32) {
    %c0_i32 = arith.constant 0 : i32
    %c0_i32_0 = arith.constant 0 : i32
    %c0_i32_1 = arith.constant 0 : i32
    %c0_i32_2 = arith.constant 0 : i32
    return %arg0, %c0_i32, %c0_i32_0, %c0_i32_1 : i32, i32, i32, i32
  }
}

module attributes {stable_mosaic.version = 11 : i64} {
  func.func @_conv_s2_lrelu_kernel(%arg0: i32, %arg1: memref<2x4x2x4x256xf32, #tpu.memory_space<vmem>>, %arg2: memref<3x256x128xf32, #tpu.memory_space<vmem>>, %arg3: memref<3x128x128xf32, #tpu.memory_space<vmem>>, %arg4: memref<1x128xf32, #tpu.memory_space<vmem>>, %arg5: memref<2x4x4x128xf32, #tpu.memory_space<vmem>>, %arg6: memref<2x4x4x128xf32, #tpu.memory_space<vmem>>) attributes {dimension_semantics = [#tpu.dimension_semantics<parallel>], iteration_bounds = array<i64: 1>, scalar_prefetch = 0 : i64, scratch_operands = 1 : i64, tpu.core_type = #tpu.core_type<tc>, window_params = [{transform_indices = @transform_0, window_bounds = array<i64: 2, 4, 2, 4, 256>}, {pipeline_mode = #tpu.pipeline_mode<synchronous>, transform_indices = @transform_1, window_bounds = array<i64: 3, 256, 128>}, {pipeline_mode = #tpu.pipeline_mode<synchronous>, transform_indices = @transform_2, window_bounds = array<i64: 3, 128, 128>}, {pipeline_mode = #tpu.pipeline_mode<synchronous>, transform_indices = @transform_3, window_bounds = array<i64: 1, 128>}, {transform_indices = @transform_4, window_bounds = array<i64: 2, 4, 4, 128>}]} {
    %c0 = arith.constant 0 : index
    %c0_0 = arith.constant 0 : index
    %c0_1 = arith.constant 0 : index
    %c0_2 = arith.constant 0 : index
    %c0_3 = arith.constant 0 : index
    %0 = vector.load %arg1[%c0, %c0_0, %c0_1, %c0_2, %c0_3] : memref<2x4x2x4x256xf32, #tpu.memory_space<vmem>>, vector<2x4x1x4x256xf32>
    %1 = vector.shape_cast %0 : vector<2x4x1x4x256xf32> to vector<2x4x4x256xf32>
    %2 = vector.shape_cast %1 : vector<2x4x4x256xf32> to vector<32x256xf32>
    %c0_4 = arith.constant 0 : index
    %c0_5 = arith.constant 0 : index
    %c1 = arith.constant 1 : index
    %c0_6 = arith.constant 0 : index
    %c0_7 = arith.constant 0 : index
    %3 = vector.load %arg1[%c0_4, %c0_5, %c1, %c0_6, %c0_7] : memref<2x4x2x4x256xf32, #tpu.memory_space<vmem>>, vector<2x4x1x4x256xf32>
    %4 = vector.shape_cast %3 : vector<2x4x1x4x256xf32> to vector<2x4x4x256xf32>
    %5 = vector.shape_cast %4 : vector<2x4x4x256xf32> to vector<32x256xf32>
    %c0_8 = arith.constant 0 : index
    %c0_9 = arith.constant 0 : index
    %c0_10 = arith.constant 0 : index
    %6 = vector.load %arg2[%c0_8, %c0_9, %c0_10] : memref<3x256x128xf32, #tpu.memory_space<vmem>>, vector<1x256x128xf32>
    %7 = vector.shape_cast %6 : vector<1x256x128xf32> to vector<256x128xf32>
    %cst = arith.constant dense<0.000000e+00> : vector<32x128xf32>
    %8 = tpu.matmul %2, %7, %cst {dimension_numbers = #tpu.dot_dimension_numbers<[1], [0], [0], [1], [0, 0, 1, 1], [], []>} : vector<32x256xf32>, vector<256x128xf32>, vector<32x128xf32> -> vector<32x128xf32>
    %9 = vector.shape_cast %8 : vector<32x128xf32> to vector<2x4x4x128xf32>
    %c0_11 = arith.constant 0 : index
    %c0_12 = arith.constant 0 : index
    %c0_13 = arith.constant 0 : index
    %c0_14 = arith.constant 0 : index
    %10 = vector.load %arg6[%c0_11, %c0_12, %c0_13, %c0_14] : memref<2x4x4x128xf32, #tpu.memory_space<vmem>>, vector<2x4x4x128xf32>
    tpu.vector_store %arg6[%c0_11, %c0_12, %c0_13, %c0_14], %9 {strides = array<i32>} : memref<2x4x4x128xf32, #tpu.memory_space<vmem>>, vector<2x4x4x128xf32>,
    %c0_15 = arith.constant 0 : index
    %c0_16 = arith.constant 0 : index
    %c0_17 = arith.constant 0 : index
    %c0_18 = arith.constant 0 : index
    %11 = vector.load %arg6[%c0_15, %c0_16, %c0_17, %c0_18] : memref<2x4x4x128xf32, #tpu.memory_space<vmem>>, vector<2x4x4x128xf32>
    %c1_19 = arith.constant 1 : index
    %c0_20 = arith.constant 0 : index
    %c0_21 = arith.constant 0 : index
    %12 = vector.load %arg2[%c1_19, %c0_20, %c0_21] : memref<3x256x128xf32, #tpu.memory_space<vmem>>, vector<1x256x128xf32>
    %13 = vector.shape_cast %12 : vector<1x256x128xf32> to vector<256x128xf32>
    %cst_22 = arith.constant dense<0.000000e+00> : vector<32x128xf32>
    %14 = tpu.matmul %5, %13, %cst_22 {dimension_numbers = #tpu.dot_dimension_numbers<[1], [0], [0], [1], [0, 0, 1, 1], [], []>} : vector<32x256xf32>, vector<256x128xf32>, vector<32x128xf32> -> vector<32x128xf32>
    %15 = vector.shape_cast %14 : vector<32x128xf32> to vector<2x4x4x128xf32>
    %16 = arith.addf %11, %15 : vector<2x4x4x128xf32>
    %c0_23 = arith.constant 0 : index
    %c0_24 = arith.constant 0 : index
    %c0_25 = arith.constant 0 : index
    %c0_26 = arith.constant 0 : index
    %17 = vector.load %arg6[%c0_23, %c0_24, %c0_25, %c0_26] : memref<2x4x4x128xf32, #tpu.memory_space<vmem>>, vector<2x4x4x128xf32>
    tpu.vector_store %arg6[%c0_23, %c0_24, %c0_25, %c0_26], %16 {strides = array<i32>} : memref<2x4x4x128xf32, #tpu.memory_space<vmem>>, vector<2x4x4x128xf32>,
    %c2 = arith.constant 2 : index
    %c0_27 = arith.constant 0 : index
    %c0_28 = arith.constant 0 : index
    %18 = vector.load %arg2[%c2, %c0_27, %c0_28] : memref<3x256x128xf32, #tpu.memory_space<vmem>>, vector<1x256x128xf32>
    %19 = vector.shape_cast %18 : vector<1x256x128xf32> to vector<256x128xf32>
    %cst_29 = arith.constant dense<0.000000e+00> : vector<32x128xf32>
    %20 = tpu.matmul %5, %19, %cst_29 {dimension_numbers = #tpu.dot_dimension_numbers<[1], [0], [0], [1], [0, 0, 1, 1], [], []>} : vector<32x256xf32>, vector<256x128xf32>, vector<32x128xf32> -> vector<32x128xf32>
    %21 = vector.shape_cast %20 : vector<32x128xf32> to vector<2x4x4x128xf32>
    %c0_30 = arith.constant 0 : index
    %c0_31 = arith.constant 0 : index
    %c0_32 = arith.constant 0 : index
    %c0_33 = arith.constant 0 : index
    %22 = vector.load %arg6[%c0_30, %c0_31, %c0_32, %c0_33] : memref<2x4x4x128xf32, #tpu.memory_space<vmem>>, vector<2x4x4x128xf32>
    %cst_34 = arith.constant 0.000000e+00 : f32
    %23 = vector.broadcast %cst_34 : f32 to vector<2x1x4x128xf32>
    %24 = vector.extract_strided_slice %21 {offsets = [0, 0, 0, 0], sizes = [2, 3, 4, 128], strides = [1, 1, 1, 1]} : vector<2x4x4x128xf32> to vector<2x3x4x128xf32>
    %25 = tpu.concatenate %23, %24 in 1 : vector<2x1x4x128xf32>, vector<2x3x4x128xf32> -> vector<2x4x4x128xf32>
    %26 = arith.addf %22, %25 : vector<2x4x4x128xf32>
    %c0_35 = arith.constant 0 : index
    %c0_36 = arith.constant 0 : index
    %c0_37 = arith.constant 0 : index
    %c0_38 = arith.constant 0 : index
    %27 = vector.load %arg6[%c0_35, %c0_36, %c0_37, %c0_38] : memref<2x4x4x128xf32, #tpu.memory_space<vmem>>, vector<2x4x4x128xf32>
    tpu.vector_store %arg6[%c0_35, %c0_36, %c0_37, %c0_38], %26 {strides = array<i32>} : memref<2x4x4x128xf32, #tpu.memory_space<vmem>>, vector<2x4x4x128xf32>,
    %28 = vector.extract_strided_slice %2 {offsets = [0, 128], sizes = [32, 128], strides = [1, 1]} : vector<32x256xf32> to vector<32x128xf32>
    %29 = vector.extract_strided_slice %5 {offsets = [0, 128], sizes = [32, 128], strides = [1, 1]} : vector<32x256xf32> to vector<32x128xf32>
    %c0_39 = arith.constant 0 : index
    %c0_40 = arith.constant 0 : index
    %c0_41 = arith.constant 0 : index
    %30 = vector.load %arg3[%c0_39, %c0_40, %c0_41] : memref<3x128x128xf32, #tpu.memory_space<vmem>>, vector<1x128x128xf32>
    %31 = vector.shape_cast %30 : vector<1x128x128xf32> to vector<128x128xf32>
    %cst_42 = arith.constant dense<0.000000e+00> : vector<32x128xf32>
    %32 = tpu.matmul %28, %31, %cst_42 {dimension_numbers = #tpu.dot_dimension_numbers<[1], [0], [0], [1], [0, 0, 1, 1], [], []>} : vector<32x128xf32>, vector<128x128xf32>, vector<32x128xf32> -> vector<32x128xf32>
    %c1_43 = arith.constant 1 : index
    %c0_44 = arith.constant 0 : index
    %c0_45 = arith.constant 0 : index
    %33 = vector.load %arg3[%c1_43, %c0_44, %c0_45] : memref<3x128x128xf32, #tpu.memory_space<vmem>>, vector<1x128x128xf32>
    %34 = vector.shape_cast %33 : vector<1x128x128xf32> to vector<128x128xf32>
    %cst_46 = arith.constant dense<0.000000e+00> : vector<32x128xf32>
    %35 = tpu.matmul %29, %34, %cst_46 {dimension_numbers = #tpu.dot_dimension_numbers<[1], [0], [0], [1], [0, 0, 1, 1], [], []>} : vector<32x128xf32>, vector<128x128xf32>, vector<32x128xf32> -> vector<32x128xf32>
    %36 = arith.addf %32, %35 : vector<32x128xf32>
    %37 = vector.shape_cast %36 : vector<32x128xf32> to vector<2x4x4x128xf32>
    %c2_47 = arith.constant 2 : index
    %c0_48 = arith.constant 0 : index
    %c0_49 = arith.constant 0 : index
    %38 = vector.load %arg3[%c2_47, %c0_48, %c0_49] : memref<3x128x128xf32, #tpu.memory_space<vmem>>, vector<1x128x128xf32>
    %39 = vector.shape_cast %38 : vector<1x128x128xf32> to vector<128x128xf32>
    %cst_50 = arith.constant dense<0.000000e+00> : vector<32x128xf32>
    %40 = tpu.matmul %29, %39, %cst_50 {dimension_numbers = #tpu.dot_dimension_numbers<[1], [0], [0], [1], [0, 0, 1, 1], [], []>} : vector<32x128xf32>, vector<128x128xf32>, vector<32x128xf32> -> vector<32x128xf32>
    %41 = vector.shape_cast %40 : vector<32x128xf32> to vector<2x4x4x128xf32>
    %cst_51 = arith.constant 0.000000e+00 : f32
    %42 = vector.broadcast %cst_51 : f32 to vector<2x1x4x128xf32>
    %43 = vector.extract_strided_slice %41 {offsets = [0, 0, 0, 0], sizes = [2, 3, 4, 128], strides = [1, 1, 1, 1]} : vector<2x4x4x128xf32> to vector<2x3x4x128xf32>
    %44 = tpu.concatenate %42, %43 in 1 : vector<2x1x4x128xf32>, vector<2x3x4x128xf32> -> vector<2x4x4x128xf32>
    %45 = arith.addf %37, %44 : vector<2x4x4x128xf32>
    %c0_52 = arith.constant 0 : index
    %c0_53 = arith.constant 0 : index
    %c0_54 = arith.constant 0 : index
    %c0_55 = arith.constant 0 : index
    %46 = vector.load %arg6[%c0_52, %c0_53, %c0_54, %c0_55] : memref<2x4x4x128xf32, #tpu.memory_space<vmem>>, vector<2x4x4x128xf32>
    %cst_56 = arith.constant 0.000000e+00 : f32
    %47 = vector.broadcast %cst_56 : f32 to vector<2x4x1x128xf32>
    %48 = vector.extract_strided_slice %45 {offsets = [0, 0, 0, 0], sizes = [2, 4, 3, 128], strides = [1, 1, 1, 1]} : vector<2x4x4x128xf32> to vector<2x4x3x128xf32>
    %49 = tpu.concatenate %47, %48 in 2 : vector<2x4x1x128xf32>, vector<2x4x3x128xf32> -> vector<2x4x4x128xf32>
    %50 = arith.addf %46, %49 : vector<2x4x4x128xf32>
    %c0_57 = arith.constant 0 : index
    %c0_58 = arith.constant 0 : index
    %c0_59 = arith.constant 0 : index
    %c0_60 = arith.constant 0 : index
    %51 = vector.load %arg6[%c0_57, %c0_58, %c0_59, %c0_60] : memref<2x4x4x128xf32, #tpu.memory_space<vmem>>, vector<2x4x4x128xf32>
    tpu.vector_store %arg6[%c0_57, %c0_58, %c0_59, %c0_60], %50 {strides = array<i32>} : memref<2x4x4x128xf32, #tpu.memory_space<vmem>>, vector<2x4x4x128xf32>,
    %c0_61 = arith.constant 0 : index
    %c0_62 = arith.constant 0 : index
    %c0_63 = arith.constant 0 : index
    %c0_64 = arith.constant 0 : index
    %52 = vector.load %arg6[%c0_61, %c0_62, %c0_63, %c0_64] : memref<2x4x4x128xf32, #tpu.memory_space<vmem>>, vector<2x4x4x128xf32>
    %c0_65 = arith.constant 0 : index
    %c0_66 = arith.constant 0 : index
    %53 = vector.load %arg4[%c0_65, %c0_66] : memref<1x128xf32, #tpu.memory_space<vmem>>, vector<1x128xf32>
    %54 = vector.shape_cast %53 : vector<1x128xf32> to vector<1x1x1x128xf32>
    %55 = vector.broadcast %54 : vector<1x1x1x128xf32> to vector<2x4x4x128xf32>
    %56 = arith.addf %52, %55 : vector<2x4x4x128xf32>
    %cst_67 = arith.constant 0.000000e+00 : f32
    %57 = vector.broadcast %cst_67 : f32 to vector<2x4x4x128xf32>
    %58 = arith.cmpf oge, %56, %57 : vector<2x4x4x128xf32>
    %cst_68 = arith.constant 0.00999999977 : f32
    %59 = vector.broadcast %cst_68 : f32 to vector<2x4x4x128xf32>
    %60 = arith.mulf %59, %56 : vector<2x4x4x128xf32>
    %61 = arith.select %58, %56, %60 : vector<2x4x4x128xi1>, vector<2x4x4x128xf32>
    %c0_69 = arith.constant 0 : index
    %c0_70 = arith.constant 0 : index
    %c0_71 = arith.constant 0 : index
    %c0_72 = arith.constant 0 : index
    %62 = vector.load %arg5[%c0_69, %c0_70, %c0_71, %c0_72] : memref<2x4x4x128xf32, #tpu.memory_space<vmem>>, vector<2x4x4x128xf32>
    tpu.vector_store %arg5[%c0_69, %c0_70, %c0_71, %c0_72], %61 {strides = array<i32>} : memref<2x4x4x128xf32, #tpu.memory_space<vmem>>, vector<2x4x4x128xf32>,
    return
  }
  func.func @transform_0(%arg0: i32) -> (i32, i32, i32, i32, i32) {
    %c0_i32 = arith.constant 0 : i32
    %c0_i32_0 = arith.constant 0 : i32
    %c0_i32_1 = arith.constant 0 : i32
    %c0_i32_2 = arith.constant 0 : i32
    %c0_i32_3 = arith.constant 0 : i32
    return %arg0, %c0_i32, %c0_i32_0, %c0_i32_1, %c0_i32_2 : i32, i32, i32, i32, i32
  }
  func.func @transform_1(%arg0: i32) -> (i32, i32, i32) {
    %c0_i32 = arith.constant 0 : i32
    %c0_i32_0 = arith.constant 0 : i32
    %c0_i32_1 = arith.constant 0 : i32
    %c0_i32_2 = arith.constant 0 : i32
    return %c0_i32, %c0_i32_0, %c0_i32_1 : i32, i32, i32
  }
  func.func @transform_2(%arg0: i32) -> (i32, i32, i32) {
    %c0_i32 = arith.constant 0 : i32
    %c0_i32_0 = arith.constant 0 : i32
    %c0_i32_1 = arith.constant 0 : i32
    %c0_i32_2 = arith.constant 0 : i32
    return %c0_i32, %c0_i32_0, %c0_i32_1 : i32, i32, i32
  }
  func.func @transform_3(%arg0: i32) -> (i32, i32) {
    %c0_i32 = arith.constant 0 : i32
    %c0_i32_0 = arith.constant 0 : i32
    %c0_i32_1 = arith.constant 0 : i32
    return %c0_i32, %c0_i32_0 : i32, i32
  }
  func.func @transform_4(%arg0: i32) -> (i32, i32, i32, i32) {
    %c0_i32 = arith.constant 0 : i32
    %c0_i32_0 = arith.constant 0 : i32
    %c0_i32_1 = arith.constant 0 : i32
    %c0_i32_2 = arith.constant 0 : i32
    return %arg0, %c0_i32, %c0_i32_0, %c0_i32_1 : i32, i32, i32, i32
  }
}

module attributes {stable_mosaic.version = 11 : i64} {
  func.func @_final_conv_linear_kernel(%arg0: i32, %arg1: memref<2x1x2x1x256xf32, #tpu.memory_space<vmem>>, %arg2: memref<2x256x128xf32, #tpu.memory_space<vmem>>, %arg3: memref<1x128xf32, #tpu.memory_space<vmem>>, %arg4: memref<128x128xf32, #tpu.memory_space<vmem>>, %arg5: memref<1x128xf32, #tpu.memory_space<vmem>>, %arg6: memref<2x128xf32, #tpu.memory_space<vmem>>) attributes {dimension_semantics = [#tpu.dimension_semantics<parallel>], iteration_bounds = array<i64: 1>, scalar_prefetch = 0 : i64, scratch_operands = 0 : i64, tpu.core_type = #tpu.core_type<tc>, window_params = [{transform_indices = @transform_0, window_bounds = array<i64: 2, 1, 2, 1, 256>}, {pipeline_mode = #tpu.pipeline_mode<synchronous>, transform_indices = @transform_1, window_bounds = array<i64: 2, 256, 128>}, {pipeline_mode = #tpu.pipeline_mode<synchronous>, transform_indices = @transform_2, window_bounds = array<i64: 1, 128>}, {pipeline_mode = #tpu.pipeline_mode<synchronous>, transform_indices = @transform_3, window_bounds = array<i64: 128, 128>}, {pipeline_mode = #tpu.pipeline_mode<synchronous>, transform_indices = @transform_4, window_bounds = array<i64: 1, 128>}, {transform_indices = @transform_5, window_bounds = array<i64: 2, 128>}]} {
    %c0 = arith.constant 0 : index
    %c0_0 = arith.constant 0 : index
    %c0_1 = arith.constant 0 : index
    %c0_2 = arith.constant 0 : index
    %c0_3 = arith.constant 0 : index
    %0 = vector.load %arg1[%c0, %c0_0, %c0_1, %c0_2, %c0_3] : memref<2x1x2x1x256xf32, #tpu.memory_space<vmem>>, vector<2x1x1x1x256xf32>
    %1 = vector.shape_cast %0 : vector<2x1x1x1x256xf32> to vector<2x1x1x256xf32>
    %2 = vector.shape_cast %1 : vector<2x1x1x256xf32> to vector<2x256xf32>
    %c0_4 = arith.constant 0 : index
    %c0_5 = arith.constant 0 : index
    %c1 = arith.constant 1 : index
    %c0_6 = arith.constant 0 : index
    %c0_7 = arith.constant 0 : index
    %3 = vector.load %arg1[%c0_4, %c0_5, %c1, %c0_6, %c0_7] : memref<2x1x2x1x256xf32, #tpu.memory_space<vmem>>, vector<2x1x1x1x256xf32>
    %4 = vector.shape_cast %3 : vector<2x1x1x1x256xf32> to vector<2x1x1x256xf32>
    %5 = vector.shape_cast %4 : vector<2x1x1x256xf32> to vector<2x256xf32>
    %c0_8 = arith.constant 0 : index
    %c0_9 = arith.constant 0 : index
    %c0_10 = arith.constant 0 : index
    %6 = vector.load %arg2[%c0_8, %c0_9, %c0_10] : memref<2x256x128xf32, #tpu.memory_space<vmem>>, vector<1x256x128xf32>
    %7 = vector.shape_cast %6 : vector<1x256x128xf32> to vector<256x128xf32>
    %cst = arith.constant dense<0.000000e+00> : vector<2x128xf32>
    %8 = tpu.matmul %2, %7, %cst {dimension_numbers = #tpu.dot_dimension_numbers<[1], [0], [0], [1], [0, 0, 1, 1], [], []>} : vector<2x256xf32>, vector<256x128xf32>, vector<2x128xf32> -> vector<2x128xf32>
    %c1_11 = arith.constant 1 : index
    %c0_12 = arith.constant 0 : index
    %c0_13 = arith.constant 0 : index
    %9 = vector.load %arg2[%c1_11, %c0_12, %c0_13] : memref<2x256x128xf32, #tpu.memory_space<vmem>>, vector<1x256x128xf32>
    %10 = vector.shape_cast %9 : vector<1x256x128xf32> to vector<256x128xf32>
    %cst_14 = arith.constant dense<0.000000e+00> : vector<2x128xf32>
    %11 = tpu.matmul %5, %10, %cst_14 {dimension_numbers = #tpu.dot_dimension_numbers<[1], [0], [0], [1], [0, 0, 1, 1], [], []>} : vector<2x256xf32>, vector<256x128xf32>, vector<2x128xf32> -> vector<2x128xf32>
    %12 = arith.addf %8, %11 : vector<2x128xf32>
    %c0_15 = arith.constant 0 : index
    %c0_16 = arith.constant 0 : index
    %13 = vector.load %arg3[%c0_15, %c0_16] : memref<1x128xf32, #tpu.memory_space<vmem>>, vector<1x128xf32>
    %14 = vector.broadcast %13 : vector<1x128xf32> to vector<2x128xf32>
    %15 = arith.addf %12, %14 : vector<2x128xf32>
    %cst_17 = arith.constant 0.000000e+00 : f32
    %16 = vector.broadcast %cst_17 : f32 to vector<2x128xf32>
    %17 = arith.cmpf oge, %15, %16 : vector<2x128xf32>
    %cst_18 = arith.constant 0.00999999977 : f32
    %18 = vector.broadcast %cst_18 : f32 to vector<2x128xf32>
    %19 = arith.mulf %18, %15 : vector<2x128xf32>
    %20 = arith.select %17, %15, %19 : vector<2x128xi1>, vector<2x128xf32>
    %c0_19 = arith.constant 0 : index
    %c0_20 = arith.constant 0 : index
    %21 = vector.load %arg4[%c0_19, %c0_20] : memref<128x128xf32, #tpu.memory_space<vmem>>, vector<128x128xf32>
    %cst_21 = arith.constant dense<0.000000e+00> : vector<2x128xf32>
    %22 = tpu.matmul %20, %21, %cst_21 {dimension_numbers = #tpu.dot_dimension_numbers<[1], [0], [0], [1], [0, 0, 1, 1], [], []>} : vector<2x128xf32>, vector<128x128xf32>, vector<2x128xf32> -> vector<2x128xf32>
    %c0_22 = arith.constant 0 : index
    %c0_23 = arith.constant 0 : index
    %23 = vector.load %arg5[%c0_22, %c0_23] : memref<1x128xf32, #tpu.memory_space<vmem>>, vector<1x128xf32>
    %24 = vector.broadcast %23 : vector<1x128xf32> to vector<2x128xf32>
    %25 = arith.addf %22, %24 : vector<2x128xf32>
    %c0_24 = arith.constant 0 : index
    %c0_25 = arith.constant 0 : index
    %26 = vector.load %arg6[%c0_24, %c0_25] : memref<2x128xf32, #tpu.memory_space<vmem>>, vector<2x128xf32>
    tpu.vector_store %arg6[%c0_24, %c0_25], %25 {strides = array<i32>} : memref<2x128xf32, #tpu.memory_space<vmem>>, vector<2x128xf32>,
    return
  }
  func.func @transform_0(%arg0: i32) -> (i32, i32, i32, i32, i32) {
    %c0_i32 = arith.constant 0 : i32
    %c0_i32_0 = arith.constant 0 : i32
    %c0_i32_1 = arith.constant 0 : i32
    %c0_i32_2 = arith.constant 0 : i32
    %c0_i32_3 = arith.constant 0 : i32
    return %arg0, %c0_i32, %c0_i32_0, %c0_i32_1, %c0_i32_2 : i32, i32, i32, i32, i32
  }
  func.func @transform_1(%arg0: i32) -> (i32, i32, i32) {
    %c0_i32 = arith.constant 0 : i32
    %c0_i32_0 = arith.constant 0 : i32
    %c0_i32_1 = arith.constant 0 : i32
    %c0_i32_2 = arith.constant 0 : i32
    return %c0_i32, %c0_i32_0, %c0_i32_1 : i32, i32, i32
  }
  func.func @transform_2(%arg0: i32) -> (i32, i32) {
    %c0_i32 = arith.constant 0 : i32
    %c0_i32_0 = arith.constant 0 : i32
    %c0_i32_1 = arith.constant 0 : i32
    return %c0_i32, %c0_i32_0 : i32, i32
  }
  func.func @transform_3(%arg0: i32) -> (i32, i32) {
    %c0_i32 = arith.constant 0 : i32
    %c0_i32_0 = arith.constant 0 : i32
    %c0_i32_1 = arith.constant 0 : i32
    return %c0_i32, %c0_i32_0 : i32, i32
  }
  func.func @transform_4(%arg0: i32) -> (i32, i32) {
    %c0_i32 = arith.constant 0 : i32
    %c0_i32_0 = arith.constant 0 : i32
    %c0_i32_1 = arith.constant 0 : i32
    return %c0_i32, %c0_i32_0 : i32, i32
  }
  func.func @transform_5(%arg0: i32) -> (i32, i32) {
    %c0_i32 = arith.constant 0 : i32
    %c0_i32_0 = arith.constant 0 : i32
    return %arg0, %c0_i32 : i32, i32
  }
}

module attributes {stable_mosaic.version = 11 : i64} {
  func.func @_conv_s2_lrelu_kernel(%arg0: i32, %arg1: memref<2x2x2x2x256xf32, #tpu.memory_space<vmem>>, %arg2: memref<3x256x128xf32, #tpu.memory_space<vmem>>, %arg3: memref<3x128x128xf32, #tpu.memory_space<vmem>>, %arg4: memref<1x128xf32, #tpu.memory_space<vmem>>, %arg5: memref<2x2x2x128xf32, #tpu.memory_space<vmem>>, %arg6: memref<2x2x2x128xf32, #tpu.memory_space<vmem>>) attributes {dimension_semantics = [#tpu.dimension_semantics<parallel>], iteration_bounds = array<i64: 1>, scalar_prefetch = 0 : i64, scratch_operands = 1 : i64, tpu.core_type = #tpu.core_type<tc>, window_params = [{transform_indices = @transform_0, window_bounds = array<i64: 2, 2, 2, 2, 256>}, {pipeline_mode = #tpu.pipeline_mode<synchronous>, transform_indices = @transform_1, window_bounds = array<i64: 3, 256, 128>}, {pipeline_mode = #tpu.pipeline_mode<synchronous>, transform_indices = @transform_2, window_bounds = array<i64: 3, 128, 128>}, {pipeline_mode = #tpu.pipeline_mode<synchronous>, transform_indices = @transform_3, window_bounds = array<i64: 1, 128>}, {transform_indices = @transform_4, window_bounds = array<i64: 2, 2, 2, 128>}]} {
    %c0 = arith.constant 0 : index
    %c0_0 = arith.constant 0 : index
    %c0_1 = arith.constant 0 : index
    %c0_2 = arith.constant 0 : index
    %c0_3 = arith.constant 0 : index
    %0 = vector.load %arg1[%c0, %c0_0, %c0_1, %c0_2, %c0_3] : memref<2x2x2x2x256xf32, #tpu.memory_space<vmem>>, vector<2x2x1x2x256xf32>
    %1 = vector.shape_cast %0 : vector<2x2x1x2x256xf32> to vector<2x2x2x256xf32>
    %2 = vector.shape_cast %1 : vector<2x2x2x256xf32> to vector<8x256xf32>
    %c0_4 = arith.constant 0 : index
    %c0_5 = arith.constant 0 : index
    %c1 = arith.constant 1 : index
    %c0_6 = arith.constant 0 : index
    %c0_7 = arith.constant 0 : index
    %3 = vector.load %arg1[%c0_4, %c0_5, %c1, %c0_6, %c0_7] : memref<2x2x2x2x256xf32, #tpu.memory_space<vmem>>, vector<2x2x1x2x256xf32>
    %4 = vector.shape_cast %3 : vector<2x2x1x2x256xf32> to vector<2x2x2x256xf32>
    %5 = vector.shape_cast %4 : vector<2x2x2x256xf32> to vector<8x256xf32>
    %c0_8 = arith.constant 0 : index
    %c0_9 = arith.constant 0 : index
    %c0_10 = arith.constant 0 : index
    %6 = vector.load %arg2[%c0_8, %c0_9, %c0_10] : memref<3x256x128xf32, #tpu.memory_space<vmem>>, vector<1x256x128xf32>
    %7 = vector.shape_cast %6 : vector<1x256x128xf32> to vector<256x128xf32>
    %cst = arith.constant dense<0.000000e+00> : vector<8x128xf32>
    %8 = tpu.matmul %2, %7, %cst {dimension_numbers = #tpu.dot_dimension_numbers<[1], [0], [0], [1], [0, 0, 1, 1], [], []>} : vector<8x256xf32>, vector<256x128xf32>, vector<8x128xf32> -> vector<8x128xf32>
    %9 = vector.shape_cast %8 : vector<8x128xf32> to vector<2x2x2x128xf32>
    %c0_11 = arith.constant 0 : index
    %c0_12 = arith.constant 0 : index
    %c0_13 = arith.constant 0 : index
    %c0_14 = arith.constant 0 : index
    %10 = vector.load %arg6[%c0_11, %c0_12, %c0_13, %c0_14] : memref<2x2x2x128xf32, #tpu.memory_space<vmem>>, vector<2x2x2x128xf32>
    tpu.vector_store %arg6[%c0_11, %c0_12, %c0_13, %c0_14], %9 {strides = array<i32>} : memref<2x2x2x128xf32, #tpu.memory_space<vmem>>, vector<2x2x2x128xf32>,
    %c0_15 = arith.constant 0 : index
    %c0_16 = arith.constant 0 : index
    %c0_17 = arith.constant 0 : index
    %c0_18 = arith.constant 0 : index
    %11 = vector.load %arg6[%c0_15, %c0_16, %c0_17, %c0_18] : memref<2x2x2x128xf32, #tpu.memory_space<vmem>>, vector<2x2x2x128xf32>
    %c1_19 = arith.constant 1 : index
    %c0_20 = arith.constant 0 : index
    %c0_21 = arith.constant 0 : index
    %12 = vector.load %arg2[%c1_19, %c0_20, %c0_21] : memref<3x256x128xf32, #tpu.memory_space<vmem>>, vector<1x256x128xf32>
    %13 = vector.shape_cast %12 : vector<1x256x128xf32> to vector<256x128xf32>
    %cst_22 = arith.constant dense<0.000000e+00> : vector<8x128xf32>
    %14 = tpu.matmul %5, %13, %cst_22 {dimension_numbers = #tpu.dot_dimension_numbers<[1], [0], [0], [1], [0, 0, 1, 1], [], []>} : vector<8x256xf32>, vector<256x128xf32>, vector<8x128xf32> -> vector<8x128xf32>
    %15 = vector.shape_cast %14 : vector<8x128xf32> to vector<2x2x2x128xf32>
    %16 = arith.addf %11, %15 : vector<2x2x2x128xf32>
    %c0_23 = arith.constant 0 : index
    %c0_24 = arith.constant 0 : index
    %c0_25 = arith.constant 0 : index
    %c0_26 = arith.constant 0 : index
    %17 = vector.load %arg6[%c0_23, %c0_24, %c0_25, %c0_26] : memref<2x2x2x128xf32, #tpu.memory_space<vmem>>, vector<2x2x2x128xf32>
    tpu.vector_store %arg6[%c0_23, %c0_24, %c0_25, %c0_26], %16 {strides = array<i32>} : memref<2x2x2x128xf32, #tpu.memory_space<vmem>>, vector<2x2x2x128xf32>,
    %c2 = arith.constant 2 : index
    %c0_27 = arith.constant 0 : index
    %c0_28 = arith.constant 0 : index
    %18 = vector.load %arg2[%c2, %c0_27, %c0_28] : memref<3x256x128xf32, #tpu.memory_space<vmem>>, vector<1x256x128xf32>
    %19 = vector.shape_cast %18 : vector<1x256x128xf32> to vector<256x128xf32>
    %cst_29 = arith.constant dense<0.000000e+00> : vector<8x128xf32>
    %20 = tpu.matmul %5, %19, %cst_29 {dimension_numbers = #tpu.dot_dimension_numbers<[1], [0], [0], [1], [0, 0, 1, 1], [], []>} : vector<8x256xf32>, vector<256x128xf32>, vector<8x128xf32> -> vector<8x128xf32>
    %21 = vector.shape_cast %20 : vector<8x128xf32> to vector<2x2x2x128xf32>
    %c0_30 = arith.constant 0 : index
    %c0_31 = arith.constant 0 : index
    %c0_32 = arith.constant 0 : index
    %c0_33 = arith.constant 0 : index
    %22 = vector.load %arg6[%c0_30, %c0_31, %c0_32, %c0_33] : memref<2x2x2x128xf32, #tpu.memory_space<vmem>>, vector<2x2x2x128xf32>
    %cst_34 = arith.constant 0.000000e+00 : f32
    %23 = vector.broadcast %cst_34 : f32 to vector<2x1x2x128xf32>
    %24 = vector.extract_strided_slice %21 {offsets = [0, 0, 0, 0], sizes = [2, 1, 2, 128], strides = [1, 1, 1, 1]} : vector<2x2x2x128xf32> to vector<2x1x2x128xf32>
    %25 = tpu.concatenate %23, %24 in 1 : vector<2x1x2x128xf32>, vector<2x1x2x128xf32> -> vector<2x2x2x128xf32>
    %26 = arith.addf %22, %25 : vector<2x2x2x128xf32>
    %c0_35 = arith.constant 0 : index
    %c0_36 = arith.constant 0 : index
    %c0_37 = arith.constant 0 : index
    %c0_38 = arith.constant 0 : index
    %27 = vector.load %arg6[%c0_35, %c0_36, %c0_37, %c0_38] : memref<2x2x2x128xf32, #tpu.memory_space<vmem>>, vector<2x2x2x128xf32>
    tpu.vector_store %arg6[%c0_35, %c0_36, %c0_37, %c0_38], %26 {strides = array<i32>} : memref<2x2x2x128xf32, #tpu.memory_space<vmem>>, vector<2x2x2x128xf32>,
    %28 = vector.extract_strided_slice %2 {offsets = [0, 128], sizes = [8, 128], strides = [1, 1]} : vector<8x256xf32> to vector<8x128xf32>
    %29 = vector.extract_strided_slice %5 {offsets = [0, 128], sizes = [8, 128], strides = [1, 1]} : vector<8x256xf32> to vector<8x128xf32>
    %c0_39 = arith.constant 0 : index
    %c0_40 = arith.constant 0 : index
    %c0_41 = arith.constant 0 : index
    %30 = vector.load %arg3[%c0_39, %c0_40, %c0_41] : memref<3x128x128xf32, #tpu.memory_space<vmem>>, vector<1x128x128xf32>
    %31 = vector.shape_cast %30 : vector<1x128x128xf32> to vector<128x128xf32>
    %cst_42 = arith.constant dense<0.000000e+00> : vector<8x128xf32>
    %32 = tpu.matmul %28, %31, %cst_42 {dimension_numbers = #tpu.dot_dimension_numbers<[1], [0], [0], [1], [0, 0, 1, 1], [], []>} : vector<8x128xf32>, vector<128x128xf32>, vector<8x128xf32> -> vector<8x128xf32>
    %c1_43 = arith.constant 1 : index
    %c0_44 = arith.constant 0 : index
    %c0_45 = arith.constant 0 : index
    %33 = vector.load %arg3[%c1_43, %c0_44, %c0_45] : memref<3x128x128xf32, #tpu.memory_space<vmem>>, vector<1x128x128xf32>
    %34 = vector.shape_cast %33 : vector<1x128x128xf32> to vector<128x128xf32>
    %cst_46 = arith.constant dense<0.000000e+00> : vector<8x128xf32>
    %35 = tpu.matmul %29, %34, %cst_46 {dimension_numbers = #tpu.dot_dimension_numbers<[1], [0], [0], [1], [0, 0, 1, 1], [], []>} : vector<8x128xf32>, vector<128x128xf32>, vector<8x128xf32> -> vector<8x128xf32>
    %36 = arith.addf %32, %35 : vector<8x128xf32>
    %37 = vector.shape_cast %36 : vector<8x128xf32> to vector<2x2x2x128xf32>
    %c2_47 = arith.constant 2 : index
    %c0_48 = arith.constant 0 : index
    %c0_49 = arith.constant 0 : index
    %38 = vector.load %arg3[%c2_47, %c0_48, %c0_49] : memref<3x128x128xf32, #tpu.memory_space<vmem>>, vector<1x128x128xf32>
    %39 = vector.shape_cast %38 : vector<1x128x128xf32> to vector<128x128xf32>
    %cst_50 = arith.constant dense<0.000000e+00> : vector<8x128xf32>
    %40 = tpu.matmul %29, %39, %cst_50 {dimension_numbers = #tpu.dot_dimension_numbers<[1], [0], [0], [1], [0, 0, 1, 1], [], []>} : vector<8x128xf32>, vector<128x128xf32>, vector<8x128xf32> -> vector<8x128xf32>
    %41 = vector.shape_cast %40 : vector<8x128xf32> to vector<2x2x2x128xf32>
    %cst_51 = arith.constant 0.000000e+00 : f32
    %42 = vector.broadcast %cst_51 : f32 to vector<2x1x2x128xf32>
    %43 = vector.extract_strided_slice %41 {offsets = [0, 0, 0, 0], sizes = [2, 1, 2, 128], strides = [1, 1, 1, 1]} : vector<2x2x2x128xf32> to vector<2x1x2x128xf32>
    %44 = tpu.concatenate %42, %43 in 1 : vector<2x1x2x128xf32>, vector<2x1x2x128xf32> -> vector<2x2x2x128xf32>
    %45 = arith.addf %37, %44 : vector<2x2x2x128xf32>
    %c0_52 = arith.constant 0 : index
    %c0_53 = arith.constant 0 : index
    %c0_54 = arith.constant 0 : index
    %c0_55 = arith.constant 0 : index
    %46 = vector.load %arg6[%c0_52, %c0_53, %c0_54, %c0_55] : memref<2x2x2x128xf32, #tpu.memory_space<vmem>>, vector<2x2x2x128xf32>
    %cst_56 = arith.constant 0.000000e+00 : f32
    %47 = vector.broadcast %cst_56 : f32 to vector<2x2x1x128xf32>
    %48 = vector.extract_strided_slice %45 {offsets = [0, 0, 0, 0], sizes = [2, 2, 1, 128], strides = [1, 1, 1, 1]} : vector<2x2x2x128xf32> to vector<2x2x1x128xf32>
    %49 = tpu.concatenate %47, %48 in 2 : vector<2x2x1x128xf32>, vector<2x2x1x128xf32> -> vector<2x2x2x128xf32>
    %50 = arith.addf %46, %49 : vector<2x2x2x128xf32>
    %c0_57 = arith.constant 0 : index
    %c0_58 = arith.constant 0 : index
    %c0_59 = arith.constant 0 : index
    %c0_60 = arith.constant 0 : index
    %51 = vector.load %arg6[%c0_57, %c0_58, %c0_59, %c0_60] : memref<2x2x2x128xf32, #tpu.memory_space<vmem>>, vector<2x2x2x128xf32>
    tpu.vector_store %arg6[%c0_57, %c0_58, %c0_59, %c0_60], %50 {strides = array<i32>} : memref<2x2x2x128xf32, #tpu.memory_space<vmem>>, vector<2x2x2x128xf32>,
    %c0_61 = arith.constant 0 : index
    %c0_62 = arith.constant 0 : index
    %c0_63 = arith.constant 0 : index
    %c0_64 = arith.constant 0 : index
    %52 = vector.load %arg6[%c0_61, %c0_62, %c0_63, %c0_64] : memref<2x2x2x128xf32, #tpu.memory_space<vmem>>, vector<2x2x2x128xf32>
    %c0_65 = arith.constant 0 : index
    %c0_66 = arith.constant 0 : index
    %53 = vector.load %arg4[%c0_65, %c0_66] : memref<1x128xf32, #tpu.memory_space<vmem>>, vector<1x128xf32>
    %54 = vector.shape_cast %53 : vector<1x128xf32> to vector<1x1x1x128xf32>
    %55 = vector.broadcast %54 : vector<1x1x1x128xf32> to vector<2x2x2x128xf32>
    %56 = arith.addf %52, %55 : vector<2x2x2x128xf32>
    %cst_67 = arith.constant 0.000000e+00 : f32
    %57 = vector.broadcast %cst_67 : f32 to vector<2x2x2x128xf32>
    %58 = arith.cmpf oge, %56, %57 : vector<2x2x2x128xf32>
    %cst_68 = arith.constant 0.00999999977 : f32
    %59 = vector.broadcast %cst_68 : f32 to vector<2x2x2x128xf32>
    %60 = arith.mulf %59, %56 : vector<2x2x2x128xf32>
    %61 = arith.select %58, %56, %60 : vector<2x2x2x128xi1>, vector<2x2x2x128xf32>
    %c0_69 = arith.constant 0 : index
    %c0_70 = arith.constant 0 : index
    %c0_71 = arith.constant 0 : index
    %c0_72 = arith.constant 0 : index
    %62 = vector.load %arg5[%c0_69, %c0_70, %c0_71, %c0_72] : memref<2x2x2x128xf32, #tpu.memory_space<vmem>>, vector<2x2x2x128xf32>
    tpu.vector_store %arg5[%c0_69, %c0_70, %c0_71, %c0_72], %61 {strides = array<i32>} : memref<2x2x2x128xf32, #tpu.memory_space<vmem>>, vector<2x2x2x128xf32>,
    return
  }
  func.func @transform_0(%arg0: i32) -> (i32, i32, i32, i32, i32) {
    %c0_i32 = arith.constant 0 : i32
    %c0_i32_0 = arith.constant 0 : i32
    %c0_i32_1 = arith.constant 0 : i32
    %c0_i32_2 = arith.constant 0 : i32
    %c0_i32_3 = arith.constant 0 : i32
    return %arg0, %c0_i32, %c0_i32_0, %c0_i32_1, %c0_i32_2 : i32, i32, i32, i32, i32
  }
  func.func @transform_1(%arg0: i32) -> (i32, i32, i32) {
    %c0_i32 = arith.constant 0 : i32
    %c0_i32_0 = arith.constant 0 : i32
    %c0_i32_1 = arith.constant 0 : i32
    %c0_i32_2 = arith.constant 0 : i32
    return %c0_i32, %c0_i32_0, %c0_i32_1 : i32, i32, i32
  }
  func.func @transform_2(%arg0: i32) -> (i32, i32, i32) {
    %c0_i32 = arith.constant 0 : i32
    %c0_i32_0 = arith.constant 0 : i32
    %c0_i32_1 = arith.constant 0 : i32
    %c0_i32_2 = arith.constant 0 : i32
    return %c0_i32, %c0_i32_0, %c0_i32_1 : i32, i32, i32
  }
  func.func @transform_3(%arg0: i32) -> (i32, i32) {
    %c0_i32 = arith.constant 0 : i32
    %c0_i32_0 = arith.constant 0 : i32
    %c0_i32_1 = arith.constant 0 : i32
    return %c0_i32, %c0_i32_0 : i32, i32
  }
  func.func @transform_4(%arg0: i32) -> (i32, i32, i32, i32) {
    %c0_i32 = arith.constant 0 : i32
    %c0_i32_0 = arith.constant 0 : i32
    %c0_i32_1 = arith.constant 0 : i32
    %c0_i32_2 = arith.constant 0 : i32
    return %arg0, %c0_i32, %c0_i32_0, %c0_i32_1 : i32, i32, i32, i32
  }
}

</mosaic_0001>

<llo_original>
// kernel: gradual_style_block_forward.4
$region0: #{gradual_style_block_forward.4}
  #allocation0 [shape = 'u32[]', space=smem, size = 0x4, offset = 0x4, fixed_abs, tag = 'smem constant byte address 0x4 - core index']
  #allocation1 [shape = 'u32[144,128]{1,0:T(1,128)}', space=vmem, size = 0x12000, scoped, tag = 'internal scratch']
  #allocation2 [shape = 'f32[1,8,8,128]{3,2,1,0:T(8,128)}', space=vmem, size = 0x8000, scoped, tag = 'scratch operand']
  %s0 = inlined_call_operand.vmem [shape: f32[2,8,2,8,8], index: 0, kind: input, shape index: {}]
  %s1 = inlined_call_operand.vmem [shape: f32[3,8,128], index: 1, kind: input, shape index: {}]
  %s2 = inlined_call_operand.vmem [shape: f32[3,4,128], index: 2, kind: input, shape index: {}]
  %s3 = inlined_call_operand.vmem [shape: f32[1,128], index: 3, kind: input, shape index: {}]
  %s4 = inlined_call_operand.vmem [shape: f32[2,8,8,128], index: 4, kind: output, shape index: {}]
  %s5 = sld [smem:[#allocation0]]
  $region49: #{gradual_style_block_forward.4} parent=0
    _
  %s7 = ssub.s32 1, %s5
  %s8 = scalar_select 0, %s7, %s5
  loop: start=0, step=1, limit=4
  $region2: #{gradual_style_block_forward.4} parent=0 // loop_pre_header
    _
  $region3: #{gradual_style_block_forward.4} parent=0 // loop_header
    %s10 = sphi 0, %s14
    %p11 = scmp.ge.s32.totalorder %s10, 4
    %s20 = sphi 0, %s22
    %s23 = sphi 0, %s20
    %s24 = sphi 0, %s23
    %s40 = sphi 0, %s24
    %s44 = sphi 0, %s44
    %s46 = sphi 0, %s44
    %s47 = sphi 0, %s46
    %s61 = sphi 0, %s47
    %s65 = sphi 0, %s65
    %s67 = sphi 0, %s65
    %s68 = sphi 0, %s67
    %s82 = sphi 0, %s68
    %s86 = sphi 0, %s86
    %s88 = sphi 0, %s86
    %s89 = sphi 0, %s88
    %s103 = sphi 0, %s89
    %s109 = sphi 0, %s111
    %s112 = sphi 0, %s109
    %s113 = sphi 0, %s112
    %s129 = sphi 0, %s113
  $region4: #{gradual_style_block_forward.4} parent=0 // loop_header_branch
    %13 = sbr.rel (%p11) target = $region8
  $region5: #{gradual_style_block_forward.4} parent=0 // loop_body
    %s15 = ssub.s32 %s10, 1
    %s16 = ssub.s32 %s10, 2
    %s17 = sadd.s32 %s10, 1
    %s18 = ssub.s32 %s10, %s17
    %p19 = scmp.eq.s32.totalorder %s18, 0
    %s21 = sadd.s32 %s20, 1
    %s22 = scalar_select %p19, %s20, %s21
    %p25 = pneg %p19
    %p26 = scmp.eq.s32.totalorder %s10, 1
    %p27 = por %p25, %p26
    %p28 = scmp.ne.s32.totalorder %s20, %s23
    %p29 = scmp.eq.s32.totalorder %s10, 0
    %p30 = por %p28, %p29
    %p31 = scmp.ne.s32.totalorder %s20, %s23
    %p32 = scmp.eq.s32.totalorder %s15, 1
    %p33 = por %p31, %p32
    %p34 = scmp.ne.s32.totalorder %s23, %s24
    %p35 = scmp.eq.s32.totalorder %s15, 0
    %p36 = por %p34, %p35
    %p37 = scmp.ne.s32.totalorder %s23, %s24
    %p38 = scmp.eq.s32.totalorder %s16, 1
    %p39 = por %p37, %p38
    %p41 = scmp.ne.s32.totalorder %s24, %s40
    %p42 = scmp.eq.s32.totalorder %s16, 0
    %p43 = por %p41, %p42
    %s45 = sadd.s32 %s44, 1
    %p48 = scmp.eq.s32.totalorder %s10, 1
    %p49 = scmp.ne.s32.totalorder %s44, %s46
    %p50 = scmp.eq.s32.totalorder %s10, 0
    %p51 = por %p49, %p50
    %p52 = scmp.ne.s32.totalorder %s44, %s46
    %p53 = scmp.eq.s32.totalorder %s15, 1
    %p54 = por %p52, %p53
    %p55 = scmp.ne.s32.totalorder %s46, %s47
    %p56 = scmp.eq.s32.totalorder %s15, 0
    %p57 = por %p55, %p56
    %p58 = scmp.ne.s32.totalorder %s46, %s47
    %p59 = scmp.eq.s32.totalorder %s16, 1
    %p60 = por %p58, %p59
    %p62 = scmp.ne.s32.totalorder %s47, %s61
    %p63 = scmp.eq.s32.totalorder %s16, 0
    %p64 = por %p62, %p63
    %s66 = sadd.s32 %s65, 1
    %p69 = scmp.eq.s32.totalorder %s10, 1
    %p70 = scmp.ne.s32.totalorder %s65, %s67
    %p71 = scmp.eq.s32.totalorder %s10, 0
    %p72 = por %p70, %p71
    %p73 = scmp.ne.s32.totalorder %s65, %s67
    %p74 = scmp.eq.s32.totalorder %s15, 1
    %p75 = por %p73, %p74
    %p76 = scmp.ne.s32.totalorder %s67, %s68
    %p77 = scmp.eq.s32.totalorder %s15, 0
    %p78 = por %p76, %p77
    %p79 = scmp.ne.s32.totalorder %s67, %s68
    %p80 = scmp.eq.s32.totalorder %s16, 1
    %p81 = por %p79, %p80
    %p83 = scmp.ne.s32.totalorder %s68, %s82
    %p84 = scmp.eq.s32.totalorder %s16, 0
    %p85 = por %p83, %p84
    %s87 = sadd.s32 %s86, 1
    %p90 = scmp.eq.s32.totalorder %s10, 1
    %p91 = scmp.ne.s32.totalorder %s86, %s88
    %p92 = scmp.eq.s32.totalorder %s10, 0
    %p93 = por %p91, %p92
    %p94 = scmp.ne.s32.totalorder %s86, %s88
    %p95 = scmp.eq.s32.totalorder %s15, 1
    %p96 = por %p94, %p95
    %p97 = scmp.ne.s32.totalorder %s88, %s89
    %p98 = scmp.eq.s32.totalorder %s15, 0
    %p99 = por %p97, %p98
    %p100 = scmp.ne.s32.totalorder %s88, %s89
    %p101 = scmp.eq.s32.totalorder %s16, 1
    %p102 = por %p100, %p101
    %p104 = scmp.ne.s32.totalorder %s89, %s103
    %p105 = scmp.eq.s32.totalorder %s16, 0
    %p106 = por %p104, %p105
    %s107 = ssub.s32 %s10, %s17
    %p108 = scmp.eq.s32.totalorder %s107, 0
    %s110 = sadd.s32 %s109, 1
    %s111 = scalar_select %p108, %s109, %s110
    %p114 = pneg %p108
    %p115 = scmp.eq.s32.totalorder %s10, 1
    %p116 = por %p114, %p115
    %p117 = scmp.ne.s32.totalorder %s109, %s112
    %p118 = scmp.eq.s32.totalorder %s10, 0
    %p119 = por %p117, %p118
    %p120 = scmp.ne.s32.totalorder %s109, %s112
    %p121 = scmp.eq.s32.totalorder %s15, 1
    %p122 = por %p120, %p121
    %p123 = scmp.ne.s32.totalorder %s112, %s113
    %p124 = scmp.eq.s32.totalorder %s15, 0
    %p125 = por %p123, %p124
    %p126 = scmp.ne.s32.totalorder %s112, %s113
    %p127 = scmp.eq.s32.totalorder %s16, 1
    %p128 = por %p126, %p127
    %p130 = scmp.ne.s32.totalorder %s113, %s129
    %p131 = scmp.eq.s32.totalorder %s16, 0
    %p132 = por %p130, %p131
    %p133 = scmp.le.s32.totalorder 1, %s10
    %p134 = scmp.lt.s32.totalorder %s10, 3
    %p135 = pnand %p133, %p134
    %p136 = pneg %p135
    // Predicated region
    $region9: #{gradual_style_block_forward.4} parent=5 // pred_check
      _
    $region10: #{gradual_style_block_forward.4} parent=5 // pred_check_branch
      %138 = sbr.rel (%p135) target = $region12
    $region11: #{gradual_style_block_forward.4} parent=5 // pred_region
      %s139 = ssub.s32 %s10, 1
      // Predicated region
      $region13: #{gradual_style_block_forward.4} parent=11 // pred_check
        %p140 = pneg %p57
      $region14: #{gradual_style_block_forward.4} parent=11 // pred_check_branch
        %142 = sbr.rel (%p140) target = $region16
      $region15: #{gradual_style_block_forward.4} parent=11 // pred_region
        _
      $region16: #{gradual_style_block_forward.4} parent=11 // pred_fallthru
        _
      // Predicated region
      $region17: #{gradual_style_block_forward.4} parent=11 // pred_check
        %p143 = pneg %p78
      $region18: #{gradual_style_block_forward.4} parent=11 // pred_check_branch
        %145 = sbr.rel (%p143) target = $region20
      $region19: #{gradual_style_block_forward.4} parent=11 // pred_region
        _
      $region20: #{gradual_style_block_forward.4} parent=11 // pred_fallthru
        _
      // Predicated region
      $region21: #{gradual_style_block_forward.4} parent=11 // pred_check
        %p146 = pneg %p99
      $region22: #{gradual_style_block_forward.4} parent=11 // pred_check_branch
        %148 = sbr.rel (%p146) target = $region24
      $region23: #{gradual_style_block_forward.4} parent=11 // pred_region
        _
      $region24: #{gradual_style_block_forward.4} parent=11 // pred_fallthru
        _
    $region12: #{gradual_style_block_forward.4} parent=5 // pred_fallthru
      _
    %p149 = scmp.lt.s32.totalorder %s10, 2
    // Predicated region
    $region25: #{gradual_style_block_forward.4} parent=5 // pred_check
      %p150 = pneg %p149
    $region26: #{gradual_style_block_forward.4} parent=5 // pred_check_branch
      %152 = sbr.rel (%p150) target = $region28
    $region27: #{gradual_style_block_forward.4} parent=5 // pred_region
      // Predicated region
      $region29: #{gradual_style_block_forward.4} parent=27 // pred_check
        %p153 = pneg %p30
      $region30: #{gradual_style_block_forward.4} parent=27 // pred_check_branch
        %155 = sbr.rel (%p153) target = $region32
      $region31: #{gradual_style_block_forward.4} parent=27 // pred_region
        %p156 = scmp.lt.s32.totalorder %s10, 1
        %s157 = scalar_select %p156, %s10, 1
        %s158 = smul.addr %s157, 16
        %s159 = smul.addr %s158, 8
        %s160 = scalar_lea.vmem %s0, %s159
      $region32: #{gradual_style_block_forward.4} parent=27 // pred_fallthru
        _
    $region28: #{gradual_style_block_forward.4} parent=5 // pred_fallthru
      _
    %p161 = scmp.le.s32.totalorder 1, %s10
    %p162 = scmp.lt.s32.totalorder %s10, 3
    %p163 = pnand %p161, %p162
    %p164 = pneg %p163
    // Predicated region
    $region33: #{gradual_style_block_forward.4} parent=5 // pred_check
      _
    $region34: #{gradual_style_block_forward.4} parent=5 // pred_check_branch
      %166 = sbr.rel (%p163) target = $region36
    $region35: #{gradual_style_block_forward.4} parent=5 // pred_region
      %s167 = ssub.s32 %s10, 1
      %p168 = scmp.lt.s32.totalorder %s15, 1
      %s169 = scalar_select %p168, %s15, 1
      %s170 = smul.addr %s169, 16
      %s171 = smul.addr %s170, 8
      %s172 = scalar_lea.vmem %s0, %s171
      %p173 = pneg %p36
      %p174 = pneg %p33
      %p175 = pneg %p57
      %p176 = pneg %p54
      %p177 = pneg %p78
      %p178 = pneg %p75
      %p179 = pneg %p99
      %p180 = pneg %p96
      %p181 = pneg %p125
      %p182 = pneg %p122
      %p183 = scmp.lt.s32.totalorder %s15, 1
      %s184 = scalar_select %p183, %s15, 1
      %s185 = smul.addr %s184, 8
      %s186 = smul.addr %s185, 8
      %s187 = scalar_lea.vmem %s4, %s186
      %p188 = scmp.lt.s32.totalorder %s15, 1
      %s189 = scalar_select %p188, %s15, 1
      %s190 = smul.addr %s189, 16
      %s191 = smul.addr %s190, 8
      %s192 = scalar_lea.vmem %s0, %s191
      %p193 = scmp.lt.s32.totalorder %s15, 1
      %s194 = scalar_select %p193, %s15, 1
      %s195 = smul.addr %s194, 8
      %s196 = smul.addr %s195, 8
      %s197 = scalar_lea.vmem %s4, %s196
      %v198 = vld [vmem:[%s192] sm:$0xff]
      %v199 = vld [vmem:[%s192 + $0x10] sm:$0xff]
      %v200 = vld [vmem:[%s192 + $0x20] sm:$0xff]
      %v201 = vld [vmem:[%s192 + $0x30] sm:$0xff]
      %v202 = vld [vmem:[%s192 + $0x40] sm:$0xff]
      %v203 = vld [vmem:[%s192 + $0x50] sm:$0xff]
      %v204 = vld [vmem:[%s192 + $0x60] sm:$0xff]
      %v205 = vld [vmem:[%s192 + $0x70] sm:$0xff]
      %s206 = scalar_lea.vmem %s192, 8
      %v207 = vld [vmem:[%s206] sm:$0xff]
      %v208 = vld [vmem:[%s206 + $0x10] sm:$0xff]
      %v209 = vld [vmem:[%s206 + $0x20] sm:$0xff]
      %v210 = vld [vmem:[%s206 + $0x30] sm:$0xff]
      %v211 = vld [vmem:[%s206 + $0x40] sm:$0xff]
      %v212 = vld [vmem:[%s206 + $0x50] sm:$0xff]
      %v213 = vld [vmem:[%s206 + $0x60] sm:$0xff]
      %v214 = vld [vmem:[%s206 + $0x70] sm:$0xff]
      %v215 = vld [vmem:[%s1] sm:$0xff]
      %vm216 = vcmask 64512
      %v218 = vsel %vm216, %v198, 0
      %v221 = vsel %vm216, %v199, 0
      %v224 = vsel %vm216, %v200, 0
      %v227 = vsel %vm216, %v201, 0
      %v230 = vsel %vm216, %v202, 0
      %v233 = vsel %vm216, %v203, 0
      %v236 = vsel %vm216, %v204, 0
      %v239 = vsel %vm216, %v205, 0
      %241 = vmatprep.subr.mxu0 0.0
      %242 = vmatpush1.msra.mxu0 %v215
      %243 = vmatprep.subr.mxu0 0.0
      %244 = vmatpush1.msra.mxu0 0.0
      %245 = vmatprep.subr.mxu0 0.0
      %246 = vmatpush1.msra.mxu0 0.0
      %247 = vmatprep.subr.mxu0 0.0
      %248 = vmatpush1.msra.mxu0 0.0
      %249 = vmatprep.subr.mxu0 0.0
      %250 = vmatpush1.msra.mxu0 0.0
      %251 = vmatprep.subr.mxu0 0.0
      %252 = vmatpush1.msra.mxu0 0.0
      %253 = vmatprep.subr.mxu0 0.0
      %254 = vmatpush1.msra.mxu0 0.0
      %255 = vmatprep.subr.mxu0 0.0
      %256 = vmatpush1.msra.mxu0 0.0
      %257 = vmatprep.subr.mxu0 0.0
      %258 = vmatpush1.msra.mxu0 0.0
      %259 = vmatprep.subr.mxu0 0.0
      %260 = vmatpush1.msra.mxu0 0.0
      %261 = vmatprep.subr.mxu0 0.0
      %262 = vmatpush1.msra.mxu0 0.0
      %263 = vmatprep.subr.mxu0 0.0
      %264 = vmatpush1.msra.mxu0 0.0
      %265 = vmatprep.subr.mxu0 0.0
      %266 = vmatpush1.msra.mxu0 0.0
      %267 = vmatprep.subr.mxu0 0.0
      %268 = vmatpush1.msra.mxu0 0.0
      %269 = vmatprep.subr.mxu0 0.0
      %270 = vmatpush1.msra.mxu0 0.0
      %271 = vmatprep.subr.mxu0 0.0
      %272 = vmatpush1.msra.mxu0 0.0
      %273 = vmatprep.subr.mxu0 0.0
      %274 = vmatpush1.msra.mxu0 0.0
      %275 = vmatprep.subr.mxu0 0.0
      %276 = vmatpush1.msra.mxu0 0.0
      %277 = vmatprep.subr.mxu0 0.0
      %278 = vmatpush1.msra.mxu0 0.0
      %279 = vmatprep.subr.mxu0 0.0
      %280 = vmatpush1.msra.mxu0 0.0
      %281 = vmatprep.subr.mxu0 0.0
      %282 = vmatpush1.msra.mxu0 0.0
      %283 = vmatprep.subr.mxu0 0.0
      %284 = vmatpush1.msra.mxu0 0.0
      %285 = vmatprep.subr.mxu0 0.0
      %286 = vmatpush1.msra.mxu0 0.0
      %287 = vmatprep.subr.mxu0 0.0
      %288 = vmatpush1.msra.mxu0 0.0
      %289 = vmatprep.subr.mxu0 0.0
      %290 = vmatpush1.msra.mxu0 0.0
      %291 = vmatprep.subr.mxu0 0.0
      %292 = vmatpush1.msra.mxu0 0.0
      %293 = vmatprep.subr.mxu0 0.0
      %294 = vmatpush1.msra.mxu0 0.0
      %295 = vmatprep.subr.mxu0 0.0
      %296 = vmatpush1.msra.mxu0 0.0
      %297 = vmatprep.subr.mxu0 0.0
      %298 = vmatpush1.msra.mxu0 0.0
      %299 = vmatprep.subr.mxu0 0.0
      %300 = vmatpush1.msra.mxu0 0.0
      %301 = vmatprep.subr.mxu0 0.0
      %302 = vmatpush1.msra.mxu0 0.0
      %303 = vmatprep.subr.mxu0 0.0
      %304 = vmatpush1.msra.mxu0 0.0
      %305 = vmatprep.mubr.f32.mxu0 0.0
      %306 = vmatmul.mubr.f32.gmra.mrb[0].mxu0 %v218
      %v307 = vpop.f32.mrb[0].mxu0
      %v308 = vadd.f32 0.0, %v307
      %v309 = vpop.f32.mrb[0].mxu0
      %310 = vmatprep.mubr.f32.mxu0 0.0
      %311 = vmatmul.mubr.f32.gmra.mrb[0].mxu0 %v221
      %v312 = vpop.f32.mrb[0].mxu0
      %v313 = vadd.f32 0.0, %v312
      %v314 = vpop.f32.mrb[0].mxu0
      %315 = vmatprep.mubr.f32.mxu0 0.0
      %316 = vmatmul.mubr.f32.gmra.mrb[0].mxu0 %v224
      %v317 = vpop.f32.mrb[0].mxu0
      %v318 = vadd.f32 0.0, %v317
      %v319 = vpop.f32.mrb[0].mxu0
      %320 = vmatprep.mubr.f32.mxu0 0.0
      %321 = vmatmul.mubr.f32.gmra.mrb[0].mxu0 %v227
      %v322 = vpop.f32.mrb[0].mxu0
      %v323 = vadd.f32 0.0, %v322
      %v324 = vpop.f32.mrb[0].mxu0
      %325 = vmatprep.mubr.f32.mxu0 0.0
      %326 = vmatmul.mubr.f32.gmra.mrb[0].mxu0 %v230
      %v327 = vpop.f32.mrb[0].mxu0
      %v328 = vadd.f32 0.0, %v327
      %v329 = vpop.f32.mrb[0].mxu0
      %330 = vmatprep.mubr.f32.mxu0 0.0
      %331 = vmatmul.mubr.f32.gmra.mrb[0].mxu0 %v233
      %v332 = vpop.f32.mrb[0].mxu0
      %v333 = vadd.f32 0.0, %v332
      %v334 = vpop.f32.mrb[0].mxu0
      %335 = vmatprep.mubr.f32.mxu0 0.0
      %336 = vmatmul.mubr.f32.gmra.mrb[0].mxu0 %v236
      %v337 = vpop.f32.mrb[0].mxu0
      %v338 = vadd.f32 0.0, %v337
      %v339 = vpop.f32.mrb[0].mxu0
      %340 = vmatprep.mubr.f32.mxu0 0.0
      %341 = vmatmul.mubr.f32.gmra.mrb[0].mxu0 %v239
      %v342 = vpop.f32.mrb[0].mxu0
      %v343 = vadd.f32 0.0, %v342
      %v344 = vpop.f32.mrb[0].mxu0
      %345 = vdwg.mxu0
      %346 = vst [vmem:[#allocation2] sm:$0xff] %v308
      %347 = vst [vmem:[#allocation2 + $0x8] sm:$0xff] %v313
      %348 = vst [vmem:[#allocation2 + $0x10] sm:$0xff] %v318
      %349 = vst [vmem:[#allocation2 + $0x18] sm:$0xff] %v323
      %350 = vst [vmem:[#allocation2 + $0x20] sm:$0xff] %v328
      %351 = vst [vmem:[#allocation2 + $0x28] sm:$0xff] %v333
      %352 = vst [vmem:[#allocation2 + $0x30] sm:$0xff] %v338
      %353 = vst [vmem:[#allocation2 + $0x38] sm:$0xff] %v343
      %v354 = vld [vmem:[#allocation2] sm:$0xff]
      %v355 = vld [vmem:[#allocation2 + $0x8] sm:$0xff]
      %v356 = vld [vmem:[#allocation2 + $0x10] sm:$0xff]
      %v357 = vld [vmem:[#allocation2 + $0x18] sm:$0xff]
      %v358 = vld [vmem:[#allocation2 + $0x20] sm:$0xff]
      %v359 = vld [vmem:[#allocation2 + $0x28] sm:$0xff]
      %v360 = vld [vmem:[#allocation2 + $0x30] sm:$0xff]
      %v361 = vld [vmem:[#allocation2 + $0x38] sm:$0xff]
      %s362 = scalar_lea.vmem %s1, 8
      %v363 = vld [vmem:[%s362] sm:$0xff]
      %v365 = vsel %vm216, %v207, 0
      %v368 = vsel %vm216, %v208, 0
      %v371 = vsel %vm216, %v209, 0
      %v374 = vsel %vm216, %v210, 0
      %v377 = vsel %vm216, %v211, 0
      %v380 = vsel %vm216, %v212, 0
      %v383 = vsel %vm216, %v213, 0
      %v386 = vsel %vm216, %v214, 0
      %388 = vmatprep.subr.mxu0 0.0
      %389 = vmatpush1.msra.mxu0 %v363
      %390 = vmatprep.subr.mxu0 0.0
      %391 = vmatpush1.msra.mxu0 0.0
      %392 = vmatprep.subr.mxu0 0.0
      %393 = vmatpush1.msra.mxu0 0.0
      %394 = vmatprep.subr.mxu0 0.0
      %395 = vmatpush1.msra.mxu0 0.0
      %396 = vmatprep.subr.mxu0 0.0
      %397 = vmatpush1.msra.mxu0 0.0
      %398 = vmatprep.subr.mxu0 0.0
      %399 = vmatpush1.msra.mxu0 0.0
      %400 = vmatprep.subr.mxu0 0.0
      %401 = vmatpush1.msra.mxu0 0.0
      %402 = vmatprep.subr.mxu0 0.0
      %403 = vmatpush1.msra.mxu0 0.0
      %404 = vmatprep.subr.mxu0 0.0
      %405 = vmatpush1.msra.mxu0 0.0
      %406 = vmatprep.subr.mxu0 0.0
      %407 = vmatpush1.msra.mxu0 0.0
      %408 = vmatprep.subr.mxu0 0.0
      %409 = vmatpush1.msra.mxu0 0.0
      %410 = vmatprep.subr.mxu0 0.0
      %411 = vmatpush1.msra.mxu0 0.0
      %412 = vmatprep.subr.mxu0 0.0
      %413 = vmatpush1.msra.mxu0 0.0
      %414 = vmatprep.subr.mxu0 0.0
      %415 = vmatpush1.msra.mxu0 0.0
      %416 = vmatprep.subr.mxu0 0.0
      %417 = vmatpush1.msra.mxu0 0.0
      %418 = vmatprep.subr.mxu0 0.0
      %419 = vmatpush1.msra.mxu0 0.0
      %420 = vmatprep.subr.mxu0 0.0
      %421 = vmatpush1.msra.mxu0 0.0
      %422 = vmatprep.subr.mxu0 0.0
      %423 = vmatpush1.msra.mxu0 0.0
      %424 = vmatprep.subr.mxu0 0.0
      %425 = vmatpush1.msra.mxu0 0.0
      %426 = vmatprep.subr.mxu0 0.0
      %427 = vmatpush1.msra.mxu0 0.0
      %428 = vmatprep.subr.mxu0 0.0
      %429 = vmatpush1.msra.mxu0 0.0
      %430 = vmatprep.subr.mxu0 0.0
      %431 = vmatpush1.msra.mxu0 0.0
      %432 = vmatprep.subr.mxu0 0.0
      %433 = vmatpush1.msra.mxu0 0.0
      %434 = vmatprep.subr.mxu0 0.0
      %435 = vmatpush1.msra.mxu0 0.0
      %436 = vmatprep.subr.mxu0 0.0
      %437 = vmatpush1.msra.mxu0 0.0
      %438 = vmatprep.subr.mxu0 0.0
      %439 = vmatpush1.msra.mxu0 0.0
      %440 = vmatprep.subr.mxu0 0.0
      %441 = vmatpush1.msra.mxu0 0.0
      %442 = vmatprep.subr.mxu0 0.0
      %443 = vmatpush1.msra.mxu0 0.0
      %444 = vmatprep.subr.mxu0 0.0
      %445 = vmatpush1.msra.mxu0 0.0
      %446 = vmatprep.subr.mxu0 0.0
      %447 = vmatpush1.msra.mxu0 0.0
      %448 = vmatprep.subr.mxu0 0.0
      %449 = vmatpush1.msra.mxu0 0.0
      %450 = vmatprep.subr.mxu0 0.0
      %451 = vmatpush1.msra.mxu0 0.0
      %452 = vmatprep.mubr.f32.mxu0 0.0
      %453 = vmatmul.mubr.f32.gmra.mrb[0].mxu0 %v365
      %v454 = vpop.f32.mrb[0].mxu0
      %v455 = vadd.f32 0.0, %v454
      %v456 = vpop.f32.mrb[0].mxu0
      %457 = vmatprep.mubr.f32.mxu0 0.0
      %458 = vmatmul.mubr.f32.gmra.mrb[0].mxu0 %v368
      %v459 = vpop.f32.mrb[0].mxu0
      %v460 = vadd.f32 0.0, %v459
      %v461 = vpop.f32.mrb[0].mxu0
      %462 = vmatprep.mubr.f32.mxu0 0.0
      %463 = vmatmul.mubr.f32.gmra.mrb[0].mxu0 %v371
      %v464 = vpop.f32.mrb[0].mxu0
      %v465 = vadd.f32 0.0, %v464
      %v466 = vpop.f32.mrb[0].mxu0
      %467 = vmatprep.mubr.f32.mxu0 0.0
      %468 = vmatmul.mubr.f32.gmra.mrb[0].mxu0 %v374
      %v469 = vpop.f32.mrb[0].mxu0
      %v470 = vadd.f32 0.0, %v469
      %v471 = vpop.f32.mrb[0].mxu0
      %472 = vmatprep.mubr.f32.mxu0 0.0
      %473 = vmatmul.mubr.f32.gmra.mrb[0].mxu0 %v377
      %v474 = vpop.f32.mrb[0].mxu0
      %v475 = vadd.f32 0.0, %v474
      %v476 = vpop.f32.mrb[0].mxu0
      %477 = vmatprep.mubr.f32.mxu0 0.0
      %478 = vmatmul.mubr.f32.gmra.mrb[0].mxu0 %v380
      %v479 = vpop.f32.mrb[0].mxu0
      %v480 = vadd.f32 0.0, %v479
      %v481 = vpop.f32.mrb[0].mxu0
      %482 = vmatprep.mubr.f32.mxu0 0.0
      %483 = vmatmul.mubr.f32.gmra.mrb[0].mxu0 %v383
      %v484 = vpop.f32.mrb[0].mxu0
      %v485 = vadd.f32 0.0, %v484
      %v486 = vpop.f32.mrb[0].mxu0
      %487 = vmatprep.mubr.f32.mxu0 0.0
      %488 = vmatmul.mubr.f32.gmra.mrb[0].mxu0 %v386
      %v489 = vpop.f32.mrb[0].mxu0
      %v490 = vadd.f32 0.0, %v489
      %v491 = vpop.f32.mrb[0].mxu0
      %492 = vdwg.mxu0
      %v493 = vadd.f32 %v354, %v455
      %v494 = vadd.f32 %v355, %v460
      %v495 = vadd.f32 %v356, %v465
      %v496 = vadd.f32 %v357, %v470
      %v497 = vadd.f32 %v358, %v475
      %v498 = vadd.f32 %v359, %v480
      %v499 = vadd.f32 %v360, %v485
      %v500 = vadd.f32 %v361, %v490
      %501 = vst [vmem:[#allocation2] sm:$0xff] %v493
      %502 = vst [vmem:[#allocation2 + $0x8] sm:$0xff] %v494
      %503 = vst [vmem:[#allocation2 + $0x10] sm:$0xff] %v495
      %504 = vst [vmem:[#allocation2 + $0x18] sm:$0xff] %v496
      %505 = vst [vmem:[#allocation2 + $0x20] sm:$0xff] %v497
      %506 = vst [vmem:[#allocation2 + $0x28] sm:$0xff] %v498
      %507 = vst [vmem:[#allocation2 + $0x30] sm:$0xff] %v499
      %508 = vst [vmem:[#allocation2 + $0x38] sm:$0xff] %v500
      %s509 = scalar_lea.vmem %s1, 16
      %v510 = vld [vmem:[%s509] sm:$0xff]
      %511 = vmatprep.subr.mxu0 0.0
      %512 = vmatpush1.msra.mxu0 %v510
      %513 = vmatprep.subr.mxu0 0.0
      %514 = vmatpush1.msra.mxu0 0.0
      %515 = vmatprep.subr.mxu0 0.0
      %516 = vmatpush1.msra.mxu0 0.0
      %517 = vmatprep.subr.mxu0 0.0
      %518 = vmatpush1.msra.mxu0 0.0
      %519 = vmatprep.subr.mxu0 0.0
      %520 = vmatpush1.msra.mxu0 0.0
      %521 = vmatprep.subr.mxu0 0.0
      %522 = vmatpush1.msra.mxu0 0.0
      %523 = vmatprep.subr.mxu0 0.0
      %524 = vmatpush1.msra.mxu0 0.0
      %525 = vmatprep.subr.mxu0 0.0
      %526 = vmatpush1.msra.mxu0 0.0
      %527 = vmatprep.subr.mxu0 0.0
      %528 = vmatpush1.msra.mxu0 0.0
      %529 = vmatprep.subr.mxu0 0.0
      %530 = vmatpush1.msra.mxu0 0.0
      %531 = vmatprep.subr.mxu0 0.0
      %532 = vmatpush1.msra.mxu0 0.0
      %533 = vmatprep.subr.mxu0 0.0
      %534 = vmatpush1.msra.mxu0 0.0
      %535 = vmatprep.subr.mxu0 0.0
      %536 = vmatpush1.msra.mxu0 0.0
      %537 = vmatprep.subr.mxu0 0.0
      %538 = vmatpush1.msra.mxu0 0.0
      %539 = vmatprep.subr.mxu0 0.0
      %540 = vmatpush1.msra.mxu0 0.0
      %541 = vmatprep.subr.mxu0 0.0
      %542 = vmatpush1.msra.mxu0 0.0
      %543 = vmatprep.subr.mxu0 0.0
      %544 = vmatpush1.msra.mxu0 0.0
      %545 = vmatprep.subr.mxu0 0.0
      %546 = vmatpush1.msra.mxu0 0.0
      %547 = vmatprep.subr.mxu0 0.0
      %548 = vmatpush1.msra.mxu0 0.0
      %549 = vmatprep.subr.mxu0 0.0
      %550 = vmatpush1.msra.mxu0 0.0
      %551 = vmatprep.subr.mxu0 0.0
      %552 = vmatpush1.msra.mxu0 0.0
      %553 = vmatprep.subr.mxu0 0.0
      %554 = vmatpush1.msra.mxu0 0.0
      %555 = vmatprep.subr.mxu0 0.0
      %556 = vmatpush1.msra.mxu0 0.0
      %557 = vmatprep.subr.mxu0 0.0
      %558 = vmatpush1.msra.mxu0 0.0
      %559 = vmatprep.subr.mxu0 0.0
      %560 = vmatpush1.msra.mxu0 0.0
      %561 = vmatprep.subr.mxu0 0.0
      %562 = vmatpush1.msra.mxu0 0.0
      %563 = vmatprep.subr.mxu0 0.0
      %564 = vmatpush1.msra.mxu0 0.0
      %565 = vmatprep.subr.mxu0 0.0
      %566 = vmatpush1.msra.mxu0 0.0
      %567 = vmatprep.subr.mxu0 0.0
      %568 = vmatpush1.msra.mxu0 0.0
      %569 = vmatprep.subr.mxu0 0.0
      %570 = vmatpush1.msra.mxu0 0.0
      %571 = vmatprep.subr.mxu0 0.0
      %572 = vmatpush1.msra.mxu0 0.0
      %573 = vmatprep.subr.mxu0 0.0
      %574 = vmatpush1.msra.mxu0 0.0
      %575 = vmatprep.mubr.f32.mxu0 0.0
      %576 = vmatmul.mubr.f32.gmra.mrb[0].mxu0 %v365
      %v577 = vpop.f32.mrb[0].mxu0
      %v578 = vadd.f32 0.0, %v577
      %v579 = vpop.f32.mrb[0].mxu0
      %580 = vmatprep.mubr.f32.mxu0 0.0
      %581 = vmatmul.mubr.f32.gmra.mrb[0].mxu0 %v368
      %v582 = vpop.f32.mrb[0].mxu0
      %v583 = vadd.f32 0.0, %v582
      %v584 = vpop.f32.mrb[0].mxu0
      %585 = vmatprep.mubr.f32.mxu0 0.0
      %586 = vmatmul.mubr.f32.gmra.mrb[0].mxu0 %v371
      %v587 = vpop.f32.mrb[0].mxu0
      %v588 = vadd.f32 0.0, %v587
      %v589 = vpop.f32.mrb[0].mxu0
      %590 = vmatprep.mubr.f32.mxu0 0.0
      %591 = vmatmul.mubr.f32.gmra.mrb[0].mxu0 %v374
      %v592 = vpop.f32.mrb[0].mxu0
      %v593 = vadd.f32 0.0, %v592
      %v594 = vpop.f32.mrb[0].mxu0
      %595 = vmatprep.mubr.f32.mxu0 0.0
      %596 = vmatmul.mubr.f32.gmra.mrb[0].mxu0 %v377
      %v597 = vpop.f32.mrb[0].mxu0
      %v598 = vadd.f32 0.0, %v597
      %v599 = vpop.f32.mrb[0].mxu0
      %600 = vmatprep.mubr.f32.mxu0 0.0
      %601 = vmatmul.mubr.f32.gmra.mrb[0].mxu0 %v380
      %v602 = vpop.f32.mrb[0].mxu0
      %v603 = vadd.f32 0.0, %v602
      %v604 = vpop.f32.mrb[0].mxu0
      %605 = vmatprep.mubr.f32.mxu0 0.0
      %606 = vmatmul.mubr.f32.gmra.mrb[0].mxu0 %v383
      %v607 = vpop.f32.mrb[0].mxu0
      %v608 = vadd.f32 0.0, %v607
      %v609 = vpop.f32.mrb[0].mxu0
      %610 = vmatprep.mubr.f32.mxu0 0.0
      %611 = vmatmul.mubr.f32.gmra.mrb[0].mxu0 %v386
      %v612 = vpop.f32.mrb[0].mxu0
      %v613 = vpop.f32.mrb[0].mxu0
      %614 = vdwg.mxu0
      %v615 = vld [vmem:[#allocation2] sm:$0xff]
      %v616 = vld [vmem:[#allocation2 + $0x8] sm:$0xff]
      %v617 = vld [vmem:[#allocation2 + $0x10] sm:$0xff]
      %v618 = vld [vmem:[#allocation2 + $0x18] sm:$0xff]
      %v619 = vld [vmem:[#allocation2 + $0x20] sm:$0xff]
      %v620 = vld [vmem:[#allocation2 + $0x28] sm:$0xff]
      %v621 = vld [vmem:[#allocation2 + $0x30] sm:$0xff]
      %v622 = vld [vmem:[#allocation2 + $0x38] sm:$0xff]
      %v623 = vadd.f32 %v615, 0.0
      %v624 = vadd.f32 %v616, %v578
      %v625 = vadd.f32 %v617, %v583
      %v626 = vadd.f32 %v618, %v588
      %v627 = vadd.f32 %v619, %v593
      %v628 = vadd.f32 %v620, %v598
      %v629 = vadd.f32 %v621, %v603
      %v630 = vadd.f32 %v622, %v608
      %631 = vst [vmem:[#allocation2] sm:$0xff] %v623
      %632 = vst [vmem:[#allocation2 + $0x8] sm:$0xff] %v624
      %633 = vst [vmem:[#allocation2 + $0x10] sm:$0xff] %v625
      %634 = vst [vmem:[#allocation2 + $0x18] sm:$0xff] %v626
      %635 = vst [vmem:[#allocation2 + $0x20] sm:$0xff] %v627
      %636 = vst [vmem:[#allocation2 + $0x28] sm:$0xff] %v628
      %637 = vst [vmem:[#allocation2 + $0x30] sm:$0xff] %v629
      %638 = vst [vmem:[#allocation2 + $0x38] sm:$0xff] %v630
      %v639 = vld [vmem:[%s2] sm:$0xf]
      %s640 = scalar_lea.vmem %s2, 4
      %v641 = vld [vmem:[%s640] sm:$0xf]
      %642 = vrot.lane.b32.xlu0 %v207, 124
      %v643 = vpop.permute.xlu0 %642
      %644 = vrot.lane.b32.xlu0 %v208, 124
      %v645 = vpop.permute.xlu0 %644
      %646 = vrot.lane.b32.xlu0 %v209, 124
      %v647 = vpop.permute.xlu0 %646
      %648 = vrot.lane.b32.xlu0 %v210, 124
      %v649 = vpop.permute.xlu0 %648
      %650 = vrot.lane.b32.xlu0 %v211, 124
      %v651 = vpop.permute.xlu0 %650
      %652 = vrot.lane.b32.xlu0 %v212, 124
      %v653 = vpop.permute.xlu0 %652
      %654 = vrot.lane.b32.xlu0 %v213, 124
      %v655 = vpop.permute.xlu0 %654
      %656 = vrot.lane.b32.xlu0 %v214, 124
      %v657 = vpop.permute.xlu0 %656
      %vm658 = vcmask 31744
      %v659 = vsel %vm658, %v643, 0
      %v661 = vsel %vm658, %v645, 0
      %v663 = vsel %vm658, %v647, 0
      %v665 = vsel %vm658, %v649, 0
      %v667 = vsel %vm658, %v651, 0
      %v669 = vsel %vm658, %v653, 0
      %v671 = vsel %vm658, %v655, 0
      %v673 = vsel %vm658, %v657, 0
      %vm675 = vcmask 1043456
      %v677 = vsel %vm675, %v641, 0
      %679 = vmatprep.subr.mxu0 0.0
      %680 = vmatpush1.msra.mxu0 %v677
      %681 = vmatprep.subr.mxu0 0.0
      %682 = vmatpush1.msra.mxu0 0.0
      %683 = vmatprep.subr.mxu0 0.0
      %684 = vmatpush1.msra.mxu0 0.0
      %685 = vmatprep.subr.mxu0 0.0
      %686 = vmatpush1.msra.mxu0 0.0
      %687 = vmatprep.subr.mxu0 0.0
      %688 = vmatpush1.msra.mxu0 0.0
      %689 = vmatprep.subr.mxu0 0.0
      %690 = vmatpush1.msra.mxu0 0.0
      %691 = vmatprep.subr.mxu0 0.0
      %692 = vmatpush1.msra.mxu0 0.0
      %693 = vmatprep.subr.mxu0 0.0
      %694 = vmatpush1.msra.mxu0 0.0
      %695 = vmatprep.subr.mxu0 0.0
      %696 = vmatpush1.msra.mxu0 0.0
      %697 = vmatprep.subr.mxu0 0.0
      %698 = vmatpush1.msra.mxu0 0.0
      %699 = vmatprep.subr.mxu0 0.0
      %700 = vmatpush1.msra.mxu0 0.0
      %701 = vmatprep.subr.mxu0 0.0
      %702 = vmatpush1.msra.mxu0 0.0
      %703 = vmatprep.subr.mxu0 0.0
      %704 = vmatpush1.msra.mxu0 0.0
      %705 = vmatprep.subr.mxu0 0.0
      %706 = vmatpush1.msra.mxu0 0.0
      %707 = vmatprep.subr.mxu0 0.0
      %708 = vmatpush1.msra.mxu0 0.0
      %709 = vmatprep.subr.mxu0 0.0
      %710 = vmatpush1.msra.mxu0 0.0
      %711 = vmatprep.subr.mxu0 0.0
      %712 = vmatpush1.msra.mxu0 0.0
      %713 = vmatprep.subr.mxu0 0.0
      %714 = vmatpush1.msra.mxu0 0.0
      %715 = vmatprep.subr.mxu0 0.0
      %716 = vmatpush1.msra.mxu0 0.0
      %717 = vmatprep.subr.mxu0 0.0
      %718 = vmatpush1.msra.mxu0 0.0
      %719 = vmatprep.subr.mxu0 0.0
      %720 = vmatpush1.msra.mxu0 0.0
      %721 = vmatprep.subr.mxu0 0.0
      %722 = vmatpush1.msra.mxu0 0.0
      %723 = vmatprep.subr.mxu0 0.0
      %724 = vmatpush1.msra.mxu0 0.0
      %725 = vmatprep.subr.mxu0 0.0
      %726 = vmatpush1.msra.mxu0 0.0
      %727 = vmatprep.subr.mxu0 0.0
      %728 = vmatpush1.msra.mxu0 0.0
      %729 = vmatprep.subr.mxu0 0.0
      %730 = vmatpush1.msra.mxu0 0.0
      %731 = vmatprep.subr.mxu0 0.0
      %732 = vmatpush1.msra.mxu0 0.0
      %733 = vmatprep.subr.mxu0 0.0
      %734 = vmatpush1.msra.mxu0 0.0
      %735 = vmatprep.subr.mxu0 0.0
      %736 = vmatpush1.msra.mxu0 0.0
      %737 = vmatprep.subr.mxu0 0.0
      %738 = vmatpush1.msra.mxu0 0.0
      %739 = vmatprep.subr.mxu0 0.0
      %740 = vmatpush1.msra.mxu0 0.0
      %741 = vmatprep.subr.mxu0 0.0
      %742 = vmatpush1.msra.mxu0 0.0
      %743 = vmatprep.mubr.f32.mxu0 0.0
      %744 = vmatmul.mubr.f32.gmra.mrb[0].mxu0 %v659
      %v745 = vpop.f32.mrb[0].mxu0
      %v746 = vadd.f32 0.0, %v745
      %v747 = vpop.f32.mrb[0].mxu0
      %748 = vmatprep.mubr.f32.mxu0 0.0
      %749 = vmatmul.mubr.f32.gmra.mrb[0].mxu0 %v661
      %v750 = vpop.f32.mrb[0].mxu0
      %v751 = vadd.f32 0.0, %v750
      %v752 = vpop.f32.mrb[0].mxu0
      %753 = vmatprep.mubr.f32.mxu0 0.0
      %754 = vmatmul.mubr.f32.gmra.mrb[0].mxu0 %v663
      %v755 = vpop.f32.mrb[0].mxu0
      %v756 = vadd.f32 0.0, %v755
      %v757 = vpop.f32.mrb[0].mxu0
      %758 = vmatprep.mubr.f32.mxu0 0.0
      %759 = vmatmul.mubr.f32.gmra.mrb[0].mxu0 %v665
      %v760 = vpop.f32.mrb[0].mxu0
      %v761 = vadd.f32 0.0, %v760
      %v762 = vpop.f32.mrb[0].mxu0
      %763 = vmatprep.mubr.f32.mxu0 0.0
      %764 = vmatmul.mubr.f32.gmra.mrb[0].mxu0 %v667
      %v765 = vpop.f32.mrb[0].mxu0
      %v766 = vadd.f32 0.0, %v765
      %v767 = vpop.f32.mrb[0].mxu0
      %768 = vmatprep.mubr.f32.mxu0 0.0
      %769 = vmatmul.mubr.f32.gmra.mrb[0].mxu0 %v669
      %v770 = vpop.f32.mrb[0].mxu0
      %v771 = vadd.f32 0.0, %v770
      %v772 = vpop.f32.mrb[0].mxu0
      %773 = vmatprep.mubr.f32.mxu0 0.0
      %774 = vmatmul.mubr.f32.gmra.mrb[0].mxu0 %v671
      %v775 = vpop.f32.mrb[0].mxu0
      %v776 = vadd.f32 0.0, %v775
      %v777 = vpop.f32.mrb[0].mxu0
      %778 = vmatprep.mubr.f32.mxu0 0.0
      %779 = vmatmul.mubr.f32.gmra.mrb[0].mxu0 %v673
      %v780 = vpop.f32.mrb[0].mxu0
      %v781 = vadd.f32 0.0, %v780
      %v782 = vpop.f32.mrb[0].mxu0
      %783 = vdwg.mxu0
      %784 = vrot.lane.b32.xlu0 %v198, 124
      %v785 = vpop.permute.xlu0 %784
      %786 = vrot.lane.b32.xlu0 %v199, 124
      %v787 = vpop.permute.xlu0 %786
      %788 = vrot.lane.b32.xlu0 %v200, 124
      %v789 = vpop.permute.xlu0 %788
      %790 = vrot.lane.b32.xlu0 %v201, 124
      %v791 = vpop.permute.xlu0 %790
      %792 = vrot.lane.b32.xlu0 %v202, 124
      %v793 = vpop.permute.xlu0 %792
      %794 = vrot.lane.b32.xlu0 %v203, 124
      %v795 = vpop.permute.xlu0 %794
      %796 = vrot.lane.b32.xlu0 %v204, 124
      %v797 = vpop.permute.xlu0 %796
      %798 = vrot.lane.b32.xlu0 %v205, 124
      %v799 = vpop.permute.xlu0 %798
      %v800 = vsel %vm658, %v785, 0
      %v802 = vsel %vm658, %v787, 0
      %v804 = vsel %vm658, %v789, 0
      %v806 = vsel %vm658, %v791, 0
      %v808 = vsel %vm658, %v793, 0
      %v810 = vsel %vm658, %v795, 0
      %v812 = vsel %vm658, %v797, 0
      %v814 = vsel %vm658, %v799, 0
      %v817 = vsel %vm675, %v639, 0
      %819 = vmatprep.subr.mxu0 0.0
      %820 = vmatpush1.msra.mxu0 %v817
      %821 = vmatprep.subr.mxu0 0.0
      %822 = vmatpush1.msra.mxu0 0.0
      %823 = vmatprep.subr.mxu0 0.0
      %824 = vmatpush1.msra.mxu0 0.0
      %825 = vmatprep.subr.mxu0 0.0
      %826 = vmatpush1.msra.mxu0 0.0
      %827 = vmatprep.subr.mxu0 0.0
      %828 = vmatpush1.msra.mxu0 0.0
      %829 = vmatprep.subr.mxu0 0.0
      %830 = vmatpush1.msra.mxu0 0.0
      %831 = vmatprep.subr.mxu0 0.0
      %832 = vmatpush1.msra.mxu0 0.0
      %833 = vmatprep.subr.mxu0 0.0
      %834 = vmatpush1.msra.mxu0 0.0
      %835 = vmatprep.subr.mxu0 0.0
      %836 = vmatpush1.msra.mxu0 0.0
      %837 = vmatprep.subr.mxu0 0.0
      %838 = vmatpush1.msra.mxu0 0.0
      %839 = vmatprep.subr.mxu0 0.0
      %840 = vmatpush1.msra.mxu0 0.0
      %841 = vmatprep.subr.mxu0 0.0
      %842 = vmatpush1.msra.mxu0 0.0
      %843 = vmatprep.subr.mxu0 0.0
      %844 = vmatpush1.msra.mxu0 0.0
      %845 = vmatprep.subr.mxu0 0.0
      %846 = vmatpush1.msra.mxu0 0.0
      %847 = vmatprep.subr.mxu0 0.0
      %848 = vmatpush1.msra.mxu0 0.0
      %849 = vmatprep.subr.mxu0 0.0
      %850 = vmatpush1.msra.mxu0 0.0
      %851 = vmatprep.subr.mxu0 0.0
      %852 = vmatpush1.msra.mxu0 0.0
      %853 = vmatprep.subr.mxu0 0.0
      %854 = vmatpush1.msra.mxu0 0.0
      %855 = vmatprep.subr.mxu0 0.0
      %856 = vmatpush1.msra.mxu0 0.0
      %857 = vmatprep.subr.mxu0 0.0
      %858 = vmatpush1.msra.mxu0 0.0
      %859 = vmatprep.subr.mxu0 0.0
      %860 = vmatpush1.msra.mxu0 0.0
      %861 = vmatprep.subr.mxu0 0.0
      %862 = vmatpush1.msra.mxu0 0.0
      %863 = vmatprep.subr.mxu0 0.0
      %864 = vmatpush1.msra.mxu0 0.0
      %865 = vmatprep.subr.mxu0 0.0
      %866 = vmatpush1.msra.mxu0 0.0
      %867 = vmatprep.subr.mxu0 0.0
      %868 = vmatpush1.msra.mxu0 0.0
      %869 = vmatprep.subr.mxu0 0.0
      %870 = vmatpush1.msra.mxu0 0.0
      %871 = vmatprep.subr.mxu0 0.0
      %872 = vmatpush1.msra.mxu0 0.0
      %873 = vmatprep.subr.mxu0 0.0
      %874 = vmatpush1.msra.mxu0 0.0
      %875 = vmatprep.subr.mxu0 0.0
      %876 = vmatpush1.msra.mxu0 0.0
      %877 = vmatprep.subr.mxu0 0.0
      %878 = vmatpush1.msra.mxu0 0.0
      %879 = vmatprep.subr.mxu0 0.0
      %880 = vmatpush1.msra.mxu0 0.0
      %881 = vmatprep.subr.mxu0 0.0
      %882 = vmatpush1.msra.mxu0 0.0
      %883 = vmatprep.mubr.f32.mxu0 0.0
      %884 = vmatmul.mubr.f32.gmra.mrb[0].mxu0 %v800
      %v885 = vpop.f32.mrb[0].mxu0
      %v886 = vadd.f32 %v746, %v885
      %v887 = vpop.f32.mrb[0].mxu0
      %888 = vmatprep.mubr.f32.mxu0 0.0
      %889 = vmatmul.mubr.f32.gmra.mrb[0].mxu0 %v802
      %v890 = vpop.f32.mrb[0].mxu0
      %v891 = vadd.f32 %v751, %v890
      %v892 = vpop.f32.mrb[0].mxu0
      %893 = vmatprep.mubr.f32.mxu0 0.0
      %894 = vmatmul.mubr.f32.gmra.mrb[0].mxu0 %v804
      %v895 = vpop.f32.mrb[0].mxu0
      %v896 = vadd.f32 %v756, %v895
      %v897 = vpop.f32.mrb[0].mxu0
      %898 = vmatprep.mubr.f32.mxu0 0.0
      %899 = vmatmul.mubr.f32.gmra.mrb[0].mxu0 %v806
      %v900 = vpop.f32.mrb[0].mxu0
      %v901 = vadd.f32 %v761, %v900
      %v902 = vpop.f32.mrb[0].mxu0
      %903 = vmatprep.mubr.f32.mxu0 0.0
      %904 = vmatmul.mubr.f32.gmra.mrb[0].mxu0 %v808
      %v905 = vpop.f32.mrb[0].mxu0
      %v906 = vadd.f32 %v766, %v905
      %v907 = vpop.f32.mrb[0].mxu0
      %908 = vmatprep.mubr.f32.mxu0 0.0
      %909 = vmatmul.mubr.f32.gmra.mrb[0].mxu0 %v810
      %v910 = vpop.f32.mrb[0].mxu0
      %v911 = vadd.f32 %v771, %v910
      %v912 = vpop.f32.mrb[0].mxu0
      %913 = vmatprep.mubr.f32.mxu0 0.0
      %914 = vmatmul.mubr.f32.gmra.mrb[0].mxu0 %v812
      %v915 = vpop.f32.mrb[0].mxu0
      %v916 = vadd.f32 %v776, %v915
      %v917 = vpop.f32.mrb[0].mxu0
      %918 = vmatprep.mubr.f32.mxu0 0.0
      %919 = vmatmul.mubr.f32.gmra.mrb[0].mxu0 %v814
      %v920 = vpop.f32.mrb[0].mxu0
      %v921 = vadd.f32 %v781, %v920
      %v922 = vpop.f32.mrb[0].mxu0
      %923 = vdwg.mxu0
      %s924 = scalar_lea.vmem %s2, 8
      %v925 = vld [vmem:[%s924] sm:$0xf]
      %v927 = vsel %vm675, %v925, 0
      %929 = vmatprep.subr.mxu0 0.0
      %930 = vmatpush1.msra.mxu0 %v927
      %931 = vmatprep.subr.mxu0 0.0
      %932 = vmatpush1.msra.mxu0 0.0
      %933 = vmatprep.subr.mxu0 0.0
      %934 = vmatpush1.msra.mxu0 0.0
      %935 = vmatprep.subr.mxu0 0.0
      %936 = vmatpush1.msra.mxu0 0.0
      %937 = vmatprep.subr.mxu0 0.0
      %938 = vmatpush1.msra.mxu0 0.0
      %939 = vmatprep.subr.mxu0 0.0
      %940 = vmatpush1.msra.mxu0 0.0
      %941 = vmatprep.subr.mxu0 0.0
      %942 = vmatpush1.msra.mxu0 0.0
      %943 = vmatprep.subr.mxu0 0.0
      %944 = vmatpush1.msra.mxu0 0.0
      %945 = vmatprep.subr.mxu0 0.0
      %946 = vmatpush1.msra.mxu0 0.0
      %947 = vmatprep.subr.mxu0 0.0
      %948 = vmatpush1.msra.mxu0 0.0
      %949 = vmatprep.subr.mxu0 0.0
      %950 = vmatpush1.msra.mxu0 0.0
      %951 = vmatprep.subr.mxu0 0.0
      %952 = vmatpush1.msra.mxu0 0.0
      %953 = vmatprep.subr.mxu0 0.0
      %954 = vmatpush1.msra.mxu0 0.0
      %955 = vmatprep.subr.mxu0 0.0
      %956 = vmatpush1.msra.mxu0 0.0
      %957 = vmatprep.subr.mxu0 0.0
      %958 = vmatpush1.msra.mxu0 0.0
      %959 = vmatprep.subr.mxu0 0.0
      %960 = vmatpush1.msra.mxu0 0.0
      %961 = vmatprep.subr.mxu0 0.0
      %962 = vmatpush1.msra.mxu0 0.0
      %963 = vmatprep.subr.mxu0 0.0
      %964 = vmatpush1.msra.mxu0 0.0
      %965 = vmatprep.subr.mxu0 0.0
      %966 = vmatpush1.msra.mxu0 0.0
      %967 = vmatprep.subr.mxu0 0.0
      %968 = vmatpush1.msra.mxu0 0.0
      %969 = vmatprep.subr.mxu0 0.0
      %970 = vmatpush1.msra.mxu0 0.0
      %971 = vmatprep.subr.mxu0 0.0
      %972 = vmatpush1.msra.mxu0 0.0
      %973 = vmatprep.subr.mxu0 0.0
      %974 = vmatpush1.msra.mxu0 0.0
      %975 = vmatprep.subr.mxu0 0.0
      %976 = vmatpush1.msra.mxu0 0.0
      %977 = vmatprep.subr.mxu0 0.0
      %978 = vmatpush1.msra.mxu0 0.0
      %979 = vmatprep.subr.mxu0 0.0
      %980 = vmatpush1.msra.mxu0 0.0
      %981 = vmatprep.subr.mxu0 0.0
      %982 = vmatpush1.msra.mxu0 0.0
      %983 = vmatprep.subr.mxu0 0.0
      %984 = vmatpush1.msra.mxu0 0.0
      %985 = vmatprep.subr.mxu0 0.0
      %986 = vmatpush1.msra.mxu0 0.0
      %987 = vmatprep.subr.mxu0 0.0
      %988 = vmatpush1.msra.mxu0 0.0
      %989 = vmatprep.subr.mxu0 0.0
      %990 = vmatpush1.msra.mxu0 0.0
      %991 = vmatprep.subr.mxu0 0.0
      %992 = vmatpush1.msra.mxu0 0.0
      %993 = vmatprep.mubr.f32.mxu0 0.0
      %994 = vmatmul.mubr.f32.gmra.mrb[0].mxu0 %v659
      %v995 = vpop.f32.mrb[0].mxu0
      %v996 = vadd.f32 0.0, %v995
      %v997 = vpop.f32.mrb[0].mxu0
      %998 = vmatprep.mubr.f32.mxu0 0.0
      %999 = vmatmul.mubr.f32.gmra.mrb[0].mxu0 %v661
      %v1000 = vpop.f32.mrb[0].mxu0
      %v1001 = vadd.f32 0.0, %v1000
      %v1002 = vpop.f32.mrb[0].mxu0
      %1003 = vmatprep.mubr.f32.mxu0 0.0
      %1004 = vmatmul.mubr.f32.gmra.mrb[0].mxu0 %v663
      %v1005 = vpop.f32.mrb[0].mxu0
      %v1006 = vadd.f32 0.0, %v1005
      %v1007 = vpop.f32.mrb[0].mxu0
      %1008 = vmatprep.mubr.f32.mxu0 0.0
      %1009 = vmatmul.mubr.f32.gmra.mrb[0].mxu0 %v665
      %v1010 = vpop.f32.mrb[0].mxu0
      %v1011 = vadd.f32 0.0, %v1010
      %v1012 = vpop.f32.mrb[0].mxu0
      %1013 = vmatprep.mubr.f32.mxu0 0.0
      %1014 = vmatmul.mubr.f32.gmra.mrb[0].mxu0 %v667
      %v1015 = vpop.f32.mrb[0].mxu0
      %v1016 = vadd.f32 0.0, %v1015
      %v1017 = vpop.f32.mrb[0].mxu0
      %1018 = vmatprep.mubr.f32.mxu0 0.0
      %1019 = vmatmul.mubr.f32.gmra.mrb[0].mxu0 %v669
      %v1020 = vpop.f32.mrb[0].mxu0
      %v1021 = vadd.f32 0.0, %v1020
      %v1022 = vpop.f32.mrb[0].mxu0
      %1023 = vmatprep.mubr.f32.mxu0 0.0
      %1024 = vmatmul.mubr.f32.gmra.mrb[0].mxu0 %v671
      %v1025 = vpop.f32.mrb[0].mxu0
      %v1026 = vadd.f32 0.0, %v1025
      %v1027 = vpop.f32.mrb[0].mxu0
      %1028 = vmatprep.mubr.f32.mxu0 0.0
      %1029 = vmatmul.mubr.f32.gmra.mrb[0].mxu0 %v673
      %v1030 = vpop.f32.mrb[0].mxu0
      %v1031 = vpop.f32.mrb[0].mxu0
      %1032 = vdwg.mxu0
      %v1033 = vadd.f32 %v886, 0.0
      %v1034 = vadd.f32 %v891, %v996
      %v1035 = vadd.f32 %v896, %v1001
      %v1036 = vadd.f32 %v901, %v1006
      %v1037 = vadd.f32 %v906, %v1011
      %v1038 = vadd.f32 %v911, %v1016
      %v1039 = vadd.f32 %v916, %v1021
      %v1040 = vadd.f32 %v921, %v1026
      %v1041 = vld [vmem:[#allocation2] sm:$0xff]
      %v1042 = vld [vmem:[#allocation2 + $0x8] sm:$0xff]
      %v1043 = vld [vmem:[#allocation2 + $0x10] sm:$0xff]
      %v1044 = vld [vmem:[#allocation2 + $0x18] sm:$0xff]
      %v1045 = vld [vmem:[#allocation2 + $0x20] sm:$0xff]
      %v1046 = vld [vmem:[#allocation2 + $0x28] sm:$0xff]
      %v1047 = vld [vmem:[#allocation2 + $0x30] sm:$0xff]
      %v1048 = vld [vmem:[#allocation2 + $0x38] sm:$0xff]
      %v1057 = vrot.slane %v1033, 7
      %v1058 = vrot.slane %v1034, 7
      %v1059 = vrot.slane %v1035, 7
      %v1060 = vrot.slane %v1036, 7
      %v1061 = vrot.slane %v1037, 7
      %v1062 = vrot.slane %v1038, 7
      %v1063 = vrot.slane %v1039, 7
      %v1064 = vrot.slane %v1040, 7
      %vm1073 = vcmask 1040384
      %v1074 = vsel %vm1073, 0.0, %v1057
      %v1075 = vsel %vm1073, 0.0, %v1058
      %v1076 = vsel %vm1073, 0.0, %v1059
      %v1077 = vsel %vm1073, 0.0, %v1060
      %v1078 = vsel %vm1073, 0.0, %v1061
      %v1079 = vsel %vm1073, 0.0, %v1062
      %v1080 = vsel %vm1073, 0.0, %v1063
      %v1081 = vsel %vm1073, 0.0, %v1064
      %v1082 = vadd.f32 %v1041, %v1074
      %v1083 = vadd.f32 %v1042, %v1075
      %v1084 = vadd.f32 %v1043, %v1076
      %v1085 = vadd.f32 %v1044, %v1077
      %v1086 = vadd.f32 %v1045, %v1078
      %v1087 = vadd.f32 %v1046, %v1079
      %v1088 = vadd.f32 %v1047, %v1080
      %v1089 = vadd.f32 %v1048, %v1081
      %1090 = vst [vmem:[#allocation2] sm:$0xff] %v1082
      %1091 = vst [vmem:[#allocation2 + $0x8] sm:$0xff] %v1083
      %1092 = vst [vmem:[#allocation2 + $0x10] sm:$0xff] %v1084
      %1093 = vst [vmem:[#allocation2 + $0x18] sm:$0xff] %v1085
      %1094 = vst [vmem:[#allocation2 + $0x20] sm:$0xff] %v1086
      %1095 = vst [vmem:[#allocation2 + $0x28] sm:$0xff] %v1087
      %1096 = vst [vmem:[#allocation2 + $0x30] sm:$0xff] %v1088
      %1097 = vst [vmem:[#allocation2 + $0x38] sm:$0xff] %v1089
      %v1098 = vld [vmem:[#allocation2] sm:$0xff]
      %v1099 = vld [vmem:[#allocation2 + $0x8] sm:$0xff]
      %v1100 = vld [vmem:[#allocation2 + $0x10] sm:$0xff]
      %v1101 = vld [vmem:[#allocation2 + $0x18] sm:$0xff]
      %v1102 = vld [vmem:[#allocation2 + $0x20] sm:$0xff]
      %v1103 = vld [vmem:[#allocation2 + $0x28] sm:$0xff]
      %v1104 = vld [vmem:[#allocation2 + $0x30] sm:$0xff]
      %v1105 = vld [vmem:[#allocation2 + $0x38] sm:$0xff]
      %v1106 = vld [vmem:[%s3] sm:$0x1]
      %v1108 = vlaneseq
      %v1109 = vshrl.u32 %v1108, 7
      %v1110 = vsub.s32 0, %v1109
      %v1111 = vrot.slane %v1106, %v1110
      %v1113 = vadd.f32 %v1098, %v1111
      %v1114 = vadd.f32 %v1099, %v1111
      %v1115 = vadd.f32 %v1100, %v1111
      %v1116 = vadd.f32 %v1101, %v1111
      %v1117 = vadd.f32 %v1102, %v1111
      %v1118 = vadd.f32 %v1103, %v1111
      %v1119 = vadd.f32 %v1104, %v1111
      %v1120 = vadd.f32 %v1105, %v1111
      %vm1121 = vcmp.ge.f32.partialorder %v1113, 0.0
      %vm1122 = vcmp.ge.f32.partialorder %v1114, 0.0
      %vm1123 = vcmp.ge.f32.partialorder %v1115, 0.0
      %vm1124 = vcmp.ge.f32.partialorder %v1116, 0.0
      %vm1125 = vcmp.ge.f32.partialorder %v1117, 0.0
      %vm1126 = vcmp.ge.f32.partialorder %v1118, 0.0
      %vm1127 = vcmp.ge.f32.partialorder %v1119, 0.0
      %vm1128 = vcmp.ge.f32.partialorder %v1120, 0.0
      %v1129 = vmul.f32 %v1113, 0.01
      %v1130 = vmul.f32 %v1114, 0.01
      %v1131 = vmul.f32 %v1115, 0.01
      %v1132 = vmul.f32 %v1116, 0.01
      %v1133 = vmul.f32 %v1117, 0.01
      %v1134 = vmul.f32 %v1118, 0.01
      %v1135 = vmul.f32 %v1119, 0.01
      %v1136 = vmul.f32 %v1120, 0.01
      %v1137 = vsel %vm1121, %v1113, %v1129
      %v1138 = vsel %vm1122, %v1114, %v1130
      %v1139 = vsel %vm1123, %v1115, %v1131
      %v1140 = vsel %vm1124, %v1116, %v1132
      %v1141 = vsel %vm1125, %v1117, %v1133
      %v1142 = vsel %vm1126, %v1118, %v1134
      %v1143 = vsel %vm1127, %v1119, %v1135
      %v1144 = vsel %vm1128, %v1120, %v1136
      %1145 = vst [vmem:[%s197] sm:$0xff] %v1137
      %1146 = vst [vmem:[%s197 + $0x8] sm:$0xff] %v1138
      %1147 = vst [vmem:[%s197 + $0x10] sm:$0xff] %v1139
      %1148 = vst [vmem:[%s197 + $0x18] sm:$0xff] %v1140
      %1149 = vst [vmem:[%s197 + $0x20] sm:$0xff] %v1141
      %1150 = vst [vmem:[%s197 + $0x28] sm:$0xff] %v1142
      %1151 = vst [vmem:[%s197 + $0x30] sm:$0xff] %v1143
      %1152 = vst [vmem:[%s197 + $0x38] sm:$0xff] %v1144
      %p1153 = scmp.lt.s32.totalorder %s15, 1
      %s1154 = scalar_select %p1153, %s15, 1
      %s1155 = smul.addr %s1154, 8
      %s1156 = smul.addr %s1155, 8
      %s1157 = scalar_lea.vmem %s4, %s1156
      // Predicated region
      $region37: #{gradual_style_block_forward.4} parent=35 // pred_check
        %p1158 = pneg %p122
      $region38: #{gradual_style_block_forward.4} parent=35 // pred_check_branch
        %1160 = sbr.rel (%p1158) target = $region40
      $region39: #{gradual_style_block_forward.4} parent=35 // pred_region
        _
      $region40: #{gradual_style_block_forward.4} parent=35 // pred_fallthru
        _
    $region36: #{gradual_style_block_forward.4} parent=5 // pred_fallthru
      _
    %p1161 = scmp.le.s32.totalorder 2, %s10
    // Predicated region
    $region41: #{gradual_style_block_forward.4} parent=5 // pred_check
      %p1162 = pneg %p1161
    $region42: #{gradual_style_block_forward.4} parent=5 // pred_check_branch
      %1164 = sbr.rel (%p1162) target = $region44
    $region43: #{gradual_style_block_forward.4} parent=5 // pred_region
      %s1165 = ssub.s32 %s10, 2
      // Predicated region
      $region45: #{gradual_style_block_forward.4} parent=43 // pred_check
        %p1166 = pneg %p128
      $region46: #{gradual_style_block_forward.4} parent=43 // pred_check_branch
        %1168 = sbr.rel (%p1166) target = $region48
      $region47: #{gradual_style_block_forward.4} parent=43 // pred_region
        %p1169 = scmp.lt.s32.totalorder %s16, 1
        %s1170 = scalar_select %p1169, %s16, 1
        %s1171 = smul.addr %s1170, 8
        %s1172 = smul.addr %s1171, 8
        %s1173 = scalar_lea.vmem %s4, %s1172
      $region48: #{gradual_style_block_forward.4} parent=43 // pred_fallthru
        _
    $region44: #{gradual_style_block_forward.4} parent=5 // pred_fallthru
      _
  $region6: #{gradual_style_block_forward.4} parent=0 // loop_footer
    %s14 = sadd.s32 1, %s10
  $region7: #{gradual_style_block_forward.4} parent=0 // loop_footer_branch
    %9 = sbr.rel target = $region3
  $region8: #{gradual_style_block_forward.4} parent=0 // loop_exit
    _

// kernel: gradual_style_block_forward.7
$region0: #{gradual_style_block_forward.7}
  #allocation0 [shape = 'u32[]', space=smem, size = 0x4, offset = 0x4, fixed_abs, tag = 'smem constant byte address 0x4 - core index']
  #allocation1 [shape = 'u32[144,128]{1,0:T(1,128)}', space=vmem, size = 0x12000, scoped, tag = 'internal scratch']
  %s0 = inlined_call_operand.vmem [shape: f32[2,1,2,1,256], index: 0, kind: input, shape index: {}]
  %s1 = inlined_call_operand.vmem [shape: f32[2,256,128], index: 1, kind: input, shape index: {}]
  %s2 = inlined_call_operand.vmem [shape: f32[1,128], index: 2, kind: input, shape index: {}]
  %s3 = inlined_call_operand.vmem [shape: f32[128,128], index: 3, kind: input, shape index: {}]
  %s4 = inlined_call_operand.vmem [shape: f32[1,128], index: 4, kind: input, shape index: {}]
  %s5 = inlined_call_operand.hbm [shape: f32[2,128], index: 5, kind: output, shape index: {}]
  %s6 = sld [smem:[#allocation0]]
  $region30: #{gradual_style_block_forward.7} parent=0
    _
  %s8 = ssub.s32 1, %s6
  %s9 = scalar_select 0, %s8, %s6
  $region1: #{gradual_style_block_forward.7} parent=0
    #allocation2 [shape = 'u8[1024]{0}', space=vmem, size = 0x400, scoped, tag = 'output window, operand 0, single buffered']
    #allocation3 [shape = 's32[1]{0}', space=sflag, size = 0x4, scoped, tag = 'scoped memory for gradual_style_block_forward.7']
    %10 = vsyncpa [#allocation3], 0
    // Predicated region
    $region2: #{gradual_style_block_forward.7} parent=1 // pred_check
      _
    $region3: #{gradual_style_block_forward.7} parent=1 // pred_check_branch
      %12 = sbr.rel (0) target = $region5
    $region4: #{gradual_style_block_forward.7} parent=1 // pred_region
      _
    $region5: #{gradual_style_block_forward.7} parent=1 // pred_fallthru
      _
    // Predicated region
    $region6: #{gradual_style_block_forward.7} parent=1 // pred_check
      _
    $region7: #{gradual_style_block_forward.7} parent=1 // pred_check_branch
      %14 = sbr.rel (0) target = $region9
    $region8: #{gradual_style_block_forward.7} parent=1 // pred_region
      _
    $region9: #{gradual_style_block_forward.7} parent=1 // pred_fallthru
      _
    // Predicated region
    $region10: #{gradual_style_block_forward.7} parent=1 // pred_check
      _
    $region11: #{gradual_style_block_forward.7} parent=1 // pred_check_branch
      %16 = sbr.rel (0) target = $region13
    $region12: #{gradual_style_block_forward.7} parent=1 // pred_region
      _
    $region13: #{gradual_style_block_forward.7} parent=1 // pred_fallthru
      _
    // Predicated region
    $region14: #{gradual_style_block_forward.7} parent=1 // pred_check
      _
    $region15: #{gradual_style_block_forward.7} parent=1 // pred_check_branch
      %18 = sbr.rel (0) target = $region17
    $region16: #{gradual_style_block_forward.7} parent=1 // pred_region
      _
    $region17: #{gradual_style_block_forward.7} parent=1 // pred_fallthru
      _
    // Predicated region
    $region18: #{gradual_style_block_forward.7} parent=1 // pred_check
      _
    $region19: #{gradual_style_block_forward.7} parent=1 // pred_check_branch
      %20 = sbr.rel (0) target = $region21
    $region20: #{gradual_style_block_forward.7} parent=1 // pred_region
      _
    $region21: #{gradual_style_block_forward.7} parent=1 // pred_fallthru
      _
    %v21 = vld [vmem:[%s0] sm:$0x3]
    %v22 = vld [vmem:[%s0 + $0x4] sm:$0x3]
    %s23 = scalar_lea.vmem %s0, 2
    %v24 = vld [vmem:[%s23] sm:$0x3]
    %v25 = vld [vmem:[%s23 + $0x4] sm:$0x3]
    %v26 = vld [vmem:[%s1] sm:$0xff]
    %v27 = vld [vmem:[%s1 + $0x8] sm:$0xff]
    %v28 = vld [vmem:[%s1 + $0x10] sm:$0xff]
    %v29 = vld [vmem:[%s1 + $0x18] sm:$0xff]
    %v30 = vld [vmem:[%s1 + $0x20] sm:$0xff]
    %v31 = vld [vmem:[%s1 + $0x28] sm:$0xff]
    %v32 = vld [vmem:[%s1 + $0x30] sm:$0xff]
    %v33 = vld [vmem:[%s1 + $0x38] sm:$0xff]
    %v34 = vld [vmem:[%s1 + $0x40] sm:$0xff]
    %v35 = vld [vmem:[%s1 + $0x48] sm:$0xff]
    %v36 = vld [vmem:[%s1 + $0x50] sm:$0xff]
    %v37 = vld [vmem:[%s1 + $0x58] sm:$0xff]
    %v38 = vld [vmem:[%s1 + $0x60] sm:$0xff]
    %v39 = vld [vmem:[%s1 + $0x68] sm:$0xff]
    %v40 = vld [vmem:[%s1 + $0x70] sm:$0xff]
    %v41 = vld [vmem:[%s1 + $0x78] sm:$0xff]
    %v42 = vld [vmem:[%s1 + $0x80] sm:$0xff]
    %v43 = vld [vmem:[%s1 + $0x88] sm:$0xff]
    %v44 = vld [vmem:[%s1 + $0x90] sm:$0xff]
    %v45 = vld [vmem:[%s1 + $0x98] sm:$0xff]
    %v46 = vld [vmem:[%s1 + $0xa0] sm:$0xff]
    %v47 = vld [vmem:[%s1 + $0xa8] sm:$0xff]
    %v48 = vld [vmem:[%s1 + $0xb0] sm:$0xff]
    %v49 = vld [vmem:[%s1 + $0xb8] sm:$0xff]
    %v50 = vld [vmem:[%s1 + $0xc0] sm:$0xff]
    %v51 = vld [vmem:[%s1 + $0xc8] sm:$0xff]
    %v52 = vld [vmem:[%s1 + $0xd0] sm:$0xff]
    %v53 = vld [vmem:[%s1 + $0xd8] sm:$0xff]
    %v54 = vld [vmem:[%s1 + $0xe0] sm:$0xff]
    %v55 = vld [vmem:[%s1 + $0xe8] sm:$0xff]
    %v56 = vld [vmem:[%s1 + $0xf0] sm:$0xff]
    %v57 = vld [vmem:[%s1 + $0xf8] sm:$0xff]
    %s58 = scalar_lea.vmem %s1, 256
    %v59 = vld [vmem:[%s58] sm:$0xff]
    %v60 = vld [vmem:[%s58 + $0x8] sm:$0xff]
    %v61 = vld [vmem:[%s58 + $0x10] sm:$0xff]
    %v62 = vld [vmem:[%s58 + $0x18] sm:$0xff]
    %v63 = vld [vmem:[%s58 + $0x20] sm:$0xff]
    %v64 = vld [vmem:[%s58 + $0x28] sm:$0xff]
    %v65 = vld [vmem:[%s58 + $0x30] sm:$0xff]
    %v66 = vld [vmem:[%s58 + $0x38] sm:$0xff]
    %v67 = vld [vmem:[%s58 + $0x40] sm:$0xff]
    %v68 = vld [vmem:[%s58 + $0x48] sm:$0xff]
    %v69 = vld [vmem:[%s58 + $0x50] sm:$0xff]
    %v70 = vld [vmem:[%s58 + $0x58] sm:$0xff]
    %v71 = vld [vmem:[%s58 + $0x60] sm:$0xff]
    %v72 = vld [vmem:[%s58 + $0x68] sm:$0xff]
    %v73 = vld [vmem:[%s58 + $0x70] sm:$0xff]
    %v74 = vld [vmem:[%s58 + $0x78] sm:$0xff]
    %v75 = vld [vmem:[%s58 + $0x80] sm:$0xff]
    %v76 = vld [vmem:[%s58 + $0x88] sm:$0xff]
    %v77 = vld [vmem:[%s58 + $0x90] sm:$0xff]
    %v78 = vld [vmem:[%s58 + $0x98] sm:$0xff]
    %v79 = vld [vmem:[%s58 + $0xa0] sm:$0xff]
    %v80 = vld [vmem:[%s58 + $0xa8] sm:$0xff]
    %v81 = vld [vmem:[%s58 + $0xb0] sm:$0xff]
    %v82 = vld [vmem:[%s58 + $0xb8] sm:$0xff]
    %v83 = vld [vmem:[%s58 + $0xc0] sm:$0xff]
    %v84 = vld [vmem:[%s58 + $0xc8] sm:$0xff]
    %v85 = vld [vmem:[%s58 + $0xd0] sm:$0xff]
    %v86 = vld [vmem:[%s58 + $0xd8] sm:$0xff]
    %v87 = vld [vmem:[%s58 + $0xe0] sm:$0xff]
    %v88 = vld [vmem:[%s58 + $0xe8] sm:$0xff]
    %v89 = vld [vmem:[%s58 + $0xf0] sm:$0xff]
    %v90 = vld [vmem:[%s58 + $0xf8] sm:$0xff]
    %v93 = vcombine.low %v24, %v25
    %v95 = vunpack.c.l.s4 1966171168
    %v96 = vunpack.c.0.s8 %v95
    %v97 = vlaneseq
    %v98 = vshrl.u32 %v97, 7
    %v99 = vsub.s32 %v96, %v98
    %v100 = vrot.slane %v93, %v99
    %v101 = vcombine.high %v100, %v100
    %v103 = vunpack.c.l.s4 1966171168
    %v104 = vunpack.c.0.s8 %v103
    %v105 = vlaneseq
    %v106 = vshrl.u32 %v105, 7
    %v107 = vsub.s32 %v104, %v106
    %v108 = vrot.slane %v100, %v107
    %v110 = vunpack.c.l.s4 1966171168
    %v111 = vunpack.c.0.s8 %v110
    %v112 = vlaneseq
    %v113 = vshrl.u32 %v112, 7
    %v114 = vsub.s32 %v111, %v113
    %v115 = vrot.slane %v101, %v114
    %118 = vmatprep.subr.mxu0 0.0
    %119 = vmatpush1.msra.mxu0 %v59
    %120 = vmatprep.subr.mxu0 0.0
    %121 = vmatpush1.msra.mxu0 %v60
    %122 = vmatprep.subr.mxu0 0.0
    %123 = vmatpush1.msra.mxu0 %v61
    %124 = vmatprep.subr.mxu0 0.0
    %125 = vmatpush1.msra.mxu0 %v62
    %126 = vmatprep.subr.mxu0 0.0
    %127 = vmatpush1.msra.mxu0 %v63
    %128 = vmatprep.subr.mxu0 0.0
    %129 = vmatpush1.msra.mxu0 %v64
    %130 = vmatprep.subr.mxu0 0.0
    %131 = vmatpush1.msra.mxu0 %v65
    %132 = vmatprep.subr.mxu0 0.0
    %133 = vmatpush1.msra.mxu0 %v66
    %134 = vmatprep.subr.mxu0 0.0
    %135 = vmatpush1.msra.mxu0 %v67
    %136 = vmatprep.subr.mxu0 0.0
    %137 = vmatpush1.msra.mxu0 %v68
    %138 = vmatprep.subr.mxu0 0.0
    %139 = vmatpush1.msra.mxu0 %v69
    %140 = vmatprep.subr.mxu0 0.0
    %141 = vmatpush1.msra.mxu0 %v70
    %142 = vmatprep.subr.mxu0 0.0
    %143 = vmatpush1.msra.mxu0 %v71
    %144 = vmatprep.subr.mxu0 0.0
    %145 = vmatpush1.msra.mxu0 %v72
    %146 = vmatprep.subr.mxu0 0.0
    %147 = vmatpush1.msra.mxu0 %v73
    %148 = vmatprep.subr.mxu0 0.0
    %149 = vmatpush1.msra.mxu0 %v74
    %150 = vmatprep.subr.mxu0 0.0
    %151 = vmatpush1.msra.mxu0 %v75
    %152 = vmatprep.subr.mxu0 0.0
    %153 = vmatpush1.msra.mxu0 %v76
    %154 = vmatprep.subr.mxu0 0.0
    %155 = vmatpush1.msra.mxu0 %v77
    %156 = vmatprep.subr.mxu0 0.0
    %157 = vmatpush1.msra.mxu0 %v78
    %158 = vmatprep.subr.mxu0 0.0
    %159 = vmatpush1.msra.mxu0 %v79
    %160 = vmatprep.subr.mxu0 0.0
    %161 = vmatpush1.msra.mxu0 %v80
    %162 = vmatprep.subr.mxu0 0.0
    %163 = vmatpush1.msra.mxu0 %v81
    %164 = vmatprep.subr.mxu0 0.0
    %165 = vmatpush1.msra.mxu0 %v82
    %166 = vmatprep.subr.mxu0 0.0
    %167 = vmatpush1.msra.mxu0 %v83
    %168 = vmatprep.subr.mxu0 0.0
    %169 = vmatpush1.msra.mxu0 %v84
    %170 = vmatprep.subr.mxu0 0.0
    %171 = vmatpush1.msra.mxu0 %v85
    %172 = vmatprep.subr.mxu0 0.0
    %173 = vmatpush1.msra.mxu0 %v86
    %174 = vmatprep.subr.mxu0 0.0
    %175 = vmatpush1.msra.mxu0 %v87
    %176 = vmatprep.subr.mxu0 0.0
    %177 = vmatpush1.msra.mxu0 %v88
    %178 = vmatprep.subr.mxu0 0.0
    %179 = vmatpush1.msra.mxu0 %v89
    %180 = vmatprep.subr.mxu0 0.0
    %181 = vmatpush1.msra.mxu0 %v90
    %182 = vmatprep.mubr.f32.mxu0 %v115
    %183 = vmatmul.mubr.f32.gmra.mrb[0].mxu0 %v108
    %v184 = vpop.f32.mrb[0].mxu0
    %v185 = vadd.f32 0.0, %v184
    %v186 = vpop.f32.mrb[0].mxu0
    %187 = vdwg.mxu0
    %v190 = vcombine.low %v21, %v22
    %v192 = vunpack.c.l.s4 1966171168
    %v193 = vunpack.c.0.s8 %v192
    %v194 = vlaneseq
    %v195 = vshrl.u32 %v194, 7
    %v196 = vsub.s32 %v193, %v195
    %v197 = vrot.slane %v190, %v196
    %v198 = vcombine.high %v197, %v197
    %v200 = vunpack.c.l.s4 1966171168
    %v201 = vunpack.c.0.s8 %v200
    %v202 = vlaneseq
    %v203 = vshrl.u32 %v202, 7
    %v204 = vsub.s32 %v201, %v203
    %v205 = vrot.slane %v197, %v204
    %v207 = vunpack.c.l.s4 1966171168
    %v208 = vunpack.c.0.s8 %v207
    %v209 = vlaneseq
    %v210 = vshrl.u32 %v209, 7
    %v211 = vsub.s32 %v208, %v210
    %v212 = vrot.slane %v198, %v211
    %215 = vmatprep.subr.mxu0 0.0
    %216 = vmatpush1.msra.mxu0 %v26
    %217 = vmatprep.subr.mxu0 0.0
    %218 = vmatpush1.msra.mxu0 %v27
    %219 = vmatprep.subr.mxu0 0.0
    %220 = vmatpush1.msra.mxu0 %v28
    %221 = vmatprep.subr.mxu0 0.0
    %222 = vmatpush1.msra.mxu0 %v29
    %223 = vmatprep.subr.mxu0 0.0
    %224 = vmatpush1.msra.mxu0 %v30
    %225 = vmatprep.subr.mxu0 0.0
    %226 = vmatpush1.msra.mxu0 %v31
    %227 = vmatprep.subr.mxu0 0.0
    %228 = vmatpush1.msra.mxu0 %v32
    %229 = vmatprep.subr.mxu0 0.0
    %230 = vmatpush1.msra.mxu0 %v33
    %231 = vmatprep.subr.mxu0 0.0
    %232 = vmatpush1.msra.mxu0 %v34
    %233 = vmatprep.subr.mxu0 0.0
    %234 = vmatpush1.msra.mxu0 %v35
    %235 = vmatprep.subr.mxu0 0.0
    %236 = vmatpush1.msra.mxu0 %v36
    %237 = vmatprep.subr.mxu0 0.0
    %238 = vmatpush1.msra.mxu0 %v37
    %239 = vmatprep.subr.mxu0 0.0
    %240 = vmatpush1.msra.mxu0 %v38
    %241 = vmatprep.subr.mxu0 0.0
    %242 = vmatpush1.msra.mxu0 %v39
    %243 = vmatprep.subr.mxu0 0.0
    %244 = vmatpush1.msra.mxu0 %v40
    %245 = vmatprep.subr.mxu0 0.0
    %246 = vmatpush1.msra.mxu0 %v41
    %247 = vmatprep.subr.mxu0 0.0
    %248 = vmatpush1.msra.mxu0 %v42
    %249 = vmatprep.subr.mxu0 0.0
    %250 = vmatpush1.msra.mxu0 %v43
    %251 = vmatprep.subr.mxu0 0.0
    %252 = vmatpush1.msra.mxu0 %v44
    %253 = vmatprep.subr.mxu0 0.0
    %254 = vmatpush1.msra.mxu0 %v45
    %255 = vmatprep.subr.mxu0 0.0
    %256 = vmatpush1.msra.mxu0 %v46
    %257 = vmatprep.subr.mxu0 0.0
    %258 = vmatpush1.msra.mxu0 %v47
    %259 = vmatprep.subr.mxu0 0.0
    %260 = vmatpush1.msra.mxu0 %v48
    %261 = vmatprep.subr.mxu0 0.0
    %262 = vmatpush1.msra.mxu0 %v49
    %263 = vmatprep.subr.mxu0 0.0
    %264 = vmatpush1.msra.mxu0 %v50
    %265 = vmatprep.subr.mxu0 0.0
    %266 = vmatpush1.msra.mxu0 %v51
    %267 = vmatprep.subr.mxu0 0.0
    %268 = vmatpush1.msra.mxu0 %v52
    %269 = vmatprep.subr.mxu0 0.0
    %270 = vmatpush1.msra.mxu0 %v53
    %271 = vmatprep.subr.mxu0 0.0
    %272 = vmatpush1.msra.mxu0 %v54
    %273 = vmatprep.subr.mxu0 0.0
    %274 = vmatpush1.msra.mxu0 %v55
    %275 = vmatprep.subr.mxu0 0.0
    %276 = vmatpush1.msra.mxu0 %v56
    %277 = vmatprep.subr.mxu0 0.0
    %278 = vmatpush1.msra.mxu0 %v57
    %279 = vmatprep.mubr.f32.mxu0 %v212
    %280 = vmatmul.mubr.f32.gmra.mrb[0].mxu0 %v205
    %v281 = vpop.f32.mrb[0].mxu0
    %v282 = vadd.f32 %v185, %v281
    %v283 = vpop.f32.mrb[0].mxu0
    %284 = vdwg.mxu0
    %v285 = vld [vmem:[%s2] sm:$0x1]
    %v287 = vlaneseq
    %v288 = vshrl.u32 %v287, 7
    %v289 = vsub.s32 0, %v288
    %v290 = vrot.slane %v285, %v289
    %v292 = vadd.f32 %v282, %v290
    %vm293 = vcmp.ge.f32.partialorder %v292, 0.0
    %v294 = vmul.f32 %v292, 0.01
    %v295 = vsel %vm293, %v292, %v294
    %v296 = vld [vmem:[%s3] sm:$0xff]
    %v297 = vld [vmem:[%s3 + $0x8] sm:$0xff]
    %v298 = vld [vmem:[%s3 + $0x10] sm:$0xff]
    %v299 = vld [vmem:[%s3 + $0x18] sm:$0xff]
    %v300 = vld [vmem:[%s3 + $0x20] sm:$0xff]
    %v301 = vld [vmem:[%s3 + $0x28] sm:$0xff]
    %v302 = vld [vmem:[%s3 + $0x30] sm:$0xff]
    %v303 = vld [vmem:[%s3 + $0x38] sm:$0xff]
    %v304 = vld [vmem:[%s3 + $0x40] sm:$0xff]
    %v305 = vld [vmem:[%s3 + $0x48] sm:$0xff]
    %v306 = vld [vmem:[%s3 + $0x50] sm:$0xff]
    %v307 = vld [vmem:[%s3 + $0x58] sm:$0xff]
    %v308 = vld [vmem:[%s3 + $0x60] sm:$0xff]
    %v309 = vld [vmem:[%s3 + $0x68] sm:$0xff]
    %v310 = vld [vmem:[%s3 + $0x70] sm:$0xff]
    %v311 = vld [vmem:[%s3 + $0x78] sm:$0xff]
    %v312 = vld [vmem:[%s4] sm:$0x1]
    %v314 = vlaneseq
    %v315 = vshrl.u32 %v314, 7
    %v316 = vsub.s32 0, %v315
    %v317 = vrot.slane %v312, %v316
    %319 = vmatprep.subr.mxu0 0.0
    %320 = vmatpush1.msra.mxu0 %v296
    %321 = vmatprep.subr.mxu0 0.0
    %322 = vmatpush1.msra.mxu0 %v297
    %323 = vmatprep.subr.mxu0 0.0
    %324 = vmatpush1.msra.mxu0 %v298
    %325 = vmatprep.subr.mxu0 0.0
    %326 = vmatpush1.msra.mxu0 %v299
    %327 = vmatprep.subr.mxu0 0.0
    %328 = vmatpush1.msra.mxu0 %v300
    %329 = vmatprep.subr.mxu0 0.0
    %330 = vmatpush1.msra.mxu0 %v301
    %331 = vmatprep.subr.mxu0 0.0
    %332 = vmatpush1.msra.mxu0 %v302
    %333 = vmatprep.subr.mxu0 0.0
    %334 = vmatpush1.msra.mxu0 %v303
    %335 = vmatprep.subr.mxu0 0.0
    %336 = vmatpush1.msra.mxu0 %v304
    %337 = vmatprep.subr.mxu0 0.0
    %338 = vmatpush1.msra.mxu0 %v305
    %339 = vmatprep.subr.mxu0 0.0
    %340 = vmatpush1.msra.mxu0 %v306
    %341 = vmatprep.subr.mxu0 0.0
    %342 = vmatpush1.msra.mxu0 %v307
    %343 = vmatprep.subr.mxu0 0.0
    %344 = vmatpush1.msra.mxu0 %v308
    %345 = vmatprep.subr.mxu0 0.0
    %346 = vmatpush1.msra.mxu0 %v309
    %347 = vmatprep.subr.mxu0 0.0
    %348 = vmatpush1.msra.mxu0 %v310
    %349 = vmatprep.subr.mxu0 0.0
    %350 = vmatpush1.msra.mxu0 %v311
    %351 = vmatprep.subr.mxu0 0.0
    %352 = vmatpush1.msra.mxu0 0.0
    %353 = vmatprep.subr.mxu0 0.0
    %354 = vmatpush1.msra.mxu0 0.0
    %355 = vmatprep.subr.mxu0 0.0
    %356 = vmatpush1.msra.mxu0 0.0
    %357 = vmatprep.subr.mxu0 0.0
    %358 = vmatpush1.msra.mxu0 0.0
    %359 = vmatprep.subr.mxu0 0.0
    %360 = vmatpush1.msra.mxu0 0.0
    %361 = vmatprep.subr.mxu0 0.0
    %362 = vmatpush1.msra.mxu0 0.0
    %363 = vmatprep.subr.mxu0 0.0
    %364 = vmatpush1.msra.mxu0 0.0
    %365 = vmatprep.subr.mxu0 0.0
    %366 = vmatpush1.msra.mxu0 0.0
    %367 = vmatprep.subr.mxu0 0.0
    %368 = vmatpush1.msra.mxu0 0.0
    %369 = vmatprep.subr.mxu0 0.0
    %370 = vmatpush1.msra.mxu0 0.0
    %371 = vmatprep.subr.mxu0 0.0
    %372 = vmatpush1.msra.mxu0 0.0
    %373 = vmatprep.subr.mxu0 0.0
    %374 = vmatpush1.msra.mxu0 0.0
    %375 = vmatprep.subr.mxu0 0.0
    %376 = vmatpush1.msra.mxu0 0.0
    %377 = vmatprep.subr.mxu0 0.0
    %378 = vmatpush1.msra.mxu0 0.0
    %379 = vmatprep.subr.mxu0 0.0
    %380 = vmatpush1.msra.mxu0 0.0
    %381 = vmatprep.subr.mxu0 0.0
    %382 = vmatpush1.msra.mxu0 0.0
    %383 = vmatprep.mubr.f32.mxu0 0.0
    %384 = vmatmul.mubr.f32.gmra.mrb[0].mxu0 %v295
    %v385 = vpop.f32.mrb[0].mxu0
    %v386 = vadd.f32 %v317, %v385
    %v387 = vpop.f32.mrb[0].mxu0
    %388 = vdwg.mxu0
    %389 = vst [vmem:[#allocation2] sm:$0x3] %v386
    // Predicated region
    $region22: #{gradual_style_block_forward.7} parent=1 // pred_check
      _
    $region23: #{gradual_style_block_forward.7} parent=1 // pred_check_branch
      %391 = sbr.rel (0) target = $region25
    $region24: #{gradual_style_block_forward.7} parent=1 // pred_region
      %s393 = ssub.s32 32, 32
      %394 = vsyncadd [#allocation3], %s393
      %s396 = sshll.u32 [#allocation2], 4
      %s397 = int_to_ptr.vmem [resolvable:$true] %s396
      %399 = dma.vmem_to_hbm [thread:$0]  %s397, 32, %s5, [#allocation3]
    $region25: #{gradual_style_block_forward.7} parent=1 // pred_fallthru
      _
    // Predicated region
    $region26: #{gradual_style_block_forward.7} parent=1 // pred_check
      _
    $region27: #{gradual_style_block_forward.7} parent=1 // pred_check_branch
      %401 = sbr.rel (0) target = $region29
    $region28: #{gradual_style_block_forward.7} parent=1 // pred_region
      %402 = dma.done [#allocation3], 32
    $region29: #{gradual_style_block_forward.7} parent=1 // pred_fallthru
      _
    %403 = vsyncpa [#allocation3], 1

// kernel: gradual_style_block_forward.5
$region0: #{gradual_style_block_forward.5}
  #allocation0 [shape = 'u32[]', space=smem, size = 0x4, offset = 0x4, fixed_abs, tag = 'smem constant byte address 0x4 - core index']
  #allocation1 [shape = 'u32[144,128]{1,0:T(1,128)}', space=vmem, size = 0x12000, scoped, tag = 'internal scratch']
  #allocation2 [shape = 'f32[2,4,4,128]{3,2,1,0:T(4,128)}', space=vmem, size = 0x4000, scoped, tag = 'scratch operand']
  %s0 = inlined_call_operand.vmem [shape: f32[2,4,2,4,256], index: 0, kind: input, shape index: {}]
  %s1 = inlined_call_operand.vmem [shape: f32[3,256,128], index: 1, kind: input, shape index: {}]
  %s2 = inlined_call_operand.vmem [shape: f32[3,128,128], index: 2, kind: input, shape index: {}]
  %s3 = inlined_call_operand.vmem [shape: f32[1,128], index: 3, kind: input, shape index: {}]
  %s4 = inlined_call_operand.vmem [shape: f32[2,4,4,128], index: 4, kind: output, shape index: {}]
  %s5 = sld [smem:[#allocation0]]
  $region26: #{gradual_style_block_forward.5} parent=0
    _
  %s7 = ssub.s32 1, %s5
  %s8 = scalar_select 0, %s7, %s5
  // Predicated region
  $region2: #{gradual_style_block_forward.5} parent=0 // pred_check
    _
  $region3: #{gradual_style_block_forward.5} parent=0 // pred_check_branch
    %10 = sbr.rel (0) target = $region5
  $region4: #{gradual_style_block_forward.5} parent=0 // pred_region
    _
  $region5: #{gradual_style_block_forward.5} parent=0 // pred_fallthru
    _
  // Predicated region
  $region6: #{gradual_style_block_forward.5} parent=0 // pred_check
    _
  $region7: #{gradual_style_block_forward.5} parent=0 // pred_check_branch
    %12 = sbr.rel (0) target = $region9
  $region8: #{gradual_style_block_forward.5} parent=0 // pred_region
    _
  $region9: #{gradual_style_block_forward.5} parent=0 // pred_fallthru
    _
  // Predicated region
  $region10: #{gradual_style_block_forward.5} parent=0 // pred_check
    _
  $region11: #{gradual_style_block_forward.5} parent=0 // pred_check_branch
    %14 = sbr.rel (0) target = $region13
  $region12: #{gradual_style_block_forward.5} parent=0 // pred_region
    _
  $region13: #{gradual_style_block_forward.5} parent=0 // pred_fallthru
    _
  // Predicated region
  $region14: #{gradual_style_block_forward.5} parent=0 // pred_check
    _
  $region15: #{gradual_style_block_forward.5} parent=0 // pred_check_branch
    %16 = sbr.rel (0) target = $region17
  $region16: #{gradual_style_block_forward.5} parent=0 // pred_region
    _
  $region17: #{gradual_style_block_forward.5} parent=0 // pred_fallthru
    _
  %v17 = vld [vmem:[%s0] sm:$0xff]
  %v18 = vld [vmem:[%s0 + $0x10] sm:$0xff]
  %v19 = vld [vmem:[%s0 + $0x20] sm:$0xff]
  %v20 = vld [vmem:[%s0 + $0x30] sm:$0xff]
  %v21 = vld [vmem:[%s0 + $0x40] sm:$0xff]
  %v22 = vld [vmem:[%s0 + $0x50] sm:$0xff]
  %v23 = vld [vmem:[%s0 + $0x60] sm:$0xff]
  %v24 = vld [vmem:[%s0 + $0x70] sm:$0xff]
  %s25 = scalar_lea.vmem %s0, 8
  %v26 = vld [vmem:[%s25] sm:$0xff]
  %v27 = vld [vmem:[%s25 + $0x10] sm:$0xff]
  %v28 = vld [vmem:[%s25 + $0x20] sm:$0xff]
  %v29 = vld [vmem:[%s25 + $0x30] sm:$0xff]
  %v30 = vld [vmem:[%s25 + $0x40] sm:$0xff]
  %v31 = vld [vmem:[%s25 + $0x50] sm:$0xff]
  %v32 = vld [vmem:[%s25 + $0x60] sm:$0xff]
  %v33 = vld [vmem:[%s25 + $0x70] sm:$0xff]
  %v34 = vld [vmem:[%s1] sm:$0xff]
  %v35 = vld [vmem:[%s1 + $0x8] sm:$0xff]
  %v36 = vld [vmem:[%s1 + $0x10] sm:$0xff]
  %v37 = vld [vmem:[%s1 + $0x18] sm:$0xff]
  %v38 = vld [vmem:[%s1 + $0x20] sm:$0xff]
  %v39 = vld [vmem:[%s1 + $0x28] sm:$0xff]
  %v40 = vld [vmem:[%s1 + $0x30] sm:$0xff]
  %v41 = vld [vmem:[%s1 + $0x38] sm:$0xff]
  %v42 = vld [vmem:[%s1 + $0x40] sm:$0xff]
  %v43 = vld [vmem:[%s1 + $0x48] sm:$0xff]
  %v44 = vld [vmem:[%s1 + $0x50] sm:$0xff]
  %v45 = vld [vmem:[%s1 + $0x58] sm:$0xff]
  %v46 = vld [vmem:[%s1 + $0x60] sm:$0xff]
  %v47 = vld [vmem:[%s1 + $0x68] sm:$0xff]
  %v48 = vld [vmem:[%s1 + $0x70] sm:$0xff]
  %v49 = vld [vmem:[%s1 + $0x78] sm:$0xff]
  %v50 = vld [vmem:[%s1 + $0x80] sm:$0xff]
  %v51 = vld [vmem:[%s1 + $0x88] sm:$0xff]
  %v52 = vld [vmem:[%s1 + $0x90] sm:$0xff]
  %v53 = vld [vmem:[%s1 + $0x98] sm:$0xff]
  %v54 = vld [vmem:[%s1 + $0xa0] sm:$0xff]
  %v55 = vld [vmem:[%s1 + $0xa8] sm:$0xff]
  %v56 = vld [vmem:[%s1 + $0xb0] sm:$0xff]
  %v57 = vld [vmem:[%s1 + $0xb8] sm:$0xff]
  %v58 = vld [vmem:[%s1 + $0xc0] sm:$0xff]
  %v59 = vld [vmem:[%s1 + $0xc8] sm:$0xff]
  %v60 = vld [vmem:[%s1 + $0xd0] sm:$0xff]
  %v61 = vld [vmem:[%s1 + $0xd8] sm:$0xff]
  %v62 = vld [vmem:[%s1 + $0xe0] sm:$0xff]
  %v63 = vld [vmem:[%s1 + $0xe8] sm:$0xff]
  %v64 = vld [vmem:[%s1 + $0xf0] sm:$0xff]
  %v65 = vld [vmem:[%s1 + $0xf8] sm:$0xff]
  %v74 = vcombine.low %v17, %v18
  %v75 = vcombine.high %v17, %v18
  %v76 = vcombine.low %v19, %v20
  %v77 = vcombine.high %v19, %v20
  %v78 = vcombine.low %v21, %v22
  %v79 = vcombine.high %v21, %v22
  %v80 = vcombine.low %v23, %v24
  %v81 = vcombine.high %v23, %v24
  %90 = vmatprep.subr.mxu0 0.0
  %91 = vmatpush1.msra.mxu0 %v34
  %92 = vmatprep.subr.mxu0 0.0
  %93 = vmatpush1.msra.mxu0 %v35
  %94 = vmatprep.subr.mxu0 0.0
  %95 = vmatpush1.msra.mxu0 %v36
  %96 = vmatprep.subr.mxu0 0.0
  %97 = vmatpush1.msra.mxu0 %v37
  %98 = vmatprep.subr.mxu0 0.0
  %99 = vmatpush1.msra.mxu0 %v38
  %100 = vmatprep.subr.mxu0 0.0
  %101 = vmatpush1.msra.mxu0 %v39
  %102 = vmatprep.subr.mxu0 0.0
  %103 = vmatpush1.msra.mxu0 %v40
  %104 = vmatprep.subr.mxu0 0.0
  %105 = vmatpush1.msra.mxu0 %v41
  %106 = vmatprep.subr.mxu0 0.0
  %107 = vmatpush1.msra.mxu0 %v42
  %108 = vmatprep.subr.mxu0 0.0
  %109 = vmatpush1.msra.mxu0 %v43
  %110 = vmatprep.subr.mxu0 0.0
  %111 = vmatpush1.msra.mxu0 %v44
  %112 = vmatprep.subr.mxu0 0.0
  %113 = vmatpush1.msra.mxu0 %v45
  %114 = vmatprep.subr.mxu0 0.0
  %115 = vmatpush1.msra.mxu0 %v46
  %116 = vmatprep.subr.mxu0 0.0
  %117 = vmatpush1.msra.mxu0 %v47
  %118 = vmatprep.subr.mxu0 0.0
  %119 = vmatpush1.msra.mxu0 %v48
  %120 = vmatprep.subr.mxu0 0.0
  %121 = vmatpush1.msra.mxu0 %v49
  %122 = vmatprep.subr.mxu0 0.0
  %123 = vmatpush1.msra.mxu0 %v50
  %124 = vmatprep.subr.mxu0 0.0
  %125 = vmatpush1.msra.mxu0 %v51
  %126 = vmatprep.subr.mxu0 0.0
  %127 = vmatpush1.msra.mxu0 %v52
  %128 = vmatprep.subr.mxu0 0.0
  %129 = vmatpush1.msra.mxu0 %v53
  %130 = vmatprep.subr.mxu0 0.0
  %131 = vmatpush1.msra.mxu0 %v54
  %132 = vmatprep.subr.mxu0 0.0
  %133 = vmatpush1.msra.mxu0 %v55
  %134 = vmatprep.subr.mxu0 0.0
  %135 = vmatpush1.msra.mxu0 %v56
  %136 = vmatprep.subr.mxu0 0.0
  %137 = vmatpush1.msra.mxu0 %v57
  %138 = vmatprep.subr.mxu0 0.0
  %139 = vmatpush1.msra.mxu0 %v58
  %140 = vmatprep.subr.mxu0 0.0
  %141 = vmatpush1.msra.mxu0 %v59
  %142 = vmatprep.subr.mxu0 0.0
  %143 = vmatpush1.msra.mxu0 %v60
  %144 = vmatprep.subr.mxu0 0.0
  %145 = vmatpush1.msra.mxu0 %v61
  %146 = vmatprep.subr.mxu0 0.0
  %147 = vmatpush1.msra.mxu0 %v62
  %148 = vmatprep.subr.mxu0 0.0
  %149 = vmatpush1.msra.mxu0 %v63
  %150 = vmatprep.subr.mxu0 0.0
  %151 = vmatpush1.msra.mxu0 %v64
  %152 = vmatprep.subr.mxu0 0.0
  %153 = vmatpush1.msra.mxu0 %v65
  %154 = vmatprep.mubr.f32.mxu0 %v75
  %155 = vmatmul.mubr.f32.gmra.mrb[0].mxu0 %v74
  %v156 = vpop.f32.mrb[0].mxu0
  %v157 = vadd.f32 0.0, %v156
  %v158 = vpop.f32.mrb[0].mxu0
  %159 = vmatprep.mubr.f32.mxu0 %v77
  %160 = vmatmul.mubr.f32.gmra.mrb[0].mxu0 %v76
  %v161 = vpop.f32.mrb[0].mxu0
  %v162 = vadd.f32 0.0, %v161
  %v163 = vpop.f32.mrb[0].mxu0
  %164 = vmatprep.mubr.f32.mxu0 %v79
  %165 = vmatmul.mubr.f32.gmra.mrb[0].mxu0 %v78
  %v166 = vpop.f32.mrb[0].mxu0
  %v167 = vadd.f32 0.0, %v166
  %v168 = vpop.f32.mrb[0].mxu0
  %169 = vmatprep.mubr.f32.mxu0 %v81
  %170 = vmatmul.mubr.f32.gmra.mrb[0].mxu0 %v80
  %v171 = vpop.f32.mrb[0].mxu0
  %v172 = vadd.f32 0.0, %v171
  %v173 = vpop.f32.mrb[0].mxu0
  %174 = vdwg.mxu0
  %v179 = vcombine.high %v157, %v157
  %v180 = vcombine.high %v162, %v162
  %v181 = vcombine.high %v167, %v167
  %v182 = vcombine.high %v172, %v172
  %187 = vst [vmem:[#allocation2] sm:$0xf] %v157
  %188 = vst [vmem:[#allocation2 + $0x4] sm:$0xf] %v179
  %189 = vst [vmem:[#allocation2 + $0x8] sm:$0xf] %v162
  %190 = vst [vmem:[#allocation2 + $0xc] sm:$0xf] %v180
  %191 = vst [vmem:[#allocation2 + $0x10] sm:$0xf] %v167
  %192 = vst [vmem:[#allocation2 + $0x14] sm:$0xf] %v181
  %193 = vst [vmem:[#allocation2 + $0x18] sm:$0xf] %v172
  %194 = vst [vmem:[#allocation2 + $0x1c] sm:$0xf] %v182
  %v195 = vld [vmem:[#allocation2] sm:$0xf]
  %v196 = vld [vmem:[#allocation2 + $0x4] sm:$0xf]
  %v197 = vld [vmem:[#allocation2 + $0x8] sm:$0xf]
  %v198 = vld [vmem:[#allocation2 + $0xc] sm:$0xf]
  %v199 = vld [vmem:[#allocation2 + $0x10] sm:$0xf]
  %v200 = vld [vmem:[#allocation2 + $0x14] sm:$0xf]
  %v201 = vld [vmem:[#allocation2 + $0x18] sm:$0xf]
  %v202 = vld [vmem:[#allocation2 + $0x1c] sm:$0xf]
  %s203 = scalar_lea.vmem %s1, 256
  %v204 = vld [vmem:[%s203] sm:$0xff]
  %v205 = vld [vmem:[%s203 + $0x8] sm:$0xff]
  %v206 = vld [vmem:[%s203 + $0x10] sm:$0xff]
  %v207 = vld [vmem:[%s203 + $0x18] sm:$0xff]
  %v208 = vld [vmem:[%s203 + $0x20] sm:$0xff]
  %v209 = vld [vmem:[%s203 + $0x28] sm:$0xff]
  %v210 = vld [vmem:[%s203 + $0x30] sm:$0xff]
  %v211 = vld [vmem:[%s203 + $0x38] sm:$0xff]
  %v212 = vld [vmem:[%s203 + $0x40] sm:$0xff]
  %v213 = vld [vmem:[%s203 + $0x48] sm:$0xff]
  %v214 = vld [vmem:[%s203 + $0x50] sm:$0xff]
  %v215 = vld [vmem:[%s203 + $0x58] sm:$0xff]
  %v216 = vld [vmem:[%s203 + $0x60] sm:$0xff]
  %v217 = vld [vmem:[%s203 + $0x68] sm:$0xff]
  %v218 = vld [vmem:[%s203 + $0x70] sm:$0xff]
  %v219 = vld [vmem:[%s203 + $0x78] sm:$0xff]
  %v220 = vld [vmem:[%s203 + $0x80] sm:$0xff]
  %v221 = vld [vmem:[%s203 + $0x88] sm:$0xff]
  %v222 = vld [vmem:[%s203 + $0x90] sm:$0xff]
  %v223 = vld [vmem:[%s203 + $0x98] sm:$0xff]
  %v224 = vld [vmem:[%s203 + $0xa0] sm:$0xff]
  %v225 = vld [vmem:[%s203 + $0xa8] sm:$0xff]
  %v226 = vld [vmem:[%s203 + $0xb0] sm:$0xff]
  %v227 = vld [vmem:[%s203 + $0xb8] sm:$0xff]
  %v228 = vld [vmem:[%s203 + $0xc0] sm:$0xff]
  %v229 = vld [vmem:[%s203 + $0xc8] sm:$0xff]
  %v230 = vld [vmem:[%s203 + $0xd0] sm:$0xff]
  %v231 = vld [vmem:[%s203 + $0xd8] sm:$0xff]
  %v232 = vld [vmem:[%s203 + $0xe0] sm:$0xff]
  %v233 = vld [vmem:[%s203 + $0xe8] sm:$0xff]
  %v234 = vld [vmem:[%s203 + $0xf0] sm:$0xff]
  %v235 = vld [vmem:[%s203 + $0xf8] sm:$0xff]
  %v244 = vcombine.low %v26, %v27
  %v245 = vcombine.high %v26, %v27
  %v246 = vcombine.low %v28, %v29
  %v247 = vcombine.high %v28, %v29
  %v248 = vcombine.low %v30, %v31
  %v249 = vcombine.high %v30, %v31
  %v250 = vcombine.low %v32, %v33
  %v251 = vcombine.high %v32, %v33
  %260 = vmatprep.subr.mxu0 0.0
  %261 = vmatpush1.msra.mxu0 %v204
  %262 = vmatprep.subr.mxu0 0.0
  %263 = vmatpush1.msra.mxu0 %v205
  %264 = vmatprep.subr.mxu0 0.0
  %265 = vmatpush1.msra.mxu0 %v206
  %266 = vmatprep.subr.mxu0 0.0
  %267 = vmatpush1.msra.mxu0 %v207
  %268 = vmatprep.subr.mxu0 0.0
  %269 = vmatpush1.msra.mxu0 %v208
  %270 = vmatprep.subr.mxu0 0.0
  %271 = vmatpush1.msra.mxu0 %v209
  %272 = vmatprep.subr.mxu0 0.0
  %273 = vmatpush1.msra.mxu0 %v210
  %274 = vmatprep.subr.mxu0 0.0
  %275 = vmatpush1.msra.mxu0 %v211
  %276 = vmatprep.subr.mxu0 0.0
  %277 = vmatpush1.msra.mxu0 %v212
  %278 = vmatprep.subr.mxu0 0.0
  %279 = vmatpush1.msra.mxu0 %v213
  %280 = vmatprep.subr.mxu0 0.0
  %281 = vmatpush1.msra.mxu0 %v214
  %282 = vmatprep.subr.mxu0 0.0
  %283 = vmatpush1.msra.mxu0 %v215
  %284 = vmatprep.subr.mxu0 0.0
  %285 = vmatpush1.msra.mxu0 %v216
  %286 = vmatprep.subr.mxu0 0.0
  %287 = vmatpush1.msra.mxu0 %v217
  %288 = vmatprep.subr.mxu0 0.0
  %289 = vmatpush1.msra.mxu0 %v218
  %290 = vmatprep.subr.mxu0 0.0
  %291 = vmatpush1.msra.mxu0 %v219
  %292 = vmatprep.subr.mxu0 0.0
  %293 = vmatpush1.msra.mxu0 %v220
  %294 = vmatprep.subr.mxu0 0.0
  %295 = vmatpush1.msra.mxu0 %v221
  %296 = vmatprep.subr.mxu0 0.0
  %297 = vmatpush1.msra.mxu0 %v222
  %298 = vmatprep.subr.mxu0 0.0
  %299 = vmatpush1.msra.mxu0 %v223
  %300 = vmatprep.subr.mxu0 0.0
  %301 = vmatpush1.msra.mxu0 %v224
  %302 = vmatprep.subr.mxu0 0.0
  %303 = vmatpush1.msra.mxu0 %v225
  %304 = vmatprep.subr.mxu0 0.0
  %305 = vmatpush1.msra.mxu0 %v226
  %306 = vmatprep.subr.mxu0 0.0
  %307 = vmatpush1.msra.mxu0 %v227
  %308 = vmatprep.subr.mxu0 0.0
  %309 = vmatpush1.msra.mxu0 %v228
  %310 = vmatprep.subr.mxu0 0.0
  %311 = vmatpush1.msra.mxu0 %v229
  %312 = vmatprep.subr.mxu0 0.0
  %313 = vmatpush1.msra.mxu0 %v230
  %314 = vmatprep.subr.mxu0 0.0
  %315 = vmatpush1.msra.mxu0 %v231
  %316 = vmatprep.subr.mxu0 0.0
  %317 = vmatpush1.msra.mxu0 %v232
  %318 = vmatprep.subr.mxu0 0.0
  %319 = vmatpush1.msra.mxu0 %v233
  %320 = vmatprep.subr.mxu0 0.0
  %321 = vmatpush1.msra.mxu0 %v234
  %322 = vmatprep.subr.mxu0 0.0
  %323 = vmatpush1.msra.mxu0 %v235
  %324 = vmatprep.mubr.f32.mxu0 %v245
  %325 = vmatmul.mubr.f32.gmra.mrb[0].mxu0 %v244
  %v326 = vpop.f32.mrb[0].mxu0
  %v327 = vadd.f32 0.0, %v326
  %v328 = vpop.f32.mrb[0].mxu0
  %329 = vmatprep.mubr.f32.mxu0 %v247
  %330 = vmatmul.mubr.f32.gmra.mrb[0].mxu0 %v246
  %v331 = vpop.f32.mrb[0].mxu0
  %v332 = vadd.f32 0.0, %v331
  %v333 = vpop.f32.mrb[0].mxu0
  %334 = vmatprep.mubr.f32.mxu0 %v249
  %335 = vmatmul.mubr.f32.gmra.mrb[0].mxu0 %v248
  %v336 = vpop.f32.mrb[0].mxu0
  %v337 = vadd.f32 0.0, %v336
  %v338 = vpop.f32.mrb[0].mxu0
  %339 = vmatprep.mubr.f32.mxu0 %v251
  %340 = vmatmul.mubr.f32.gmra.mrb[0].mxu0 %v250
  %v341 = vpop.f32.mrb[0].mxu0
  %v342 = vadd.f32 0.0, %v341
  %v343 = vpop.f32.mrb[0].mxu0
  %344 = vdwg.mxu0
  %v349 = vcombine.high %v327, %v327
  %v350 = vcombine.high %v332, %v332
  %v351 = vcombine.high %v337, %v337
  %v352 = vcombine.high %v342, %v342
  %v357 = vadd.f32 %v195, %v327
  %v358 = vadd.f32 %v196, %v349
  %v359 = vadd.f32 %v197, %v332
  %v360 = vadd.f32 %v198, %v350
  %v361 = vadd.f32 %v199, %v337
  %v362 = vadd.f32 %v200, %v351
  %v363 = vadd.f32 %v201, %v342
  %v364 = vadd.f32 %v202, %v352
  %365 = vst [vmem:[#allocation2] sm:$0xf] %v357
  %366 = vst [vmem:[#allocation2 + $0x4] sm:$0xf] %v358
  %367 = vst [vmem:[#allocation2 + $0x8] sm:$0xf] %v359
  %368 = vst [vmem:[#allocation2 + $0xc] sm:$0xf] %v360
  %369 = vst [vmem:[#allocation2 + $0x10] sm:$0xf] %v361
  %370 = vst [vmem:[#allocation2 + $0x14] sm:$0xf] %v362
  %371 = vst [vmem:[#allocation2 + $0x18] sm:$0xf] %v363
  %372 = vst [vmem:[#allocation2 + $0x1c] sm:$0xf] %v364
  %s373 = scalar_lea.vmem %s1, 512
  %v374 = vld [vmem:[%s373] sm:$0xff]
  %v375 = vld [vmem:[%s373 + $0x8] sm:$0xff]
  %v376 = vld [vmem:[%s373 + $0x10] sm:$0xff]
  %v377 = vld [vmem:[%s373 + $0x18] sm:$0xff]
  %v378 = vld [vmem:[%s373 + $0x20] sm:$0xff]
  %v379 = vld [vmem:[%s373 + $0x28] sm:$0xff]
  %v380 = vld [vmem:[%s373 + $0x30] sm:$0xff]
  %v381 = vld [vmem:[%s373 + $0x38] sm:$0xff]
  %v382 = vld [vmem:[%s373 + $0x40] sm:$0xff]
  %v383 = vld [vmem:[%s373 + $0x48] sm:$0xff]
  %v384 = vld [vmem:[%s373 + $0x50] sm:$0xff]
  %v385 = vld [vmem:[%s373 + $0x58] sm:$0xff]
  %v386 = vld [vmem:[%s373 + $0x60] sm:$0xff]
  %v387 = vld [vmem:[%s373 + $0x68] sm:$0xff]
  %v388 = vld [vmem:[%s373 + $0x70] sm:$0xff]
  %v389 = vld [vmem:[%s373 + $0x78] sm:$0xff]
  %v390 = vld [vmem:[%s373 + $0x80] sm:$0xff]
  %v391 = vld [vmem:[%s373 + $0x88] sm:$0xff]
  %v392 = vld [vmem:[%s373 + $0x90] sm:$0xff]
  %v393 = vld [vmem:[%s373 + $0x98] sm:$0xff]
  %v394 = vld [vmem:[%s373 + $0xa0] sm:$0xff]
  %v395 = vld [vmem:[%s373 + $0xa8] sm:$0xff]
  %v396 = vld [vmem:[%s373 + $0xb0] sm:$0xff]
  %v397 = vld [vmem:[%s373 + $0xb8] sm:$0xff]
  %v398 = vld [vmem:[%s373 + $0xc0] sm:$0xff]
  %v399 = vld [vmem:[%s373 + $0xc8] sm:$0xff]
  %v400 = vld [vmem:[%s373 + $0xd0] sm:$0xff]
  %v401 = vld [vmem:[%s373 + $0xd8] sm:$0xff]
  %v402 = vld [vmem:[%s373 + $0xe0] sm:$0xff]
  %v403 = vld [vmem:[%s373 + $0xe8] sm:$0xff]
  %v404 = vld [vmem:[%s373 + $0xf0] sm:$0xff]
  %v405 = vld [vmem:[%s373 + $0xf8] sm:$0xff]
  %406 = vmatprep.subr.mxu0 0.0
  %407 = vmatpush1.msra.mxu0 %v374
  %408 = vmatprep.subr.mxu0 0.0
  %409 = vmatpush1.msra.mxu0 %v375
  %410 = vmatprep.subr.mxu0 0.0
  %411 = vmatpush1.msra.mxu0 %v376
  %412 = vmatprep.subr.mxu0 0.0
  %413 = vmatpush1.msra.mxu0 %v377
  %414 = vmatprep.subr.mxu0 0.0
  %415 = vmatpush1.msra.mxu0 %v378
  %416 = vmatprep.subr.mxu0 0.0
  %417 = vmatpush1.msra.mxu0 %v379
  %418 = vmatprep.subr.mxu0 0.0
  %419 = vmatpush1.msra.mxu0 %v380
  %420 = vmatprep.subr.mxu0 0.0
  %421 = vmatpush1.msra.mxu0 %v381
  %422 = vmatprep.subr.mxu0 0.0
  %423 = vmatpush1.msra.mxu0 %v382
  %424 = vmatprep.subr.mxu0 0.0
  %425 = vmatpush1.msra.mxu0 %v383
  %426 = vmatprep.subr.mxu0 0.0
  %427 = vmatpush1.msra.mxu0 %v384
  %428 = vmatprep.subr.mxu0 0.0
  %429 = vmatpush1.msra.mxu0 %v385
  %430 = vmatprep.subr.mxu0 0.0
  %431 = vmatpush1.msra.mxu0 %v386
  %432 = vmatprep.subr.mxu0 0.0
  %433 = vmatpush1.msra.mxu0 %v387
  %434 = vmatprep.subr.mxu0 0.0
  %435 = vmatpush1.msra.mxu0 %v388
  %436 = vmatprep.subr.mxu0 0.0
  %437 = vmatpush1.msra.mxu0 %v389
  %438 = vmatprep.subr.mxu0 0.0
  %439 = vmatpush1.msra.mxu0 %v390
  %440 = vmatprep.subr.mxu0 0.0
  %441 = vmatpush1.msra.mxu0 %v391
  %442 = vmatprep.subr.mxu0 0.0
  %443 = vmatpush1.msra.mxu0 %v392
  %444 = vmatprep.subr.mxu0 0.0
  %445 = vmatpush1.msra.mxu0 %v393
  %446 = vmatprep.subr.mxu0 0.0
  %447 = vmatpush1.msra.mxu0 %v394
  %448 = vmatprep.subr.mxu0 0.0
  %449 = vmatpush1.msra.mxu0 %v395
  %450 = vmatprep.subr.mxu0 0.0
  %451 = vmatpush1.msra.mxu0 %v396
  %452 = vmatprep.subr.mxu0 0.0
  %453 = vmatpush1.msra.mxu0 %v397
  %454 = vmatprep.subr.mxu0 0.0
  %455 = vmatpush1.msra.mxu0 %v398
  %456 = vmatprep.subr.mxu0 0.0
  %457 = vmatpush1.msra.mxu0 %v399
  %458 = vmatprep.subr.mxu0 0.0
  %459 = vmatpush1.msra.mxu0 %v400
  %460 = vmatprep.subr.mxu0 0.0
  %461 = vmatpush1.msra.mxu0 %v401
  %462 = vmatprep.subr.mxu0 0.0
  %463 = vmatpush1.msra.mxu0 %v402
  %464 = vmatprep.subr.mxu0 0.0
  %465 = vmatpush1.msra.mxu0 %v403
  %466 = vmatprep.subr.mxu0 0.0
  %467 = vmatpush1.msra.mxu0 %v404
  %468 = vmatprep.subr.mxu0 0.0
  %469 = vmatpush1.msra.mxu0 %v405
  %470 = vmatprep.mubr.f32.mxu0 %v245
  %471 = vmatmul.mubr.f32.gmra.mrb[0].mxu0 %v244
  %v472 = vpop.f32.mrb[0].mxu0
  %v473 = vadd.f32 0.0, %v472
  %v474 = vpop.f32.mrb[0].mxu0
  %475 = vmatprep.mubr.f32.mxu0 %v247
  %476 = vmatmul.mubr.f32.gmra.mrb[0].mxu0 %v246
  %v477 = vpop.f32.mrb[0].mxu0
  %v478 = vadd.f32 0.0, %v477
  %v479 = vpop.f32.mrb[0].mxu0
  %480 = vmatprep.mubr.f32.mxu0 %v249
  %481 = vmatmul.mubr.f32.gmra.mrb[0].mxu0 %v248
  %v482 = vpop.f32.mrb[0].mxu0
  %v483 = vadd.f32 0.0, %v482
  %v484 = vpop.f32.mrb[0].mxu0
  %485 = vmatprep.mubr.f32.mxu0 %v251
  %486 = vmatmul.mubr.f32.gmra.mrb[0].mxu0 %v250
  %v487 = vpop.f32.mrb[0].mxu0
  %v488 = vadd.f32 0.0, %v487
  %v489 = vpop.f32.mrb[0].mxu0
  %490 = vdwg.mxu0
  %v493 = vcombine.high %v473, %v473
  %v494 = vcombine.high %v483, %v483
  %v497 = vld [vmem:[#allocation2] sm:$0xf]
  %v498 = vld [vmem:[#allocation2 + $0x4] sm:$0xf]
  %v499 = vld [vmem:[#allocation2 + $0x8] sm:$0xf]
  %v500 = vld [vmem:[#allocation2 + $0xc] sm:$0xf]
  %v501 = vld [vmem:[#allocation2 + $0x10] sm:$0xf]
  %v502 = vld [vmem:[#allocation2 + $0x14] sm:$0xf]
  %v503 = vld [vmem:[#allocation2 + $0x18] sm:$0xf]
  %v504 = vld [vmem:[#allocation2 + $0x1c] sm:$0xf]
  %v505 = vadd.f32 %v497, 0.0
  %v506 = vadd.f32 %v498, %v473
  %v507 = vadd.f32 %v499, %v493
  %v508 = vadd.f32 %v500, %v478
  %v509 = vadd.f32 %v501, 0.0
  %v510 = vadd.f32 %v502, %v483
  %v511 = vadd.f32 %v503, %v494
  %v512 = vadd.f32 %v504, %v488
  %513 = vst [vmem:[#allocation2] sm:$0xf] %v505
  %514 = vst [vmem:[#allocation2 + $0x4] sm:$0xf] %v506
  %515 = vst [vmem:[#allocation2 + $0x8] sm:$0xf] %v507
  %516 = vst [vmem:[#allocation2 + $0xc] sm:$0xf] %v508
  %517 = vst [vmem:[#allocation2 + $0x10] sm:$0xf] %v509
  %518 = vst [vmem:[#allocation2 + $0x14] sm:$0xf] %v510
  %519 = vst [vmem:[#allocation2 + $0x18] sm:$0xf] %v511
  %520 = vst [vmem:[#allocation2 + $0x1c] sm:$0xf] %v512
  %v521 = vld [vmem:[%s2] sm:$0xff]
  %v522 = vld [vmem:[%s2 + $0x8] sm:$0xff]
  %v523 = vld [vmem:[%s2 + $0x10] sm:$0xff]
  %v524 = vld [vmem:[%s2 + $0x18] sm:$0xff]
  %v525 = vld [vmem:[%s2 + $0x20] sm:$0xff]
  %v526 = vld [vmem:[%s2 + $0x28] sm:$0xff]
  %v527 = vld [vmem:[%s2 + $0x30] sm:$0xff]
  %v528 = vld [vmem:[%s2 + $0x38] sm:$0xff]
  %v529 = vld [vmem:[%s2 + $0x40] sm:$0xff]
  %v530 = vld [vmem:[%s2 + $0x48] sm:$0xff]
  %v531 = vld [vmem:[%s2 + $0x50] sm:$0xff]
  %v532 = vld [vmem:[%s2 + $0x58] sm:$0xff]
  %v533 = vld [vmem:[%s2 + $0x60] sm:$0xff]
  %v534 = vld [vmem:[%s2 + $0x68] sm:$0xff]
  %v535 = vld [vmem:[%s2 + $0x70] sm:$0xff]
  %v536 = vld [vmem:[%s2 + $0x78] sm:$0xff]
  %s537 = scalar_lea.vmem %s2, 128
  %v538 = vld [vmem:[%s537] sm:$0xff]
  %v539 = vld [vmem:[%s537 + $0x8] sm:$0xff]
  %v540 = vld [vmem:[%s537 + $0x10] sm:$0xff]
  %v541 = vld [vmem:[%s537 + $0x18] sm:$0xff]
  %v542 = vld [vmem:[%s537 + $0x20] sm:$0xff]
  %v543 = vld [vmem:[%s537 + $0x28] sm:$0xff]
  %v544 = vld [vmem:[%s537 + $0x30] sm:$0xff]
  %v545 = vld [vmem:[%s537 + $0x38] sm:$0xff]
  %v546 = vld [vmem:[%s537 + $0x40] sm:$0xff]
  %v547 = vld [vmem:[%s537 + $0x48] sm:$0xff]
  %v548 = vld [vmem:[%s537 + $0x50] sm:$0xff]
  %v549 = vld [vmem:[%s537 + $0x58] sm:$0xff]
  %v550 = vld [vmem:[%s537 + $0x60] sm:$0xff]
  %v551 = vld [vmem:[%s537 + $0x68] sm:$0xff]
  %v552 = vld [vmem:[%s537 + $0x70] sm:$0xff]
  %v553 = vld [vmem:[%s537 + $0x78] sm:$0xff]
  %554 = vmatprep.subr.mxu0 0.0
  %555 = vmatpush1.msra.mxu0 %v538
  %556 = vmatprep.subr.mxu0 0.0
  %557 = vmatpush1.msra.mxu0 %v539
  %558 = vmatprep.subr.mxu0 0.0
  %559 = vmatpush1.msra.mxu0 %v540
  %560 = vmatprep.subr.mxu0 0.0
  %561 = vmatpush1.msra.mxu0 %v541
  %562 = vmatprep.subr.mxu0 0.0
  %563 = vmatpush1.msra.mxu0 %v542
  %564 = vmatprep.subr.mxu0 0.0
  %565 = vmatpush1.msra.mxu0 %v543
  %566 = vmatprep.subr.mxu0 0.0
  %567 = vmatpush1.msra.mxu0 %v544
  %568 = vmatprep.subr.mxu0 0.0
  %569 = vmatpush1.msra.mxu0 %v545
  %570 = vmatprep.subr.mxu0 0.0
  %571 = vmatpush1.msra.mxu0 %v546
  %572 = vmatprep.subr.mxu0 0.0
  %573 = vmatpush1.msra.mxu0 %v547
  %574 = vmatprep.subr.mxu0 0.0
  %575 = vmatpush1.msra.mxu0 %v548
  %576 = vmatprep.subr.mxu0 0.0
  %577 = vmatpush1.msra.mxu0 %v549
  %578 = vmatprep.subr.mxu0 0.0
  %579 = vmatpush1.msra.mxu0 %v550
  %580 = vmatprep.subr.mxu0 0.0
  %581 = vmatpush1.msra.mxu0 %v551
  %582 = vmatprep.subr.mxu0 0.0
  %583 = vmatpush1.msra.mxu0 %v552
  %584 = vmatprep.subr.mxu0 0.0
  %585 = vmatpush1.msra.mxu0 %v553
  %586 = vmatprep.subr.mxu0 0.0
  %587 = vmatpush1.msra.mxu0 0.0
  %588 = vmatprep.subr.mxu0 0.0
  %589 = vmatpush1.msra.mxu0 0.0
  %590 = vmatprep.subr.mxu0 0.0
  %591 = vmatpush1.msra.mxu0 0.0
  %592 = vmatprep.subr.mxu0 0.0
  %593 = vmatpush1.msra.mxu0 0.0
  %594 = vmatprep.subr.mxu0 0.0
  %595 = vmatpush1.msra.mxu0 0.0
  %596 = vmatprep.subr.mxu0 0.0
  %597 = vmatpush1.msra.mxu0 0.0
  %598 = vmatprep.subr.mxu0 0.0
  %599 = vmatpush1.msra.mxu0 0.0
  %600 = vmatprep.subr.mxu0 0.0
  %601 = vmatpush1.msra.mxu0 0.0
  %602 = vmatprep.subr.mxu0 0.0
  %603 = vmatpush1.msra.mxu0 0.0
  %604 = vmatprep.subr.mxu0 0.0
  %605 = vmatpush1.msra.mxu0 0.0
  %606 = vmatprep.subr.mxu0 0.0
  %607 = vmatpush1.msra.mxu0 0.0
  %608 = vmatprep.subr.mxu0 0.0
  %609 = vmatpush1.msra.mxu0 0.0
  %610 = vmatprep.subr.mxu0 0.0
  %611 = vmatpush1.msra.mxu0 0.0
  %612 = vmatprep.subr.mxu0 0.0
  %613 = vmatpush1.msra.mxu0 0.0
  %614 = vmatprep.subr.mxu0 0.0
  %615 = vmatpush1.msra.mxu0 0.0
  %616 = vmatprep.subr.mxu0 0.0
  %617 = vmatpush1.msra.mxu0 0.0
  %618 = vmatprep.mubr.f32.mxu0 0.0
  %619 = vmatmul.mubr.f32.gmra.mrb[0].mxu0 %v245
  %v620 = vpop.f32.mrb[0].mxu0
  %v621 = vadd.f32 0.0, %v620
  %v622 = vpop.f32.mrb[0].mxu0
  %623 = vmatprep.mubr.f32.mxu0 0.0
  %624 = vmatmul.mubr.f32.gmra.mrb[0].mxu0 %v247
  %v625 = vpop.f32.mrb[0].mxu0
  %v626 = vadd.f32 0.0, %v625
  %v627 = vpop.f32.mrb[0].mxu0
  %628 = vmatprep.mubr.f32.mxu0 0.0
  %629 = vmatmul.mubr.f32.gmra.mrb[0].mxu0 %v249
  %v630 = vpop.f32.mrb[0].mxu0
  %v631 = vadd.f32 0.0, %v630
  %v632 = vpop.f32.mrb[0].mxu0
  %633 = vmatprep.mubr.f32.mxu0 0.0
  %634 = vmatmul.mubr.f32.gmra.mrb[0].mxu0 %v251
  %v635 = vpop.f32.mrb[0].mxu0
  %v636 = vadd.f32 0.0, %v635
  %v637 = vpop.f32.mrb[0].mxu0
  %638 = vdwg.mxu0
  %639 = vmatprep.subr.mxu0 0.0
  %640 = vmatpush1.msra.mxu0 %v521
  %641 = vmatprep.subr.mxu0 0.0
  %642 = vmatpush1.msra.mxu0 %v522
  %643 = vmatprep.subr.mxu0 0.0
  %644 = vmatpush1.msra.mxu0 %v523
  %645 = vmatprep.subr.mxu0 0.0
  %646 = vmatpush1.msra.mxu0 %v524
  %647 = vmatprep.subr.mxu0 0.0
  %648 = vmatpush1.msra.mxu0 %v525
  %649 = vmatprep.subr.mxu0 0.0
  %650 = vmatpush1.msra.mxu0 %v526
  %651 = vmatprep.subr.mxu0 0.0
  %652 = vmatpush1.msra.mxu0 %v527
  %653 = vmatprep.subr.mxu0 0.0
  %654 = vmatpush1.msra.mxu0 %v528
  %655 = vmatprep.subr.mxu0 0.0
  %656 = vmatpush1.msra.mxu0 %v529
  %657 = vmatprep.subr.mxu0 0.0
  %658 = vmatpush1.msra.mxu0 %v530
  %659 = vmatprep.subr.mxu0 0.0
  %660 = vmatpush1.msra.mxu0 %v531
  %661 = vmatprep.subr.mxu0 0.0
  %662 = vmatpush1.msra.mxu0 %v532
  %663 = vmatprep.subr.mxu0 0.0
  %664 = vmatpush1.msra.mxu0 %v533
  %665 = vmatprep.subr.mxu0 0.0
  %666 = vmatpush1.msra.mxu0 %v534
  %667 = vmatprep.subr.mxu0 0.0
  %668 = vmatpush1.msra.mxu0 %v535
  %669 = vmatprep.subr.mxu0 0.0
  %670 = vmatpush1.msra.mxu0 %v536
  %671 = vmatprep.subr.mxu0 0.0
  %672 = vmatpush1.msra.mxu0 0.0
  %673 = vmatprep.subr.mxu0 0.0
  %674 = vmatpush1.msra.mxu0 0.0
  %675 = vmatprep.subr.mxu0 0.0
  %676 = vmatpush1.msra.mxu0 0.0
  %677 = vmatprep.subr.mxu0 0.0
  %678 = vmatpush1.msra.mxu0 0.0
  %679 = vmatprep.subr.mxu0 0.0
  %680 = vmatpush1.msra.mxu0 0.0
  %681 = vmatprep.subr.mxu0 0.0
  %682 = vmatpush1.msra.mxu0 0.0
  %683 = vmatprep.subr.mxu0 0.0
  %684 = vmatpush1.msra.mxu0 0.0
  %685 = vmatprep.subr.mxu0 0.0
  %686 = vmatpush1.msra.mxu0 0.0
  %687 = vmatprep.subr.mxu0 0.0
  %688 = vmatpush1.msra.mxu0 0.0
  %689 = vmatprep.subr.mxu0 0.0
  %690 = vmatpush1.msra.mxu0 0.0
  %691 = vmatprep.subr.mxu0 0.0
  %692 = vmatpush1.msra.mxu0 0.0
  %693 = vmatprep.subr.mxu0 0.0
  %694 = vmatpush1.msra.mxu0 0.0
  %695 = vmatprep.subr.mxu0 0.0
  %696 = vmatpush1.msra.mxu0 0.0
  %697 = vmatprep.subr.mxu0 0.0
  %698 = vmatpush1.msra.mxu0 0.0
  %699 = vmatprep.subr.mxu0 0.0
  %700 = vmatpush1.msra.mxu0 0.0
  %701 = vmatprep.subr.mxu0 0.0
  %702 = vmatpush1.msra.mxu0 0.0
  %703 = vmatprep.mubr.f32.mxu0 0.0
  %704 = vmatmul.mubr.f32.gmra.mrb[0].mxu0 %v75
  %v705 = vpop.f32.mrb[0].mxu0
  %v706 = vadd.f32 %v621, %v705
  %v707 = vpop.f32.mrb[0].mxu0
  %708 = vmatprep.mubr.f32.mxu0 0.0
  %709 = vmatmul.mubr.f32.gmra.mrb[0].mxu0 %v77
  %v710 = vpop.f32.mrb[0].mxu0
  %v711 = vadd.f32 %v626, %v710
  %v712 = vpop.f32.mrb[0].mxu0
  %713 = vmatprep.mubr.f32.mxu0 0.0
  %714 = vmatmul.mubr.f32.gmra.mrb[0].mxu0 %v79
  %v715 = vpop.f32.mrb[0].mxu0
  %v716 = vadd.f32 %v631, %v715
  %v717 = vpop.f32.mrb[0].mxu0
  %718 = vmatprep.mubr.f32.mxu0 0.0
  %719 = vmatmul.mubr.f32.gmra.mrb[0].mxu0 %v81
  %v720 = vpop.f32.mrb[0].mxu0
  %v721 = vadd.f32 %v636, %v720
  %v722 = vpop.f32.mrb[0].mxu0
  %723 = vdwg.mxu0
  %v728 = vcombine.high %v706, %v706
  %v729 = vcombine.high %v711, %v711
  %v730 = vcombine.high %v716, %v716
  %v731 = vcombine.high %v721, %v721
  %s736 = scalar_lea.vmem %s2, 256
  %v737 = vld [vmem:[%s736] sm:$0xff]
  %v738 = vld [vmem:[%s736 + $0x8] sm:$0xff]
  %v739 = vld [vmem:[%s736 + $0x10] sm:$0xff]
  %v740 = vld [vmem:[%s736 + $0x18] sm:$0xff]
  %v741 = vld [vmem:[%s736 + $0x20] sm:$0xff]
  %v742 = vld [vmem:[%s736 + $0x28] sm:$0xff]
  %v743 = vld [vmem:[%s736 + $0x30] sm:$0xff]
  %v744 = vld [vmem:[%s736 + $0x38] sm:$0xff]
  %v745 = vld [vmem:[%s736 + $0x40] sm:$0xff]
  %v746 = vld [vmem:[%s736 + $0x48] sm:$0xff]
  %v747 = vld [vmem:[%s736 + $0x50] sm:$0xff]
  %v748 = vld [vmem:[%s736 + $0x58] sm:$0xff]
  %v749 = vld [vmem:[%s736 + $0x60] sm:$0xff]
  %v750 = vld [vmem:[%s736 + $0x68] sm:$0xff]
  %v751 = vld [vmem:[%s736 + $0x70] sm:$0xff]
  %v752 = vld [vmem:[%s736 + $0x78] sm:$0xff]
  %753 = vmatprep.subr.mxu0 0.0
  %754 = vmatpush1.msra.mxu0 %v737
  %755 = vmatprep.subr.mxu0 0.0
  %756 = vmatpush1.msra.mxu0 %v738
  %757 = vmatprep.subr.mxu0 0.0
  %758 = vmatpush1.msra.mxu0 %v739
  %759 = vmatprep.subr.mxu0 0.0
  %760 = vmatpush1.msra.mxu0 %v740
  %761 = vmatprep.subr.mxu0 0.0
  %762 = vmatpush1.msra.mxu0 %v741
  %763 = vmatprep.subr.mxu0 0.0
  %764 = vmatpush1.msra.mxu0 %v742
  %765 = vmatprep.subr.mxu0 0.0
  %766 = vmatpush1.msra.mxu0 %v743
  %767 = vmatprep.subr.mxu0 0.0
  %768 = vmatpush1.msra.mxu0 %v744
  %769 = vmatprep.subr.mxu0 0.0
  %770 = vmatpush1.msra.mxu0 %v745
  %771 = vmatprep.subr.mxu0 0.0
  %772 = vmatpush1.msra.mxu0 %v746
  %773 = vmatprep.subr.mxu0 0.0
  %774 = vmatpush1.msra.mxu0 %v747
  %775 = vmatprep.subr.mxu0 0.0
  %776 = vmatpush1.msra.mxu0 %v748
  %777 = vmatprep.subr.mxu0 0.0
  %778 = vmatpush1.msra.mxu0 %v749
  %779 = vmatprep.subr.mxu0 0.0
  %780 = vmatpush1.msra.mxu0 %v750
  %781 = vmatprep.subr.mxu0 0.0
  %782 = vmatpush1.msra.mxu0 %v751
  %783 = vmatprep.subr.mxu0 0.0
  %784 = vmatpush1.msra.mxu0 %v752
  %785 = vmatprep.subr.mxu0 0.0
  %786 = vmatpush1.msra.mxu0 0.0
  %787 = vmatprep.subr.mxu0 0.0
  %788 = vmatpush1.msra.mxu0 0.0
  %789 = vmatprep.subr.mxu0 0.0
  %790 = vmatpush1.msra.mxu0 0.0
  %791 = vmatprep.subr.mxu0 0.0
  %792 = vmatpush1.msra.mxu0 0.0
  %793 = vmatprep.subr.mxu0 0.0
  %794 = vmatpush1.msra.mxu0 0.0
  %795 = vmatprep.subr.mxu0 0.0
  %796 = vmatpush1.msra.mxu0 0.0
  %797 = vmatprep.subr.mxu0 0.0
  %798 = vmatpush1.msra.mxu0 0.0
  %799 = vmatprep.subr.mxu0 0.0
  %800 = vmatpush1.msra.mxu0 0.0
  %801 = vmatprep.subr.mxu0 0.0
  %802 = vmatpush1.msra.mxu0 0.0
  %803 = vmatprep.subr.mxu0 0.0
  %804 = vmatpush1.msra.mxu0 0.0
  %805 = vmatprep.subr.mxu0 0.0
  %806 = vmatpush1.msra.mxu0 0.0
  %807 = vmatprep.subr.mxu0 0.0
  %808 = vmatpush1.msra.mxu0 0.0
  %809 = vmatprep.subr.mxu0 0.0
  %810 = vmatpush1.msra.mxu0 0.0
  %811 = vmatprep.subr.mxu0 0.0
  %812 = vmatpush1.msra.mxu0 0.0
  %813 = vmatprep.subr.mxu0 0.0
  %814 = vmatpush1.msra.mxu0 0.0
  %815 = vmatprep.subr.mxu0 0.0
  %816 = vmatpush1.msra.mxu0 0.0
  %817 = vmatprep.mubr.f32.mxu0 0.0
  %818 = vmatmul.mubr.f32.gmra.mrb[0].mxu0 %v245
  %v819 = vpop.f32.mrb[0].mxu0
  %v820 = vadd.f32 0.0, %v819
  %v821 = vpop.f32.mrb[0].mxu0
  %822 = vmatprep.mubr.f32.mxu0 0.0
  %823 = vmatmul.mubr.f32.gmra.mrb[0].mxu0 %v247
  %v824 = vpop.f32.mrb[0].mxu0
  %v825 = vadd.f32 0.0, %v824
  %v826 = vpop.f32.mrb[0].mxu0
  %827 = vmatprep.mubr.f32.mxu0 0.0
  %828 = vmatmul.mubr.f32.gmra.mrb[0].mxu0 %v249
  %v829 = vpop.f32.mrb[0].mxu0
  %v830 = vadd.f32 0.0, %v829
  %v831 = vpop.f32.mrb[0].mxu0
  %832 = vmatprep.mubr.f32.mxu0 0.0
  %833 = vmatmul.mubr.f32.gmra.mrb[0].mxu0 %v251
  %v834 = vpop.f32.mrb[0].mxu0
  %v835 = vadd.f32 0.0, %v834
  %v836 = vpop.f32.mrb[0].mxu0
  %837 = vdwg.mxu0
  %v840 = vcombine.high %v820, %v820
  %v841 = vcombine.high %v830, %v830
  %v844 = vadd.f32 %v706, 0.0
  %v845 = vadd.f32 %v728, %v820
  %v846 = vadd.f32 %v711, %v840
  %v847 = vadd.f32 %v729, %v825
  %v848 = vadd.f32 %v716, 0.0
  %v849 = vadd.f32 %v730, %v830
  %v850 = vadd.f32 %v721, %v841
  %v851 = vadd.f32 %v731, %v835
  %v852 = vld [vmem:[#allocation2] sm:$0xf]
  %v853 = vld [vmem:[#allocation2 + $0x4] sm:$0xf]
  %v854 = vld [vmem:[#allocation2 + $0x8] sm:$0xf]
  %v855 = vld [vmem:[#allocation2 + $0xc] sm:$0xf]
  %v856 = vld [vmem:[#allocation2 + $0x10] sm:$0xf]
  %v857 = vld [vmem:[#allocation2 + $0x14] sm:$0xf]
  %v858 = vld [vmem:[#allocation2 + $0x18] sm:$0xf]
  %v859 = vld [vmem:[#allocation2 + $0x1c] sm:$0xf]
  %v868 = vrot.slane %v844, 7
  %v869 = vrot.slane %v845, 7
  %v870 = vrot.slane %v846, 7
  %v871 = vrot.slane %v847, 7
  %v872 = vrot.slane %v848, 7
  %v873 = vrot.slane %v849, 7
  %v874 = vrot.slane %v850, 7
  %v875 = vrot.slane %v851, 7
  %vm884 = vcmask 1040384
  %v885 = vsel %vm884, 0.0, %v868
  %v886 = vsel %vm884, 0.0, %v869
  %v887 = vsel %vm884, 0.0, %v870
  %v888 = vsel %vm884, 0.0, %v871
  %v889 = vsel %vm884, 0.0, %v872
  %v890 = vsel %vm884, 0.0, %v873
  %v891 = vsel %vm884, 0.0, %v874
  %v892 = vsel %vm884, 0.0, %v875
  %v893 = vadd.f32 %v852, %v885
  %v894 = vadd.f32 %v853, %v886
  %v895 = vadd.f32 %v854, %v887
  %v896 = vadd.f32 %v855, %v888
  %v897 = vadd.f32 %v856, %v889
  %v898 = vadd.f32 %v857, %v890
  %v899 = vadd.f32 %v858, %v891
  %v900 = vadd.f32 %v859, %v892
  %901 = vst [vmem:[#allocation2] sm:$0xf] %v893
  %902 = vst [vmem:[#allocation2 + $0x4] sm:$0xf] %v894
  %903 = vst [vmem:[#allocation2 + $0x8] sm:$0xf] %v895
  %904 = vst [vmem:[#allocation2 + $0xc] sm:$0xf] %v896
  %905 = vst [vmem:[#allocation2 + $0x10] sm:$0xf] %v897
  %906 = vst [vmem:[#allocation2 + $0x14] sm:$0xf] %v898
  %907 = vst [vmem:[#allocation2 + $0x18] sm:$0xf] %v899
  %908 = vst [vmem:[#allocation2 + $0x1c] sm:$0xf] %v900
  %v909 = vld [vmem:[#allocation2] sm:$0xf]
  %v910 = vld [vmem:[#allocation2 + $0x4] sm:$0xf]
  %v911 = vld [vmem:[#allocation2 + $0x8] sm:$0xf]
  %v912 = vld [vmem:[#allocation2 + $0xc] sm:$0xf]
  %v913 = vld [vmem:[#allocation2 + $0x10] sm:$0xf]
  %v914 = vld [vmem:[#allocation2 + $0x14] sm:$0xf]
  %v915 = vld [vmem:[#allocation2 + $0x18] sm:$0xf]
  %v916 = vld [vmem:[#allocation2 + $0x1c] sm:$0xf]
  %v917 = vld [vmem:[%s3] sm:$0x1]
  %v919 = vlaneseq
  %v920 = vshrl.u32 %v919, 7
  %v921 = vsub.s32 0, %v920
  %v922 = vrot.slane %v917, %v921
  %v924 = vadd.f32 %v909, %v922
  %v925 = vadd.f32 %v910, %v922
  %v926 = vadd.f32 %v911, %v922
  %v927 = vadd.f32 %v912, %v922
  %v928 = vadd.f32 %v913, %v922
  %v929 = vadd.f32 %v914, %v922
  %v930 = vadd.f32 %v915, %v922
  %v931 = vadd.f32 %v916, %v922
  %vm932 = vcmp.ge.f32.partialorder %v924, 0.0
  %vm933 = vcmp.ge.f32.partialorder %v925, 0.0
  %vm934 = vcmp.ge.f32.partialorder %v926, 0.0
  %vm935 = vcmp.ge.f32.partialorder %v927, 0.0
  %vm936 = vcmp.ge.f32.partialorder %v928, 0.0
  %vm937 = vcmp.ge.f32.partialorder %v929, 0.0
  %vm938 = vcmp.ge.f32.partialorder %v930, 0.0
  %vm939 = vcmp.ge.f32.partialorder %v931, 0.0
  %v940 = vmul.f32 %v924, 0.01
  %v941 = vmul.f32 %v925, 0.01
  %v942 = vmul.f32 %v926, 0.01
  %v943 = vmul.f32 %v927, 0.01
  %v944 = vmul.f32 %v928, 0.01
  %v945 = vmul.f32 %v929, 0.01
  %v946 = vmul.f32 %v930, 0.01
  %v947 = vmul.f32 %v931, 0.01
  %v948 = vsel %vm932, %v924, %v940
  %v949 = vsel %vm933, %v925, %v941
  %v950 = vsel %vm934, %v926, %v942
  %v951 = vsel %vm935, %v927, %v943
  %v952 = vsel %vm936, %v928, %v944
  %v953 = vsel %vm937, %v929, %v945
  %v954 = vsel %vm938, %v930, %v946
  %v955 = vsel %vm939, %v931, %v947
  %956 = vst [vmem:[%s4] sm:$0xf] %v948
  %957 = vst [vmem:[%s4 + $0x4] sm:$0xf] %v949
  %958 = vst [vmem:[%s4 + $0x8] sm:$0xf] %v950
  %959 = vst [vmem:[%s4 + $0xc] sm:$0xf] %v951
  %960 = vst [vmem:[%s4 + $0x10] sm:$0xf] %v952
  %961 = vst [vmem:[%s4 + $0x14] sm:$0xf] %v953
  %962 = vst [vmem:[%s4 + $0x18] sm:$0xf] %v954
  %963 = vst [vmem:[%s4 + $0x1c] sm:$0xf] %v955
  // Predicated region
  $region18: #{gradual_style_block_forward.5} parent=0 // pred_check
    _
  $region19: #{gradual_style_block_forward.5} parent=0 // pred_check_branch
    %965 = sbr.rel (0) target = $region21
  $region20: #{gradual_style_block_forward.5} parent=0 // pred_region
    _
  $region21: #{gradual_style_block_forward.5} parent=0 // pred_fallthru
    _
  // Predicated region
  $region22: #{gradual_style_block_forward.5} parent=0 // pred_check
    _
  $region23: #{gradual_style_block_forward.5} parent=0 // pred_check_branch
    %967 = sbr.rel (0) target = $region25
  $region24: #{gradual_style_block_forward.5} parent=0 // pred_region
    _
  $region25: #{gradual_style_block_forward.5} parent=0 // pred_fallthru
    _

// kernel: gradual_style_block_forward.6
$region0: #{gradual_style_block_forward.6}
  #allocation0 [shape = 'u32[]', space=smem, size = 0x4, offset = 0x4, fixed_abs, tag = 'smem constant byte address 0x4 - core index']
  #allocation1 [shape = 'u32[144,128]{1,0:T(1,128)}', space=vmem, size = 0x12000, scoped, tag = 'internal scratch']
  #allocation2 [shape = 'f32[2,2,2,128]{3,2,1,0:T(2,128)}', space=vmem, size = 0x1000, scoped, tag = 'scratch operand']
  %s0 = inlined_call_operand.vmem [shape: f32[2,2,2,2,256], index: 0, kind: input, shape index: {}]
  %s1 = inlined_call_operand.vmem [shape: f32[3,256,128], index: 1, kind: input, shape index: {}]
  %s2 = inlined_call_operand.vmem [shape: f32[3,128,128], index: 2, kind: input, shape index: {}]
  %s3 = inlined_call_operand.vmem [shape: f32[1,128], index: 3, kind: input, shape index: {}]
  %s4 = inlined_call_operand.vmem [shape: f32[2,2,2,128], index: 4, kind: output, shape index: {}]
  %s5 = sld [smem:[#allocation0]]
  $region26: #{gradual_style_block_forward.6} parent=0
    _
  %s7 = ssub.s32 1, %s5
  %s8 = scalar_select 0, %s7, %s5
  // Predicated region
  $region2: #{gradual_style_block_forward.6} parent=0 // pred_check
    _
  $region3: #{gradual_style_block_forward.6} parent=0 // pred_check_branch
    %10 = sbr.rel (0) target = $region5
  $region4: #{gradual_style_block_forward.6} parent=0 // pred_region
    _
  $region5: #{gradual_style_block_forward.6} parent=0 // pred_fallthru
    _
  // Predicated region
  $region6: #{gradual_style_block_forward.6} parent=0 // pred_check
    _
  $region7: #{gradual_style_block_forward.6} parent=0 // pred_check_branch
    %12 = sbr.rel (0) target = $region9
  $region8: #{gradual_style_block_forward.6} parent=0 // pred_region
    _
  $region9: #{gradual_style_block_forward.6} parent=0 // pred_fallthru
    _
  // Predicated region
  $region10: #{gradual_style_block_forward.6} parent=0 // pred_check
    _
  $region11: #{gradual_style_block_forward.6} parent=0 // pred_check_branch
    %14 = sbr.rel (0) target = $region13
  $region12: #{gradual_style_block_forward.6} parent=0 // pred_region
    _
  $region13: #{gradual_style_block_forward.6} parent=0 // pred_fallthru
    _
  // Predicated region
  $region14: #{gradual_style_block_forward.6} parent=0 // pred_check
    _
  $region15: #{gradual_style_block_forward.6} parent=0 // pred_check_branch
    %16 = sbr.rel (0) target = $region17
  $region16: #{gradual_style_block_forward.6} parent=0 // pred_region
    _
  $region17: #{gradual_style_block_forward.6} parent=0 // pred_fallthru
    _
  %v17 = vld [vmem:[%s0] sm:$0xf]
  %v18 = vld [vmem:[%s0 + $0x8] sm:$0xf]
  %v19 = vld [vmem:[%s0 + $0x10] sm:$0xf]
  %v20 = vld [vmem:[%s0 + $0x18] sm:$0xf]
  %s21 = scalar_lea.vmem %s0, 4
  %v22 = vld [vmem:[%s21] sm:$0xf]
  %v23 = vld [vmem:[%s21 + $0x8] sm:$0xf]
  %v24 = vld [vmem:[%s21 + $0x10] sm:$0xf]
  %v25 = vld [vmem:[%s21 + $0x18] sm:$0xf]
  %v26 = vld [vmem:[%s1] sm:$0xff]
  %v27 = vld [vmem:[%s1 + $0x8] sm:$0xff]
  %v28 = vld [vmem:[%s1 + $0x10] sm:$0xff]
  %v29 = vld [vmem:[%s1 + $0x18] sm:$0xff]
  %v30 = vld [vmem:[%s1 + $0x20] sm:$0xff]
  %v31 = vld [vmem:[%s1 + $0x28] sm:$0xff]
  %v32 = vld [vmem:[%s1 + $0x30] sm:$0xff]
  %v33 = vld [vmem:[%s1 + $0x38] sm:$0xff]
  %v34 = vld [vmem:[%s1 + $0x40] sm:$0xff]
  %v35 = vld [vmem:[%s1 + $0x48] sm:$0xff]
  %v36 = vld [vmem:[%s1 + $0x50] sm:$0xff]
  %v37 = vld [vmem:[%s1 + $0x58] sm:$0xff]
  %v38 = vld [vmem:[%s1 + $0x60] sm:$0xff]
  %v39 = vld [vmem:[%s1 + $0x68] sm:$0xff]
  %v40 = vld [vmem:[%s1 + $0x70] sm:$0xff]
  %v41 = vld [vmem:[%s1 + $0x78] sm:$0xff]
  %v42 = vld [vmem:[%s1 + $0x80] sm:$0xff]
  %v43 = vld [vmem:[%s1 + $0x88] sm:$0xff]
  %v44 = vld [vmem:[%s1 + $0x90] sm:$0xff]
  %v45 = vld [vmem:[%s1 + $0x98] sm:$0xff]
  %v46 = vld [vmem:[%s1 + $0xa0] sm:$0xff]
  %v47 = vld [vmem:[%s1 + $0xa8] sm:$0xff]
  %v48 = vld [vmem:[%s1 + $0xb0] sm:$0xff]
  %v49 = vld [vmem:[%s1 + $0xb8] sm:$0xff]
  %v50 = vld [vmem:[%s1 + $0xc0] sm:$0xff]
  %v51 = vld [vmem:[%s1 + $0xc8] sm:$0xff]
  %v52 = vld [vmem:[%s1 + $0xd0] sm:$0xff]
  %v53 = vld [vmem:[%s1 + $0xd8] sm:$0xff]
  %v54 = vld [vmem:[%s1 + $0xe0] sm:$0xff]
  %v55 = vld [vmem:[%s1 + $0xe8] sm:$0xff]
  %v56 = vld [vmem:[%s1 + $0xf0] sm:$0xff]
  %v57 = vld [vmem:[%s1 + $0xf8] sm:$0xff]
  %v62 = vcombine.low %v17, %v18
  %v63 = vcombine.low %v19, %v20
  %v65 = vunpack.c.l.s4 1983009808
  %v66 = vunpack.c.0.s8 %v65
  %v67 = vlaneseq
  %v68 = vshrl.u32 %v67, 7
  %v69 = vsub.s32 %v66, %v68
  %v70 = vrot.slane %v62, %v69
  %v72 = vunpack.c.l.s4 1983009808
  %v73 = vunpack.c.0.s8 %v72
  %v74 = vlaneseq
  %v75 = vshrl.u32 %v74, 7
  %v76 = vsub.s32 %v73, %v75
  %v77 = vrot.slane %v63, %v76
  %v78 = vcombine.low %v70, %v77
  %v79 = vcombine.high %v70, %v77
  %82 = vmatprep.subr.mxu0 0.0
  %83 = vmatpush1.msra.mxu0 %v26
  %84 = vmatprep.subr.mxu0 0.0
  %85 = vmatpush1.msra.mxu0 %v27
  %86 = vmatprep.subr.mxu0 0.0
  %87 = vmatpush1.msra.mxu0 %v28
  %88 = vmatprep.subr.mxu0 0.0
  %89 = vmatpush1.msra.mxu0 %v29
  %90 = vmatprep.subr.mxu0 0.0
  %91 = vmatpush1.msra.mxu0 %v30
  %92 = vmatprep.subr.mxu0 0.0
  %93 = vmatpush1.msra.mxu0 %v31
  %94 = vmatprep.subr.mxu0 0.0
  %95 = vmatpush1.msra.mxu0 %v32
  %96 = vmatprep.subr.mxu0 0.0
  %97 = vmatpush1.msra.mxu0 %v33
  %98 = vmatprep.subr.mxu0 0.0
  %99 = vmatpush1.msra.mxu0 %v34
  %100 = vmatprep.subr.mxu0 0.0
  %101 = vmatpush1.msra.mxu0 %v35
  %102 = vmatprep.subr.mxu0 0.0
  %103 = vmatpush1.msra.mxu0 %v36
  %104 = vmatprep.subr.mxu0 0.0
  %105 = vmatpush1.msra.mxu0 %v37
  %106 = vmatprep.subr.mxu0 0.0
  %107 = vmatpush1.msra.mxu0 %v38
  %108 = vmatprep.subr.mxu0 0.0
  %109 = vmatpush1.msra.mxu0 %v39
  %110 = vmatprep.subr.mxu0 0.0
  %111 = vmatpush1.msra.mxu0 %v40
  %112 = vmatprep.subr.mxu0 0.0
  %113 = vmatpush1.msra.mxu0 %v41
  %114 = vmatprep.subr.mxu0 0.0
  %115 = vmatpush1.msra.mxu0 %v42
  %116 = vmatprep.subr.mxu0 0.0
  %117 = vmatpush1.msra.mxu0 %v43
  %118 = vmatprep.subr.mxu0 0.0
  %119 = vmatpush1.msra.mxu0 %v44
  %120 = vmatprep.subr.mxu0 0.0
  %121 = vmatpush1.msra.mxu0 %v45
  %122 = vmatprep.subr.mxu0 0.0
  %123 = vmatpush1.msra.mxu0 %v46
  %124 = vmatprep.subr.mxu0 0.0
  %125 = vmatpush1.msra.mxu0 %v47
  %126 = vmatprep.subr.mxu0 0.0
  %127 = vmatpush1.msra.mxu0 %v48
  %128 = vmatprep.subr.mxu0 0.0
  %129 = vmatpush1.msra.mxu0 %v49
  %130 = vmatprep.subr.mxu0 0.0
  %131 = vmatpush1.msra.mxu0 %v50
  %132 = vmatprep.subr.mxu0 0.0
  %133 = vmatpush1.msra.mxu0 %v51
  %134 = vmatprep.subr.mxu0 0.0
  %135 = vmatpush1.msra.mxu0 %v52
  %136 = vmatprep.subr.mxu0 0.0
  %137 = vmatpush1.msra.mxu0 %v53
  %138 = vmatprep.subr.mxu0 0.0
  %139 = vmatpush1.msra.mxu0 %v54
  %140 = vmatprep.subr.mxu0 0.0
  %141 = vmatpush1.msra.mxu0 %v55
  %142 = vmatprep.subr.mxu0 0.0
  %143 = vmatpush1.msra.mxu0 %v56
  %144 = vmatprep.subr.mxu0 0.0
  %145 = vmatpush1.msra.mxu0 %v57
  %146 = vmatprep.mubr.f32.mxu0 %v79
  %147 = vmatmul.mubr.f32.gmra.mrb[0].mxu0 %v78
  %v148 = vpop.f32.mrb[0].mxu0
  %v149 = vadd.f32 0.0, %v148
  %v150 = vpop.f32.mrb[0].mxu0
  %151 = vdwg.mxu0
  %v153 = vcombine.high %v149, %v149
  %v155 = vunpack.c.l.s4 1983009808
  %v156 = vunpack.c.0.s8 %v155
  %v157 = vlaneseq
  %v158 = vshrl.u32 %v157, 7
  %v159 = vsub.s32 %v156, %v158
  %v160 = vrot.slane %v149, %v159
  %v162 = vunpack.c.l.s4 1983009808
  %v163 = vunpack.c.0.s8 %v162
  %v164 = vlaneseq
  %v165 = vshrl.u32 %v164, 7
  %v166 = vsub.s32 %v163, %v165
  %v167 = vrot.slane %v153, %v166
  %v168 = vcombine.high %v160, %v160
  %v169 = vcombine.high %v167, %v167
  %174 = vst [vmem:[#allocation2] sm:$0x3] %v160
  %175 = vst [vmem:[#allocation2 + $0x2] sm:$0x3] %v168
  %176 = vst [vmem:[#allocation2 + $0x4] sm:$0x3] %v167
  %177 = vst [vmem:[#allocation2 + $0x6] sm:$0x3] %v169
  %v178 = vld [vmem:[#allocation2] sm:$0x3]
  %v179 = vld [vmem:[#allocation2 + $0x2] sm:$0x3]
  %v180 = vld [vmem:[#allocation2 + $0x4] sm:$0x3]
  %v181 = vld [vmem:[#allocation2 + $0x6] sm:$0x3]
  %s182 = scalar_lea.vmem %s1, 256
  %v183 = vld [vmem:[%s182] sm:$0xff]
  %v184 = vld [vmem:[%s182 + $0x8] sm:$0xff]
  %v185 = vld [vmem:[%s182 + $0x10] sm:$0xff]
  %v186 = vld [vmem:[%s182 + $0x18] sm:$0xff]
  %v187 = vld [vmem:[%s182 + $0x20] sm:$0xff]
  %v188 = vld [vmem:[%s182 + $0x28] sm:$0xff]
  %v189 = vld [vmem:[%s182 + $0x30] sm:$0xff]
  %v190 = vld [vmem:[%s182 + $0x38] sm:$0xff]
  %v191 = vld [vmem:[%s182 + $0x40] sm:$0xff]
  %v192 = vld [vmem:[%s182 + $0x48] sm:$0xff]
  %v193 = vld [vmem:[%s182 + $0x50] sm:$0xff]
  %v194 = vld [vmem:[%s182 + $0x58] sm:$0xff]
  %v195 = vld [vmem:[%s182 + $0x60] sm:$0xff]
  %v196 = vld [vmem:[%s182 + $0x68] sm:$0xff]
  %v197 = vld [vmem:[%s182 + $0x70] sm:$0xff]
  %v198 = vld [vmem:[%s182 + $0x78] sm:$0xff]
  %v199 = vld [vmem:[%s182 + $0x80] sm:$0xff]
  %v200 = vld [vmem:[%s182 + $0x88] sm:$0xff]
  %v201 = vld [vmem:[%s182 + $0x90] sm:$0xff]
  %v202 = vld [vmem:[%s182 + $0x98] sm:$0xff]
  %v203 = vld [vmem:[%s182 + $0xa0] sm:$0xff]
  %v204 = vld [vmem:[%s182 + $0xa8] sm:$0xff]
  %v205 = vld [vmem:[%s182 + $0xb0] sm:$0xff]
  %v206 = vld [vmem:[%s182 + $0xb8] sm:$0xff]
  %v207 = vld [vmem:[%s182 + $0xc0] sm:$0xff]
  %v208 = vld [vmem:[%s182 + $0xc8] sm:$0xff]
  %v209 = vld [vmem:[%s182 + $0xd0] sm:$0xff]
  %v210 = vld [vmem:[%s182 + $0xd8] sm:$0xff]
  %v211 = vld [vmem:[%s182 + $0xe0] sm:$0xff]
  %v212 = vld [vmem:[%s182 + $0xe8] sm:$0xff]
  %v213 = vld [vmem:[%s182 + $0xf0] sm:$0xff]
  %v214 = vld [vmem:[%s182 + $0xf8] sm:$0xff]
  %v219 = vcombine.low %v22, %v23
  %v220 = vcombine.low %v24, %v25
  %v222 = vunpack.c.l.s4 1983009808
  %v223 = vunpack.c.0.s8 %v222
  %v224 = vlaneseq
  %v225 = vshrl.u32 %v224, 7
  %v226 = vsub.s32 %v223, %v225
  %v227 = vrot.slane %v219, %v226
  %v229 = vunpack.c.l.s4 1983009808
  %v230 = vunpack.c.0.s8 %v229
  %v231 = vlaneseq
  %v232 = vshrl.u32 %v231, 7
  %v233 = vsub.s32 %v230, %v232
  %v234 = vrot.slane %v220, %v233
  %v235 = vcombine.low %v227, %v234
  %v236 = vcombine.high %v227, %v234
  %239 = vmatprep.subr.mxu0 0.0
  %240 = vmatpush1.msra.mxu0 %v183
  %241 = vmatprep.subr.mxu0 0.0
  %242 = vmatpush1.msra.mxu0 %v184
  %243 = vmatprep.subr.mxu0 0.0
  %244 = vmatpush1.msra.mxu0 %v185
  %245 = vmatprep.subr.mxu0 0.0
  %246 = vmatpush1.msra.mxu0 %v186
  %247 = vmatprep.subr.mxu0 0.0
  %248 = vmatpush1.msra.mxu0 %v187
  %249 = vmatprep.subr.mxu0 0.0
  %250 = vmatpush1.msra.mxu0 %v188
  %251 = vmatprep.subr.mxu0 0.0
  %252 = vmatpush1.msra.mxu0 %v189
  %253 = vmatprep.subr.mxu0 0.0
  %254 = vmatpush1.msra.mxu0 %v190
  %255 = vmatprep.subr.mxu0 0.0
  %256 = vmatpush1.msra.mxu0 %v191
  %257 = vmatprep.subr.mxu0 0.0
  %258 = vmatpush1.msra.mxu0 %v192
  %259 = vmatprep.subr.mxu0 0.0
  %260 = vmatpush1.msra.mxu0 %v193
  %261 = vmatprep.subr.mxu0 0.0
  %262 = vmatpush1.msra.mxu0 %v194
  %263 = vmatprep.subr.mxu0 0.0
  %264 = vmatpush1.msra.mxu0 %v195
  %265 = vmatprep.subr.mxu0 0.0
  %266 = vmatpush1.msra.mxu0 %v196
  %267 = vmatprep.subr.mxu0 0.0
  %268 = vmatpush1.msra.mxu0 %v197
  %269 = vmatprep.subr.mxu0 0.0
  %270 = vmatpush1.msra.mxu0 %v198
  %271 = vmatprep.subr.mxu0 0.0
  %272 = vmatpush1.msra.mxu0 %v199
  %273 = vmatprep.subr.mxu0 0.0
  %274 = vmatpush1.msra.mxu0 %v200
  %275 = vmatprep.subr.mxu0 0.0
  %276 = vmatpush1.msra.mxu0 %v201
  %277 = vmatprep.subr.mxu0 0.0
  %278 = vmatpush1.msra.mxu0 %v202
  %279 = vmatprep.subr.mxu0 0.0
  %280 = vmatpush1.msra.mxu0 %v203
  %281 = vmatprep.subr.mxu0 0.0
  %282 = vmatpush1.msra.mxu0 %v204
  %283 = vmatprep.subr.mxu0 0.0
  %284 = vmatpush1.msra.mxu0 %v205
  %285 = vmatprep.subr.mxu0 0.0
  %286 = vmatpush1.msra.mxu0 %v206
  %287 = vmatprep.subr.mxu0 0.0
  %288 = vmatpush1.msra.mxu0 %v207
  %289 = vmatprep.subr.mxu0 0.0
  %290 = vmatpush1.msra.mxu0 %v208
  %291 = vmatprep.subr.mxu0 0.0
  %292 = vmatpush1.msra.mxu0 %v209
  %293 = vmatprep.subr.mxu0 0.0
  %294 = vmatpush1.msra.mxu0 %v210
  %295 = vmatprep.subr.mxu0 0.0
  %296 = vmatpush1.msra.mxu0 %v211
  %297 = vmatprep.subr.mxu0 0.0
  %298 = vmatpush1.msra.mxu0 %v212
  %299 = vmatprep.subr.mxu0 0.0
  %300 = vmatpush1.msra.mxu0 %v213
  %301 = vmatprep.subr.mxu0 0.0
  %302 = vmatpush1.msra.mxu0 %v214
  %303 = vmatprep.mubr.f32.mxu0 %v236
  %304 = vmatmul.mubr.f32.gmra.mrb[0].mxu0 %v235
  %v305 = vpop.f32.mrb[0].mxu0
  %v306 = vadd.f32 0.0, %v305
  %v307 = vpop.f32.mrb[0].mxu0
  %308 = vdwg.mxu0
  %v310 = vcombine.high %v306, %v306
  %v312 = vunpack.c.l.s4 1983009808
  %v313 = vunpack.c.0.s8 %v312
  %v314 = vlaneseq
  %v315 = vshrl.u32 %v314, 7
  %v316 = vsub.s32 %v313, %v315
  %v317 = vrot.slane %v306, %v316
  %v319 = vunpack.c.l.s4 1983009808
  %v320 = vunpack.c.0.s8 %v319
  %v321 = vlaneseq
  %v322 = vshrl.u32 %v321, 7
  %v323 = vsub.s32 %v320, %v322
  %v324 = vrot.slane %v310, %v323
  %v325 = vcombine.high %v317, %v317
  %v326 = vcombine.high %v324, %v324
  %v331 = vadd.f32 %v178, %v317
  %v332 = vadd.f32 %v179, %v325
  %v333 = vadd.f32 %v180, %v324
  %v334 = vadd.f32 %v181, %v326
  %335 = vst [vmem:[#allocation2] sm:$0x3] %v331
  %336 = vst [vmem:[#allocation2 + $0x2] sm:$0x3] %v332
  %337 = vst [vmem:[#allocation2 + $0x4] sm:$0x3] %v333
  %338 = vst [vmem:[#allocation2 + $0x6] sm:$0x3] %v334
  %s339 = scalar_lea.vmem %s1, 512
  %v340 = vld [vmem:[%s339] sm:$0xff]
  %v341 = vld [vmem:[%s339 + $0x8] sm:$0xff]
  %v342 = vld [vmem:[%s339 + $0x10] sm:$0xff]
  %v343 = vld [vmem:[%s339 + $0x18] sm:$0xff]
  %v344 = vld [vmem:[%s339 + $0x20] sm:$0xff]
  %v345 = vld [vmem:[%s339 + $0x28] sm:$0xff]
  %v346 = vld [vmem:[%s339 + $0x30] sm:$0xff]
  %v347 = vld [vmem:[%s339 + $0x38] sm:$0xff]
  %v348 = vld [vmem:[%s339 + $0x40] sm:$0xff]
  %v349 = vld [vmem:[%s339 + $0x48] sm:$0xff]
  %v350 = vld [vmem:[%s339 + $0x50] sm:$0xff]
  %v351 = vld [vmem:[%s339 + $0x58] sm:$0xff]
  %v352 = vld [vmem:[%s339 + $0x60] sm:$0xff]
  %v353 = vld [vmem:[%s339 + $0x68] sm:$0xff]
  %v354 = vld [vmem:[%s339 + $0x70] sm:$0xff]
  %v355 = vld [vmem:[%s339 + $0x78] sm:$0xff]
  %v356 = vld [vmem:[%s339 + $0x80] sm:$0xff]
  %v357 = vld [vmem:[%s339 + $0x88] sm:$0xff]
  %v358 = vld [vmem:[%s339 + $0x90] sm:$0xff]
  %v359 = vld [vmem:[%s339 + $0x98] sm:$0xff]
  %v360 = vld [vmem:[%s339 + $0xa0] sm:$0xff]
  %v361 = vld [vmem:[%s339 + $0xa8] sm:$0xff]
  %v362 = vld [vmem:[%s339 + $0xb0] sm:$0xff]
  %v363 = vld [vmem:[%s339 + $0xb8] sm:$0xff]
  %v364 = vld [vmem:[%s339 + $0xc0] sm:$0xff]
  %v365 = vld [vmem:[%s339 + $0xc8] sm:$0xff]
  %v366 = vld [vmem:[%s339 + $0xd0] sm:$0xff]
  %v367 = vld [vmem:[%s339 + $0xd8] sm:$0xff]
  %v368 = vld [vmem:[%s339 + $0xe0] sm:$0xff]
  %v369 = vld [vmem:[%s339 + $0xe8] sm:$0xff]
  %v370 = vld [vmem:[%s339 + $0xf0] sm:$0xff]
  %v371 = vld [vmem:[%s339 + $0xf8] sm:$0xff]
  %372 = vmatprep.subr.mxu0 0.0
  %373 = vmatpush1.msra.mxu0 %v340
  %374 = vmatprep.subr.mxu0 0.0
  %375 = vmatpush1.msra.mxu0 %v341
  %376 = vmatprep.subr.mxu0 0.0
  %377 = vmatpush1.msra.mxu0 %v342
  %378 = vmatprep.subr.mxu0 0.0
  %379 = vmatpush1.msra.mxu0 %v343
  %380 = vmatprep.subr.mxu0 0.0
  %381 = vmatpush1.msra.mxu0 %v344
  %382 = vmatprep.subr.mxu0 0.0
  %383 = vmatpush1.msra.mxu0 %v345
  %384 = vmatprep.subr.mxu0 0.0
  %385 = vmatpush1.msra.mxu0 %v346
  %386 = vmatprep.subr.mxu0 0.0
  %387 = vmatpush1.msra.mxu0 %v347
  %388 = vmatprep.subr.mxu0 0.0
  %389 = vmatpush1.msra.mxu0 %v348
  %390 = vmatprep.subr.mxu0 0.0
  %391 = vmatpush1.msra.mxu0 %v349
  %392 = vmatprep.subr.mxu0 0.0
  %393 = vmatpush1.msra.mxu0 %v350
  %394 = vmatprep.subr.mxu0 0.0
  %395 = vmatpush1.msra.mxu0 %v351
  %396 = vmatprep.subr.mxu0 0.0
  %397 = vmatpush1.msra.mxu0 %v352
  %398 = vmatprep.subr.mxu0 0.0
  %399 = vmatpush1.msra.mxu0 %v353
  %400 = vmatprep.subr.mxu0 0.0
  %401 = vmatpush1.msra.mxu0 %v354
  %402 = vmatprep.subr.mxu0 0.0
  %403 = vmatpush1.msra.mxu0 %v355
  %404 = vmatprep.subr.mxu0 0.0
  %405 = vmatpush1.msra.mxu0 %v356
  %406 = vmatprep.subr.mxu0 0.0
  %407 = vmatpush1.msra.mxu0 %v357
  %408 = vmatprep.subr.mxu0 0.0
  %409 = vmatpush1.msra.mxu0 %v358
  %410 = vmatprep.subr.mxu0 0.0
  %411 = vmatpush1.msra.mxu0 %v359
  %412 = vmatprep.subr.mxu0 0.0
  %413 = vmatpush1.msra.mxu0 %v360
  %414 = vmatprep.subr.mxu0 0.0
  %415 = vmatpush1.msra.mxu0 %v361
  %416 = vmatprep.subr.mxu0 0.0
  %417 = vmatpush1.msra.mxu0 %v362
  %418 = vmatprep.subr.mxu0 0.0
  %419 = vmatpush1.msra.mxu0 %v363
  %420 = vmatprep.subr.mxu0 0.0
  %421 = vmatpush1.msra.mxu0 %v364
  %422 = vmatprep.subr.mxu0 0.0
  %423 = vmatpush1.msra.mxu0 %v365
  %424 = vmatprep.subr.mxu0 0.0
  %425 = vmatpush1.msra.mxu0 %v366
  %426 = vmatprep.subr.mxu0 0.0
  %427 = vmatpush1.msra.mxu0 %v367
  %428 = vmatprep.subr.mxu0 0.0
  %429 = vmatpush1.msra.mxu0 %v368
  %430 = vmatprep.subr.mxu0 0.0
  %431 = vmatpush1.msra.mxu0 %v369
  %432 = vmatprep.subr.mxu0 0.0
  %433 = vmatpush1.msra.mxu0 %v370
  %434 = vmatprep.subr.mxu0 0.0
  %435 = vmatpush1.msra.mxu0 %v371
  %436 = vmatprep.mubr.f32.mxu0 %v236
  %437 = vmatmul.mubr.f32.gmra.mrb[0].mxu0 %v235
  %v438 = vpop.f32.mrb[0].mxu0
  %v439 = vadd.f32 0.0, %v438
  %v440 = vpop.f32.mrb[0].mxu0
  %441 = vdwg.mxu0
  %v443 = vcombine.high %v439, %v439
  %v445 = vunpack.c.l.s4 1983009808
  %v446 = vunpack.c.0.s8 %v445
  %v447 = vlaneseq
  %v448 = vshrl.u32 %v447, 7
  %v449 = vsub.s32 %v446, %v448
  %v450 = vrot.slane %v439, %v449
  %v452 = vunpack.c.l.s4 1983009808
  %v453 = vunpack.c.0.s8 %v452
  %v454 = vlaneseq
  %v455 = vshrl.u32 %v454, 7
  %v456 = vsub.s32 %v453, %v455
  %v457 = vrot.slane %v443, %v456
  %v460 = vld [vmem:[#allocation2] sm:$0x3]
  %v461 = vld [vmem:[#allocation2 + $0x2] sm:$0x3]
  %v462 = vld [vmem:[#allocation2 + $0x4] sm:$0x3]
  %v463 = vld [vmem:[#allocation2 + $0x6] sm:$0x3]
  %v464 = vadd.f32 %v460, 0.0
  %v465 = vadd.f32 %v461, %v450
  %v466 = vadd.f32 %v462, 0.0
  %v467 = vadd.f32 %v463, %v457
  %468 = vst [vmem:[#allocation2] sm:$0x3] %v464
  %469 = vst [vmem:[#allocation2 + $0x2] sm:$0x3] %v465
  %470 = vst [vmem:[#allocation2 + $0x4] sm:$0x3] %v466
  %471 = vst [vmem:[#allocation2 + $0x6] sm:$0x3] %v467
  %v472 = vld [vmem:[%s2] sm:$0xff]
  %v473 = vld [vmem:[%s2 + $0x8] sm:$0xff]
  %v474 = vld [vmem:[%s2 + $0x10] sm:$0xff]
  %v475 = vld [vmem:[%s2 + $0x18] sm:$0xff]
  %v476 = vld [vmem:[%s2 + $0x20] sm:$0xff]
  %v477 = vld [vmem:[%s2 + $0x28] sm:$0xff]
  %v478 = vld [vmem:[%s2 + $0x30] sm:$0xff]
  %v479 = vld [vmem:[%s2 + $0x38] sm:$0xff]
  %v480 = vld [vmem:[%s2 + $0x40] sm:$0xff]
  %v481 = vld [vmem:[%s2 + $0x48] sm:$0xff]
  %v482 = vld [vmem:[%s2 + $0x50] sm:$0xff]
  %v483 = vld [vmem:[%s2 + $0x58] sm:$0xff]
  %v484 = vld [vmem:[%s2 + $0x60] sm:$0xff]
  %v485 = vld [vmem:[%s2 + $0x68] sm:$0xff]
  %v486 = vld [vmem:[%s2 + $0x70] sm:$0xff]
  %v487 = vld [vmem:[%s2 + $0x78] sm:$0xff]
  %s488 = scalar_lea.vmem %s2, 128
  %v489 = vld [vmem:[%s488] sm:$0xff]
  %v490 = vld [vmem:[%s488 + $0x8] sm:$0xff]
  %v491 = vld [vmem:[%s488 + $0x10] sm:$0xff]
  %v492 = vld [vmem:[%s488 + $0x18] sm:$0xff]
  %v493 = vld [vmem:[%s488 + $0x20] sm:$0xff]
  %v494 = vld [vmem:[%s488 + $0x28] sm:$0xff]
  %v495 = vld [vmem:[%s488 + $0x30] sm:$0xff]
  %v496 = vld [vmem:[%s488 + $0x38] sm:$0xff]
  %v497 = vld [vmem:[%s488 + $0x40] sm:$0xff]
  %v498 = vld [vmem:[%s488 + $0x48] sm:$0xff]
  %v499 = vld [vmem:[%s488 + $0x50] sm:$0xff]
  %v500 = vld [vmem:[%s488 + $0x58] sm:$0xff]
  %v501 = vld [vmem:[%s488 + $0x60] sm:$0xff]
  %v502 = vld [vmem:[%s488 + $0x68] sm:$0xff]
  %v503 = vld [vmem:[%s488 + $0x70] sm:$0xff]
  %v504 = vld [vmem:[%s488 + $0x78] sm:$0xff]
  %505 = vmatprep.subr.mxu0 0.0
  %506 = vmatpush1.msra.mxu0 %v489
  %507 = vmatprep.subr.mxu0 0.0
  %508 = vmatpush1.msra.mxu0 %v490
  %509 = vmatprep.subr.mxu0 0.0
  %510 = vmatpush1.msra.mxu0 %v491
  %511 = vmatprep.subr.mxu0 0.0
  %512 = vmatpush1.msra.mxu0 %v492
  %513 = vmatprep.subr.mxu0 0.0
  %514 = vmatpush1.msra.mxu0 %v493
  %515 = vmatprep.subr.mxu0 0.0
  %516 = vmatpush1.msra.mxu0 %v494
  %517 = vmatprep.subr.mxu0 0.0
  %518 = vmatpush1.msra.mxu0 %v495
  %519 = vmatprep.subr.mxu0 0.0
  %520 = vmatpush1.msra.mxu0 %v496
  %521 = vmatprep.subr.mxu0 0.0
  %522 = vmatpush1.msra.mxu0 %v497
  %523 = vmatprep.subr.mxu0 0.0
  %524 = vmatpush1.msra.mxu0 %v498
  %525 = vmatprep.subr.mxu0 0.0
  %526 = vmatpush1.msra.mxu0 %v499
  %527 = vmatprep.subr.mxu0 0.0
  %528 = vmatpush1.msra.mxu0 %v500
  %529 = vmatprep.subr.mxu0 0.0
  %530 = vmatpush1.msra.mxu0 %v501
  %531 = vmatprep.subr.mxu0 0.0
  %532 = vmatpush1.msra.mxu0 %v502
  %533 = vmatprep.subr.mxu0 0.0
  %534 = vmatpush1.msra.mxu0 %v503
  %535 = vmatprep.subr.mxu0 0.0
  %536 = vmatpush1.msra.mxu0 %v504
  %537 = vmatprep.subr.mxu0 0.0
  %538 = vmatpush1.msra.mxu0 0.0
  %539 = vmatprep.subr.mxu0 0.0
  %540 = vmatpush1.msra.mxu0 0.0
  %541 = vmatprep.subr.mxu0 0.0
  %542 = vmatpush1.msra.mxu0 0.0
  %543 = vmatprep.subr.mxu0 0.0
  %544 = vmatpush1.msra.mxu0 0.0
  %545 = vmatprep.subr.mxu0 0.0
  %546 = vmatpush1.msra.mxu0 0.0
  %547 = vmatprep.subr.mxu0 0.0
  %548 = vmatpush1.msra.mxu0 0.0
  %549 = vmatprep.subr.mxu0 0.0
  %550 = vmatpush1.msra.mxu0 0.0
  %551 = vmatprep.subr.mxu0 0.0
  %552 = vmatpush1.msra.mxu0 0.0
  %553 = vmatprep.subr.mxu0 0.0
  %554 = vmatpush1.msra.mxu0 0.0
  %555 = vmatprep.subr.mxu0 0.0
  %556 = vmatpush1.msra.mxu0 0.0
  %557 = vmatprep.subr.mxu0 0.0
  %558 = vmatpush1.msra.mxu0 0.0
  %559 = vmatprep.subr.mxu0 0.0
  %560 = vmatpush1.msra.mxu0 0.0
  %561 = vmatprep.subr.mxu0 0.0
  %562 = vmatpush1.msra.mxu0 0.0
  %563 = vmatprep.subr.mxu0 0.0
  %564 = vmatpush1.msra.mxu0 0.0
  %565 = vmatprep.subr.mxu0 0.0
  %566 = vmatpush1.msra.mxu0 0.0
  %567 = vmatprep.subr.mxu0 0.0
  %568 = vmatpush1.msra.mxu0 0.0
  %569 = vmatprep.mubr.f32.mxu0 0.0
  %570 = vmatmul.mubr.f32.gmra.mrb[0].mxu0 %v236
  %v571 = vpop.f32.mrb[0].mxu0
  %v572 = vadd.f32 0.0, %v571
  %v573 = vpop.f32.mrb[0].mxu0
  %574 = vdwg.mxu0
  %575 = vmatprep.subr.mxu0 0.0
  %576 = vmatpush1.msra.mxu0 %v472
  %577 = vmatprep.subr.mxu0 0.0
  %578 = vmatpush1.msra.mxu0 %v473
  %579 = vmatprep.subr.mxu0 0.0
  %580 = vmatpush1.msra.mxu0 %v474
  %581 = vmatprep.subr.mxu0 0.0
  %582 = vmatpush1.msra.mxu0 %v475
  %583 = vmatprep.subr.mxu0 0.0
  %584 = vmatpush1.msra.mxu0 %v476
  %585 = vmatprep.subr.mxu0 0.0
  %586 = vmatpush1.msra.mxu0 %v477
  %587 = vmatprep.subr.mxu0 0.0
  %588 = vmatpush1.msra.mxu0 %v478
  %589 = vmatprep.subr.mxu0 0.0
  %590 = vmatpush1.msra.mxu0 %v479
  %591 = vmatprep.subr.mxu0 0.0
  %592 = vmatpush1.msra.mxu0 %v480
  %593 = vmatprep.subr.mxu0 0.0
  %594 = vmatpush1.msra.mxu0 %v481
  %595 = vmatprep.subr.mxu0 0.0
  %596 = vmatpush1.msra.mxu0 %v482
  %597 = vmatprep.subr.mxu0 0.0
  %598 = vmatpush1.msra.mxu0 %v483
  %599 = vmatprep.subr.mxu0 0.0
  %600 = vmatpush1.msra.mxu0 %v484
  %601 = vmatprep.subr.mxu0 0.0
  %602 = vmatpush1.msra.mxu0 %v485
  %603 = vmatprep.subr.mxu0 0.0
  %604 = vmatpush1.msra.mxu0 %v486
  %605 = vmatprep.subr.mxu0 0.0
  %606 = vmatpush1.msra.mxu0 %v487
  %607 = vmatprep.subr.mxu0 0.0
  %608 = vmatpush1.msra.mxu0 0.0
  %609 = vmatprep.subr.mxu0 0.0
  %610 = vmatpush1.msra.mxu0 0.0
  %611 = vmatprep.subr.mxu0 0.0
  %612 = vmatpush1.msra.mxu0 0.0
  %613 = vmatprep.subr.mxu0 0.0
  %614 = vmatpush1.msra.mxu0 0.0
  %615 = vmatprep.subr.mxu0 0.0
  %616 = vmatpush1.msra.mxu0 0.0
  %617 = vmatprep.subr.mxu0 0.0
  %618 = vmatpush1.msra.mxu0 0.0
  %619 = vmatprep.subr.mxu0 0.0
  %620 = vmatpush1.msra.mxu0 0.0
  %621 = vmatprep.subr.mxu0 0.0
  %622 = vmatpush1.msra.mxu0 0.0
  %623 = vmatprep.subr.mxu0 0.0
  %624 = vmatpush1.msra.mxu0 0.0
  %625 = vmatprep.subr.mxu0 0.0
  %626 = vmatpush1.msra.mxu0 0.0
  %627 = vmatprep.subr.mxu0 0.0
  %628 = vmatpush1.msra.mxu0 0.0
  %629 = vmatprep.subr.mxu0 0.0
  %630 = vmatpush1.msra.mxu0 0.0
  %631 = vmatprep.subr.mxu0 0.0
  %632 = vmatpush1.msra.mxu0 0.0
  %633 = vmatprep.subr.mxu0 0.0
  %634 = vmatpush1.msra.mxu0 0.0
  %635 = vmatprep.subr.mxu0 0.0
  %636 = vmatpush1.msra.mxu0 0.0
  %637 = vmatprep.subr.mxu0 0.0
  %638 = vmatpush1.msra.mxu0 0.0
  %639 = vmatprep.mubr.f32.mxu0 0.0
  %640 = vmatmul.mubr.f32.gmra.mrb[0].mxu0 %v79
  %v641 = vpop.f32.mrb[0].mxu0
  %v642 = vadd.f32 %v572, %v641
  %v643 = vpop.f32.mrb[0].mxu0
  %644 = vdwg.mxu0
  %v646 = vcombine.high %v642, %v642
  %v648 = vunpack.c.l.s4 1983009808
  %v649 = vunpack.c.0.s8 %v648
  %v650 = vlaneseq
  %v651 = vshrl.u32 %v650, 7
  %v652 = vsub.s32 %v649, %v651
  %v653 = vrot.slane %v642, %v652
  %v655 = vunpack.c.l.s4 1983009808
  %v656 = vunpack.c.0.s8 %v655
  %v657 = vlaneseq
  %v658 = vshrl.u32 %v657, 7
  %v659 = vsub.s32 %v656, %v658
  %v660 = vrot.slane %v646, %v659
  %v661 = vcombine.high %v653, %v653
  %v662 = vcombine.high %v660, %v660
  %s667 = scalar_lea.vmem %s2, 256
  %v668 = vld [vmem:[%s667] sm:$0xff]
  %v669 = vld [vmem:[%s667 + $0x8] sm:$0xff]
  %v670 = vld [vmem:[%s667 + $0x10] sm:$0xff]
  %v671 = vld [vmem:[%s667 + $0x18] sm:$0xff]
  %v672 = vld [vmem:[%s667 + $0x20] sm:$0xff]
  %v673 = vld [vmem:[%s667 + $0x28] sm:$0xff]
  %v674 = vld [vmem:[%s667 + $0x30] sm:$0xff]
  %v675 = vld [vmem:[%s667 + $0x38] sm:$0xff]
  %v676 = vld [vmem:[%s667 + $0x40] sm:$0xff]
  %v677 = vld [vmem:[%s667 + $0x48] sm:$0xff]
  %v678 = vld [vmem:[%s667 + $0x50] sm:$0xff]
  %v679 = vld [vmem:[%s667 + $0x58] sm:$0xff]
  %v680 = vld [vmem:[%s667 + $0x60] sm:$0xff]
  %v681 = vld [vmem:[%s667 + $0x68] sm:$0xff]
  %v682 = vld [vmem:[%s667 + $0x70] sm:$0xff]
  %v683 = vld [vmem:[%s667 + $0x78] sm:$0xff]
  %684 = vmatprep.subr.mxu0 0.0
  %685 = vmatpush1.msra.mxu0 %v668
  %686 = vmatprep.subr.mxu0 0.0
  %687 = vmatpush1.msra.mxu0 %v669
  %688 = vmatprep.subr.mxu0 0.0
  %689 = vmatpush1.msra.mxu0 %v670
  %690 = vmatprep.subr.mxu0 0.0
  %691 = vmatpush1.msra.mxu0 %v671
  %692 = vmatprep.subr.mxu0 0.0
  %693 = vmatpush1.msra.mxu0 %v672
  %694 = vmatprep.subr.mxu0 0.0
  %695 = vmatpush1.msra.mxu0 %v673
  %696 = vmatprep.subr.mxu0 0.0
  %697 = vmatpush1.msra.mxu0 %v674
  %698 = vmatprep.subr.mxu0 0.0
  %699 = vmatpush1.msra.mxu0 %v675
  %700 = vmatprep.subr.mxu0 0.0
  %701 = vmatpush1.msra.mxu0 %v676
  %702 = vmatprep.subr.mxu0 0.0
  %703 = vmatpush1.msra.mxu0 %v677
  %704 = vmatprep.subr.mxu0 0.0
  %705 = vmatpush1.msra.mxu0 %v678
  %706 = vmatprep.subr.mxu0 0.0
  %707 = vmatpush1.msra.mxu0 %v679
  %708 = vmatprep.subr.mxu0 0.0
  %709 = vmatpush1.msra.mxu0 %v680
  %710 = vmatprep.subr.mxu0 0.0
  %711 = vmatpush1.msra.mxu0 %v681
  %712 = vmatprep.subr.mxu0 0.0
  %713 = vmatpush1.msra.mxu0 %v682
  %714 = vmatprep.subr.mxu0 0.0
  %715 = vmatpush1.msra.mxu0 %v683
  %716 = vmatprep.subr.mxu0 0.0
  %717 = vmatpush1.msra.mxu0 0.0
  %718 = vmatprep.subr.mxu0 0.0
  %719 = vmatpush1.msra.mxu0 0.0
  %720 = vmatprep.subr.mxu0 0.0
  %721 = vmatpush1.msra.mxu0 0.0
  %722 = vmatprep.subr.mxu0 0.0
  %723 = vmatpush1.msra.mxu0 0.0
  %724 = vmatprep.subr.mxu0 0.0
  %725 = vmatpush1.msra.mxu0 0.0
  %726 = vmatprep.subr.mxu0 0.0
  %727 = vmatpush1.msra.mxu0 0.0
  %728 = vmatprep.subr.mxu0 0.0
  %729 = vmatpush1.msra.mxu0 0.0
  %730 = vmatprep.subr.mxu0 0.0
  %731 = vmatpush1.msra.mxu0 0.0
  %732 = vmatprep.subr.mxu0 0.0
  %733 = vmatpush1.msra.mxu0 0.0
  %734 = vmatprep.subr.mxu0 0.0
  %735 = vmatpush1.msra.mxu0 0.0
  %736 = vmatprep.subr.mxu0 0.0
  %737 = vmatpush1.msra.mxu0 0.0
  %738 = vmatprep.subr.mxu0 0.0
  %739 = vmatpush1.msra.mxu0 0.0
  %740 = vmatprep.subr.mxu0 0.0
  %741 = vmatpush1.msra.mxu0 0.0
  %742 = vmatprep.subr.mxu0 0.0
  %743 = vmatpush1.msra.mxu0 0.0
  %744 = vmatprep.subr.mxu0 0.0
  %745 = vmatpush1.msra.mxu0 0.0
  %746 = vmatprep.subr.mxu0 0.0
  %747 = vmatpush1.msra.mxu0 0.0
  %748 = vmatprep.mubr.f32.mxu0 0.0
  %749 = vmatmul.mubr.f32.gmra.mrb[0].mxu0 %v236
  %v750 = vpop.f32.mrb[0].mxu0
  %v751 = vadd.f32 0.0, %v750
  %v752 = vpop.f32.mrb[0].mxu0
  %753 = vdwg.mxu0
  %v755 = vcombine.high %v751, %v751
  %v757 = vunpack.c.l.s4 1983009808
  %v758 = vunpack.c.0.s8 %v757
  %v759 = vlaneseq
  %v760 = vshrl.u32 %v759, 7
  %v761 = vsub.s32 %v758, %v760
  %v762 = vrot.slane %v751, %v761
  %v764 = vunpack.c.l.s4 1983009808
  %v765 = vunpack.c.0.s8 %v764
  %v766 = vlaneseq
  %v767 = vshrl.u32 %v766, 7
  %v768 = vsub.s32 %v765, %v767
  %v769 = vrot.slane %v755, %v768
  %v772 = vadd.f32 %v653, 0.0
  %v773 = vadd.f32 %v661, %v762
  %v774 = vadd.f32 %v660, 0.0
  %v775 = vadd.f32 %v662, %v769
  %v776 = vld [vmem:[#allocation2] sm:$0x3]
  %v777 = vld [vmem:[#allocation2 + $0x2] sm:$0x3]
  %v778 = vld [vmem:[#allocation2 + $0x4] sm:$0x3]
  %v779 = vld [vmem:[#allocation2 + $0x6] sm:$0x3]
  %v784 = vlaneseq
  %v785 = vshrl.u32 %v784, 7
  %v786 = vsub.s32 0, %v785
  %v787 = vrot.slane %v772, %v786
  %v788 = vlaneseq
  %v789 = vshrl.u32 %v788, 7
  %v790 = vsub.s32 0, %v789
  %v791 = vrot.slane %v773, %v790
  %v792 = vlaneseq
  %v793 = vshrl.u32 %v792, 7
  %v794 = vsub.s32 0, %v793
  %v795 = vrot.slane %v774, %v794
  %v796 = vlaneseq
  %v797 = vshrl.u32 %v796, 7
  %v798 = vsub.s32 0, %v797
  %v799 = vrot.slane %v775, %v798
  %vm804 = vcmask 1040384
  %v805 = vsel %vm804, 0.0, %v787
  %v806 = vsel %vm804, 0.0, %v791
  %v807 = vsel %vm804, 0.0, %v795
  %v808 = vsel %vm804, 0.0, %v799
  %v809 = vadd.f32 %v776, %v805
  %v810 = vadd.f32 %v777, %v806
  %v811 = vadd.f32 %v778, %v807
  %v812 = vadd.f32 %v779, %v808
  %813 = vst [vmem:[#allocation2] sm:$0x3] %v809
  %814 = vst [vmem:[#allocation2 + $0x2] sm:$0x3] %v810
  %815 = vst [vmem:[#allocation2 + $0x4] sm:$0x3] %v811
  %816 = vst [vmem:[#allocation2 + $0x6] sm:$0x3] %v812
  %v817 = vld [vmem:[#allocation2] sm:$0x3]
  %v818 = vld [vmem:[#allocation2 + $0x2] sm:$0x3]
  %v819 = vld [vmem:[#allocation2 + $0x4] sm:$0x3]
  %v820 = vld [vmem:[#allocation2 + $0x6] sm:$0x3]
  %v821 = vld [vmem:[%s3] sm:$0x1]
  %v823 = vlaneseq
  %v824 = vshrl.u32 %v823, 7
  %v825 = vsub.s32 0, %v824
  %v826 = vrot.slane %v821, %v825
  %v828 = vadd.f32 %v817, %v826
  %v829 = vadd.f32 %v818, %v826
  %v830 = vadd.f32 %v819, %v826
  %v831 = vadd.f32 %v820, %v826
  %vm832 = vcmp.ge.f32.partialorder %v828, 0.0
  %vm833 = vcmp.ge.f32.partialorder %v829, 0.0
  %vm834 = vcmp.ge.f32.partialorder %v830, 0.0
  %vm835 = vcmp.ge.f32.partialorder %v831, 0.0
  %v836 = vmul.f32 %v828, 0.01
  %v837 = vmul.f32 %v829, 0.01
  %v838 = vmul.f32 %v830, 0.01
  %v839 = vmul.f32 %v831, 0.01
  %v840 = vsel %vm832, %v828, %v836
  %v841 = vsel %vm833, %v829, %v837
  %v842 = vsel %vm834, %v830, %v838
  %v843 = vsel %vm835, %v831, %v839
  %844 = vst [vmem:[%s4] sm:$0x3] %v840
  %845 = vst [vmem:[%s4 + $0x2] sm:$0x3] %v841
  %846 = vst [vmem:[%s4 + $0x4] sm:$0x3] %v842
  %847 = vst [vmem:[%s4 + $0x6] sm:$0x3] %v843
  // Predicated region
  $region18: #{gradual_style_block_forward.6} parent=0 // pred_check
    _
  $region19: #{gradual_style_block_forward.6} parent=0 // pred_check_branch
    %849 = sbr.rel (0) target = $region21
  $region20: #{gradual_style_block_forward.6} parent=0 // pred_region
    _
  $region21: #{gradual_style_block_forward.6} parent=0 // pred_fallthru
    _
  // Predicated region
  $region22: #{gradual_style_block_forward.6} parent=0 // pred_check
    _
  $region23: #{gradual_style_block_forward.6} parent=0 // pred_check_branch
    %851 = sbr.rel (0) target = $region25
  $region24: #{gradual_style_block_forward.6} parent=0 // pred_region
    _
  $region25: #{gradual_style_block_forward.6} parent=0 // pred_fallthru
    _

</llo_original>
